<compile_context>
chip_gen: v5e
topology: v5e:2x2
jax: 0.10.0
libtpu: 0.0.40
codegen_flags: <defaults>
</compile_context>

<pallas_src>
import functools
import math

import jax
import jax.numpy as jnp
from jax.experimental import pallas as pl
from jax.experimental.pallas import tpu as pltpu

LANES = 128


# --------------------------------------------------------------------------
# Single fused forward kernel (no grid; everything resident in VMEM)
# --------------------------------------------------------------------------

def _fused_forward_kernel(x_ref, p_ref, out_ref, *, meta):
    B, S, T, E, H, FF = meta["dims"]
    f32 = jnp.float32

    def ld(spec):                       # static slab slice -> loaded value
        off, r, c = spec
        return p_ref[off:off + r, :c]

    # ---- constants loaded once (hoisted out of every attention call) ----
    bias_enc = ld(meta["bias_enc"])     # (B*S, H*B*S) block-diag batch bias, tiled per head
    bias_self = ld(meta["bias_self"])   # (B*T, H*B*T)
    bias_cross = ld(meta["bias_cross"]) # (B*T, H*B*S)
    ones_s = ld(meta["ones_s"])         # (H*B*S, H*B*S) head-block diag of ones
    ones_t = ld(meta["ones_t"])         # (H*B*T, H*B*T)
    head_w = ld(meta["head_w"])         # (1, E)
    head_b = ld(meta["head_b"])         # (1, 1)

    # Per-head lane masks over the E feature lanes (built once, reused by all 6 MHAs).
    Dh = E // H
    col = jax.lax.broadcasted_iota(jnp.int32, (1, E), 1)
    hmask = [jnp.where((col >= h * Dh) & (col < (h + 1) * Dh), 1.0, 0.0).astype(f32)
             for h in range(H)]

    def linear(x, w_spec, b_spec):
        return jnp.dot(x, ld(w_spec), preferred_element_type=f32) + ld(b_spec)

    def attention(xq, xkv, a, bias_w, ones_blk):
        # All batches and all heads in one stacked score / softmax / PV pass.
        q = linear(xq, a["wq"], a["bq"])        # 1/sqrt(Dh) folded into wq/bq at prep
        k = linear(xkv, a["wk"], a["bk"])
        v = linear(xkv, a["wv"], a["bv"])
        k_st = jnp.concatenate([k * hm for hm in hmask], axis=0)   # (H*Nk, E)
        v_st = jnp.concatenate([v * hm for hm in hmask], axis=0)   # (H*Nk, E)
        s = jax.lax.dot_general(q, k_st, (((1,), (1,)), ((), ())),
                                preferred_element_type=f32) + bias_w  # (Nq, H*Nk)
        m = jnp.max(s, axis=-1, keepdims=True)      # one row max (valid shift for all heads)
        p = jnp.exp(s - m)
        den = jnp.dot(p, ones_blk, preferred_element_type=f32)     # per-head-block sums
        p = p / den                                                 # exact normalization
        o = jnp.dot(p, v_st, preferred_element_type=f32)            # (Nq, E), heads concat'd
        return linear(o, a["wo"], a["bo"])

    def add_layernorm(xa, xb, ln_spec, eps=1e-5):
        g, b = ld(ln_spec[0]), ld(ln_spec[1])
        h = xa + xb
        n = h.shape[0]
        st = jnp.concatenate([h, h * h], axis=0)                    # (2N, E)
        mom = jnp.sum(st, axis=-1, keepdims=True) * (1.0 / E)       # one lane reduce
        mean = mom[:n]
        var = mom[n:] - mean * mean
        return (h - mean) * jax.lax.rsqrt(var + eps) * g + b

    def ffn(x, l):
        h = jnp.maximum(linear(x, l["w1"], l["b1"]), 0.0)
        return linear(h, l["w2"], l["b2"])

    # ---- input projection + positional encoding (input bias folded into pe_in) ----
    mem = (jnp.dot(x_ref[...], ld(meta["in_w"]), preferred_element_type=f32)
           + ld(meta["pe_in"]))

    # ---- encoder stack (post-LN, relu, eval-mode dropout = identity) ----
    for l in meta["enc"]:
        mem = add_layernorm(mem, attention(mem, mem, l["attn"], bias_enc, ones_s), l["ln1"])
        mem = add_layernorm(mem, ffn(mem, l), l["ln2"])

    # ---- decoder stack (no tgt mask — matches the reference module) ----
    tgt = ld(meta["tgt0"])
    for l in meta["dec"]:
        tgt = add_layernorm(tgt, attention(tgt, tgt, l["self"], bias_self, ones_t), l["ln1"])
        tgt = add_layernorm(tgt, attention(tgt, mem, l["cross"], bias_cross, ones_s), l["ln2"])
        tgt = add_layernorm(tgt, ffn(tgt, l), l["ln3"])

    # ---- output head: VPU multiply + lane reduce (no N=1 MXU push) ----
    out_ref[...] = jnp.sum(tgt * head_w, axis=-1, keepdims=True) + head_b


# --------------------------------------------------------------------------
# One-time host-side parameter packing (outside the per-call jit)
# --------------------------------------------------------------------------

class _SlabPacker:
    """Packs 2-D blocks into a single (rows, 128) f32 slab (8-row aligned)."""

    def __init__(self):
        self._rows = 0
        self._parts = []

    def add(self, arr):
        arr = jnp.asarray(arr, jnp.float32)
        if arr.ndim == 1:
            arr = arr.reshape(1, -1)
        r, c = arr.shape
        assert c <= LANES, (r, c)
        off = self._rows
        self._parts.append((off, arr))
        self._rows += ((r + 7) // 8) * 8
        return (off, r, c)

    def finalize(self):
        slab = jnp.zeros((max(self._rows, 8), LANES), jnp.float32)
        for off, arr in self._parts:
            r, c = arr.shape
            slab = slab.at[off:off + r, :c].set(arr)
        return slab


def positional_encoding_table(max_len, d_model):
    pos = jnp.arange(max_len, dtype=jnp.float32)[:, None]
    div = jnp.exp(jnp.arange(0, d_model, 2, dtype=jnp.float32)
                  * (-math.log(10000.0) / d_model))
    pe = jnp.zeros((max_len, d_model), jnp.float32)
    pe = pe.at[:, 0::2].set(jnp.sin(pos * div))
    pe = pe.at[:, 1::2].set(jnp.cos(pos * div))
    return pe


def prepare_params(params, *, batch_size, seq_len, nhead, n_forecasts):
    B, S, T, H = batch_size, seq_len, n_forecasts, nhead
    E = params["in_proj_w"].shape[1]
    FF = params["encoder"][0]["w1"].shape[1]
    assert E % H == 0
    scale = 1.0 / math.sqrt(E // H)
    pe = params["pe"]
    pk = _SlabPacker()

    def attn_specs(p):
        return dict(
            wq=pk.add(p["wq"] * scale), bq=pk.add(p["bq"] * scale),
            wk=pk.add(p["wk"]), bk=pk.add(p["bk"]),
            wv=pk.add(p["wv"]), bv=pk.add(p["bv"]),
            wo=pk.add(p["wo"]), bo=pk.add(p["bo"]))

    def batch_bias_wide(Lq, Lk):
        r = jnp.arange(B * Lq)[:, None] // Lq
        c = jnp.arange(B * Lk)[None, :] // Lk
        base = jnp.where(r == c, 0.0, -1e30).astype(jnp.float32)
        return jnp.tile(base, (1, H))                 # (B*Lq, H*B*Lk)

    def head_block_ones(Lk):
        n = H * B * Lk
        r = jnp.arange(n)[:, None] // (B * Lk)
        c = jnp.arange(n)[None, :] // (B * Lk)
        return (r == c).astype(jnp.float32)           # (n, n)

    meta = dict(dims=(B, S, T, E, H, FF))
    meta["in_w"] = pk.add(params["in_proj_w"])
    meta["pe_in"] = pk.add(jnp.tile(pe[:S], (B, 1)) + params["in_proj_b"][None, :])
    meta["tgt0"] = pk.add(jnp.tile(params["query_embed"] + pe[:T], (B, 1)))
    meta["bias_enc"] = pk.add(batch_bias_wide(S, S))
    meta["bias_self"] = pk.add(batch_bias_wide(T, T))
    meta["bias_cross"] = pk.add(batch_bias_wide(T, S))
    meta["ones_s"] = pk.add(head_block_ones(S))
    meta["ones_t"] = pk.add(head_block_ones(T))
    meta["head_w"] = pk.add(params["head_w"].reshape(1, E))
    meta["head_b"] = pk.add(params["head_b"].reshape(1, 1))

    meta["enc"] = []
    for lp in params["encoder"]:
        meta["enc"].append(dict(
            attn=attn_specs(lp["self_attn"]),
            ln1=(pk.add(lp["norm1_g"]), pk.add(lp["norm1_b"])),
            w1=pk.add(lp["w1"]), b1=pk.add(lp["b1"]),
            w2=pk.add(lp["w2"]), b2=pk.add(lp["b2"]),
            ln2=(pk.add(lp["norm2_g"]), pk.add(lp["norm2_b"]))))

    meta["dec"] = []
    for lp in params["decoder"]:
        meta["dec"].append(dict(
            self=attn_specs(lp["self_attn"]),
            ln1=(pk.add(lp["norm1_g"]), pk.add(lp["norm1_b"])),
            cross=attn_specs(lp["cross_attn"]),
            ln2=(pk.add(lp["norm2_g"]), pk.add(lp["norm2_b"])),
            w1=pk.add(lp["w1"]), b1=pk.add(lp["b1"]),
            w2=pk.add(lp["w2"]), b2=pk.add(lp["b2"]),
            ln3=(pk.add(lp["norm3_g"]), pk.add(lp["norm3_b"]))))

    return pk.finalize(), meta


# --------------------------------------------------------------------------
# Per-call forward: reshape + single pallas_call + reshape
# --------------------------------------------------------------------------

def forward(x, pslab, *, meta):
    B, S, T, E, H, FF = meta["dims"]
    F = x.shape[-1]
    kern = functools.partial(_fused_forward_kernel, meta=meta)
    out2d = pl.pallas_call(
        kern,
        out_shape=jax.ShapeDtypeStruct((B * T, 1), jnp.float32),
        in_specs=[pl.BlockSpec(memory_space=pltpu.MemorySpace.VMEM),
                  pl.BlockSpec(memory_space=pltpu.MemorySpace.VMEM)],
        out_specs=pl.BlockSpec(memory_space=pltpu.MemorySpace.VMEM),
    )(x.reshape(B * S, F), pslab)
    return out2d.reshape(B, T, 1)


# --------------------------------------------------------------------------
# Pure-JAX reference of the same forward pass (correctness self-check)
# --------------------------------------------------------------------------

def reference_forward(x, params, *, nhead, n_forecasts):
    B, S, _ = x.shape
    E = params["in_proj_w"].shape[1]
    H, T = nhead, n_forecasts
    Dh = E // H
    pe = params["pe"]

    def mha(xq, xkv, p):
        q = xq @ p["wq"] + p["bq"]
        k = xkv @ p["wk"] + p["bk"]
        v = xkv @ p["wv"] + p["bv"]
        split = lambda t: t.reshape(t.shape[0], t.shape[1], H, Dh).transpose(0, 2, 1, 3)
        qh, kh, vh = split(q), split(k), split(v)
        s = jnp.einsum("bhqd,bhkd->bhqk", qh, kh) / math.sqrt(Dh)
        a = jax.nn.softmax(s, axis=-1)
        o = jnp.einsum("bhqk,bhkd->bhqd", a, vh)
        o = o.transpose(0, 2, 1, 3).reshape(xq.shape[0], xq.shape[1], E)
        return o @ p["wo"] + p["bo"]

    def ln(h, g, b, eps=1e-5):
        mu = h.mean(-1, keepdims=True)
        var = ((h - mu) ** 2).mean(-1, keepdims=True)
        return (h - mu) * jax.lax.rsqrt(var + eps) * g + b

    def ffn(h, lp):
        return jnp.maximum(h @ lp["w1"] + lp["b1"], 0.0) @ lp["w2"] + lp["b2"]

    mem = x @ params["in_proj_w"] + params["in_proj_b"] + pe[:S][None]
    for lp in params["encoder"]:
        mem = ln(mem + mha(mem, mem, lp["self_attn"]), lp["norm1_g"], lp["norm1_b"])
        mem = ln(mem + ffn(mem, lp), lp["norm2_g"], lp["norm2_b"])
    tgt = jnp.tile((params["query_embed"] + pe[:T])[None], (B, 1, 1))
    for lp in params["decoder"]:
        tgt = ln(tgt + mha(tgt, tgt, lp["self_attn"]), lp["norm1_g"], lp["norm1_b"])
        tgt = ln(tgt + mha(tgt, mem, lp["cross_attn"]), lp["norm2_g"], lp["norm2_b"])
        tgt = ln(tgt + ffn(tgt, lp), lp["norm3_g"], lp["norm3_b"])
    return tgt @ params["head_w"] + params["head_b"]


# --------------------------------------------------------------------------
# Deterministic parameter initialization (shapes from the module's __init__)
# --------------------------------------------------------------------------

def _linear_init(key, fan_in, fan_out):
    kw, kb = jax.random.split(key)
    bound = 1.0 / math.sqrt(fan_in)
    w = jax.random.uniform(kw, (fan_in, fan_out), jnp.float32, -bound, bound)
    b = jax.random.uniform(kb, (fan_out,), jnp.float32, -bound, bound)
    return w, b


def _mha_init(key, E):
    keys = jax.random.split(key, 4)
    wq, bq = _linear_init(keys[0], E, E)
    wk, bk = _linear_init(keys[1], E, E)
    wv, bv = _linear_init(keys[2], E, E)
    wo, bo = _linear_init(keys[3], E, E)
    return dict(wq=wq, bq=bq, wk=wk, bk=bk, wv=wv, bv=bv, wo=wo, bo=bo)


def _enc_layer_init(key, E, FF):
    k = jax.random.split(key, 3)
    w1, b1 = _linear_init(k[1], E, FF)
    w2, b2 = _linear_init(k[2], FF, E)
    ones, zeros = jnp.ones((E,), jnp.float32), jnp.zeros((E,), jnp.float32)
    return dict(self_attn=_mha_init(k[0], E), w1=w1, b1=b1, w2=w2, b2=b2,
                norm1_g=ones, norm1_b=zeros, norm2_g=ones, norm2_b=zeros)


def _dec_layer_init(key, E, FF):
    k = jax.random.split(key, 4)
    w1, b1 = _linear_init(k[2], E, FF)
    w2, b2 = _linear_init(k[3], FF, E)
    ones, zeros = jnp.ones((E,), jnp.float32), jnp.zeros((E,), jnp.float32)
    return dict(self_attn=_mha_init(k[0], E), cross_attn=_mha_init(k[1], E),
                w1=w1, b1=b1, w2=w2, b2=b2,
                norm1_g=ones, norm1_b=zeros, norm2_g=ones, norm2_b=zeros,
                norm3_g=ones, norm3_b=zeros)


def init_params(key, *, input_size, d_model, num_layers, dim_ff,
                n_forecasts, max_len=64):
    keys = jax.random.split(key, 2 + 2 * num_layers)
    in_w, in_b = _linear_init(keys[0], input_size, d_model)
    head_w, head_b = _linear_init(keys[1], d_model, 1)
    enc = [_enc_layer_init(keys[2 + i], d_model, dim_ff) for i in range(num_layers)]
    dec = [_dec_layer_init(keys[2 + num_layers + i], d_model, dim_ff)
           for i in range(num_layers)]
    return dict(
        in_proj_w=in_w, in_proj_b=in_b,
        head_w=head_w, head_b=head_b,
        encoder=enc, decoder=dec,
        query_embed=jnp.zeros((n_forecasts, d_model), jnp.float32),  # nn.Parameter(zeros)
        pe=positional_encoding_table(max_len, d_model),
    )


# --------------------------------------------------------------------------
# Main
# --------------------------------------------------------------------------

if __name__ == "__main__":
    B, S, INPUT_SIZE = 2, 8, 4
    D_MODEL, NHEAD, NUM_LAYERS, DIM_FF, N_FORECASTS = 32, 4, 2, 64, 4

    key = jax.random.PRNGKey(0)
    k_param, k_x = jax.random.split(key)
    params = init_params(k_param, input_size=INPUT_SIZE, d_model=D_MODEL,
                         num_layers=NUM_LAYERS, dim_ff=DIM_FF,
                         n_forecasts=N_FORECASTS)
    x = jax.random.normal(k_x, (B, S, INPUT_SIZE), jnp.float32)

    # One-time packing of every weight / constant into a single VMEM slab.
    pslab, meta = prepare_params(params, batch_size=B, seq_len=S,
                                 nhead=NHEAD, n_forecasts=N_FORECASTS)

    fwd = jax.jit(functools.partial(forward, meta=meta))
    out = jax.block_until_ready(fwd(x, pslab))

    assert out.shape == (B, N_FORECASTS, 1), out.shape
    assert bool(jnp.all(jnp.isfinite(out)))

    # Self-check the fused kernel against a plain-JAX reference forward.
    ref = reference_forward(x, params, nhead=NHEAD, n_forecasts=N_FORECASTS)
    max_err = float(jnp.max(jnp.abs(out - ref)))
    assert jnp.allclose(out, ref, atol=2e-3, rtol=2e-3), max_err

    print("KERNEL_OK")
</pallas_src>

<mosaic_0001>
module attributes {stable_mosaic.version = 11 : i64} {
  func.func @_fused_forward_kernel(%arg0: memref<16x4xf32, #tpu.memory_space<vmem>>, %arg1: memref<1744x128xf32, #tpu.memory_space<vmem>>, %arg2: memref<8x1xf32, #tpu.memory_space<vmem>>) attributes {dimension_semantics = [], scalar_prefetch = 0 : i64, scratch_operands = 0 : i64, tpu.core_type = #tpu.core_type<tc>} {
    %c32 = arith.constant 32 : index
    %c0 = arith.constant 0 : index
    %0 = vector.load %arg1[%c32, %c0] : memref<1744x128xf32, #tpu.memory_space<vmem>>, vector<16x64xf32>
    %c48 = arith.constant 48 : index
    %c0_0 = arith.constant 0 : index
    %1 = vector.load %arg1[%c48, %c0_0] : memref<1744x128xf32, #tpu.memory_space<vmem>>, vector<8x32xf32>
    %c56 = arith.constant 56 : index
    %c0_1 = arith.constant 0 : index
    %2 = vector.load %arg1[%c56, %c0_1] : memref<1744x128xf32, #tpu.memory_space<vmem>>, vector<8x64xf32>
    %c64 = arith.constant 64 : index
    %c0_2 = arith.constant 0 : index
    %3 = vector.load %arg1[%c64, %c0_2] : memref<1744x128xf32, #tpu.memory_space<vmem>>, vector<64x64xf32>
    %c128 = arith.constant 128 : index
    %c0_3 = arith.constant 0 : index
    %4 = vector.load %arg1[%c128, %c0_3] : memref<1744x128xf32, #tpu.memory_space<vmem>>, vector<32x32xf32>
    %c160 = arith.constant 160 : index
    %c0_4 = arith.constant 0 : index
    %5 = vector.load %arg1[%c160, %c0_4] : memref<1744x128xf32, #tpu.memory_space<vmem>>, vector<1x32xf32>
    %c168 = arith.constant 168 : index
    %c0_5 = arith.constant 0 : index
    %6 = vector.load %arg1[%c168, %c0_5] : memref<1744x128xf32, #tpu.memory_space<vmem>>, vector<1x1xf32>
    %7 = tpu.iota {dimensions = array<i32: 1>} : vector<1x32xi32>
    %c0_i32 = arith.constant 0 : i32
    %8 = vector.broadcast %c0_i32 : i32 to vector<1x32xi32>
    %9 = arith.cmpi sge, %7, %8 : vector<1x32xi32>
    %c8_i32 = arith.constant 8 : i32
    %10 = vector.broadcast %c8_i32 : i32 to vector<1x32xi32>
    %11 = arith.cmpi slt, %7, %10 : vector<1x32xi32>
    %12 = arith.andi %9, %11 : vector<1x32xi1>
    %cst = arith.constant 1.000000e+00 : f32
    %cst_6 = arith.constant 0.000000e+00 : f32
    %13 = vector.broadcast %cst : f32 to vector<1x32xf32>
    %14 = vector.broadcast %cst_6 : f32 to vector<1x32xf32>
    %15 = arith.select %12, %13, %14 : vector<1x32xi1>, vector<1x32xf32>
    %c8_i32_7 = arith.constant 8 : i32
    %16 = vector.broadcast %c8_i32_7 : i32 to vector<1x32xi32>
    %17 = arith.cmpi sge, %7, %16 : vector<1x32xi32>
    %c16_i32 = arith.constant 16 : i32
    %18 = vector.broadcast %c16_i32 : i32 to vector<1x32xi32>
    %19 = arith.cmpi slt, %7, %18 : vector<1x32xi32>
    %20 = arith.andi %17, %19 : vector<1x32xi1>
    %cst_8 = arith.constant 1.000000e+00 : f32
    %cst_9 = arith.constant 0.000000e+00 : f32
    %21 = vector.broadcast %cst_8 : f32 to vector<1x32xf32>
    %22 = vector.broadcast %cst_9 : f32 to vector<1x32xf32>
    %23 = arith.select %20, %21, %22 : vector<1x32xi1>, vector<1x32xf32>
    %c16_i32_10 = arith.constant 16 : i32
    %24 = vector.broadcast %c16_i32_10 : i32 to vector<1x32xi32>
    %25 = arith.cmpi sge, %7, %24 : vector<1x32xi32>
    %c24_i32 = arith.constant 24 : i32
    %26 = vector.broadcast %c24_i32 : i32 to vector<1x32xi32>
    %27 = arith.cmpi slt, %7, %26 : vector<1x32xi32>
    %28 = arith.andi %25, %27 : vector<1x32xi1>
    %cst_11 = arith.constant 1.000000e+00 : f32
    %cst_12 = arith.constant 0.000000e+00 : f32
    %29 = vector.broadcast %cst_11 : f32 to vector<1x32xf32>
    %30 = vector.broadcast %cst_12 : f32 to vector<1x32xf32>
    %31 = arith.select %28, %29, %30 : vector<1x32xi1>, vector<1x32xf32>
    %c24_i32_13 = arith.constant 24 : i32
    %32 = vector.broadcast %c24_i32_13 : i32 to vector<1x32xi32>
    %33 = arith.cmpi sge, %7, %32 : vector<1x32xi32>
    %c32_i32 = arith.constant 32 : i32
    %34 = vector.broadcast %c32_i32 : i32 to vector<1x32xi32>
    %35 = arith.cmpi slt, %7, %34 : vector<1x32xi32>
    %36 = arith.andi %33, %35 : vector<1x32xi1>
    %cst_14 = arith.constant 1.000000e+00 : f32
    %cst_15 = arith.constant 0.000000e+00 : f32
    %37 = vector.broadcast %cst_14 : f32 to vector<1x32xf32>
    %38 = vector.broadcast %cst_15 : f32 to vector<1x32xf32>
    %39 = arith.select %36, %37, %38 : vector<1x32xi1>, vector<1x32xf32>
    %c0_16 = arith.constant 0 : index
    %c0_17 = arith.constant 0 : index
    %40 = vector.load %arg0[%c0_16, %c0_17] : memref<16x4xf32, #tpu.memory_space<vmem>>, vector<16x4xf32>
    %c0_18 = arith.constant 0 : index
    %c0_19 = arith.constant 0 : index
    %41 = vector.load %arg1[%c0_18, %c0_19] : memref<1744x128xf32, #tpu.memory_space<vmem>>, vector<4x32xf32>
    %cst_20 = arith.constant dense<0.000000e+00> : vector<16x32xf32>
    %42 = tpu.matmul %40, %41, %cst_20 {dimension_numbers = #tpu.dot_dimension_numbers<[1], [0], [0], [1], [0, 0, 1, 1], [], []>} : vector<16x4xf32>, vector<4x32xf32>, vector<16x32xf32> -> vector<16x32xf32>
    %c8 = arith.constant 8 : index
    %c0_21 = arith.constant 0 : index
    %43 = vector.load %arg1[%c8, %c0_21] : memref<1744x128xf32, #tpu.memory_space<vmem>>, vector<16x32xf32>
    %44 = arith.addf %42, %43 : vector<16x32xf32>
    %c176 = arith.constant 176 : index
    %c0_22 = arith.constant 0 : index
    %45 = vector.load %arg1[%c176, %c0_22] : memref<1744x128xf32, #tpu.memory_space<vmem>>, vector<32x32xf32>
    %cst_23 = arith.constant dense<0.000000e+00> : vector<16x32xf32>
    %46 = tpu.matmul %44, %45, %cst_23 {dimension_numbers = #tpu.dot_dimension_numbers<[1], [0], [0], [1], [0, 0, 1, 1], [], []>} : vector<16x32xf32>, vector<32x32xf32>, vector<16x32xf32> -> vector<16x32xf32>
    %c208 = arith.constant 208 : index
    %c0_24 = arith.constant 0 : index
    %47 = vector.load %arg1[%c208, %c0_24] : memref<1744x128xf32, #tpu.memory_space<vmem>>, vector<1x32xf32>
    %48 = vector.broadcast %47 : vector<1x32xf32> to vector<16x32xf32>
    %49 = arith.addf %46, %48 : vector<16x32xf32>
    %c216 = arith.constant 216 : index
    %c0_25 = arith.constant 0 : index
    %50 = vector.load %arg1[%c216, %c0_25] : memref<1744x128xf32, #tpu.memory_space<vmem>>, vector<32x32xf32>
    %cst_26 = arith.constant dense<0.000000e+00> : vector<16x32xf32>
    %51 = tpu.matmul %44, %50, %cst_26 {dimension_numbers = #tpu.dot_dimension_numbers<[1], [0], [0], [1], [0, 0, 1, 1], [], []>} : vector<16x32xf32>, vector<32x32xf32>, vector<16x32xf32> -> vector<16x32xf32>
    %c248 = arith.constant 248 : index
    %c0_27 = arith.constant 0 : index
    %52 = vector.load %arg1[%c248, %c0_27] : memref<1744x128xf32, #tpu.memory_space<vmem>>, vector<1x32xf32>
    %53 = vector.broadcast %52 : vector<1x32xf32> to vector<16x32xf32>
    %54 = arith.addf %51, %53 : vector<16x32xf32>
    %c256 = arith.constant 256 : index
    %c0_28 = arith.constant 0 : index
    %55 = vector.load %arg1[%c256, %c0_28] : memref<1744x128xf32, #tpu.memory_space<vmem>>, vector<32x32xf32>
    %cst_29 = arith.constant dense<0.000000e+00> : vector<16x32xf32>
    %56 = tpu.matmul %44, %55, %cst_29 {dimension_numbers = #tpu.dot_dimension_numbers<[1], [0], [0], [1], [0, 0, 1, 1], [], []>} : vector<16x32xf32>, vector<32x32xf32>, vector<16x32xf32> -> vector<16x32xf32>
    %c288 = arith.constant 288 : index
    %c0_30 = arith.constant 0 : index
    %57 = vector.load %arg1[%c288, %c0_30] : memref<1744x128xf32, #tpu.memory_space<vmem>>, vector<1x32xf32>
    %58 = vector.broadcast %57 : vector<1x32xf32> to vector<16x32xf32>
    %59 = arith.addf %56, %58 : vector<16x32xf32>
    %60 = vector.broadcast %15 : vector<1x32xf32> to vector<16x32xf32>
    %61 = arith.mulf %54, %60 : vector<16x32xf32>
    %62 = vector.broadcast %23 : vector<1x32xf32> to vector<16x32xf32>
    %63 = arith.mulf %54, %62 : vector<16x32xf32>
    %64 = vector.broadcast %31 : vector<1x32xf32> to vector<16x32xf32>
    %65 = arith.mulf %54, %64 : vector<16x32xf32>
    %66 = vector.broadcast %39 : vector<1x32xf32> to vector<16x32xf32>
    %67 = arith.mulf %54, %66 : vector<16x32xf32>
    %68 = tpu.concatenate %61, %63, %65, %67 in 0 : vector<16x32xf32>, vector<16x32xf32>, vector<16x32xf32>, vector<16x32xf32> -> vector<64x32xf32>
    %69 = vector.broadcast %15 : vector<1x32xf32> to vector<16x32xf32>
    %70 = arith.mulf %59, %69 : vector<16x32xf32>
    %71 = vector.broadcast %23 : vector<1x32xf32> to vector<16x32xf32>
    %72 = arith.mulf %59, %71 : vector<16x32xf32>
    %73 = vector.broadcast %31 : vector<1x32xf32> to vector<16x32xf32>
    %74 = arith.mulf %59, %73 : vector<16x32xf32>
    %75 = vector.broadcast %39 : vector<1x32xf32> to vector<16x32xf32>
    %76 = arith.mulf %59, %75 : vector<16x32xf32>
    %77 = tpu.concatenate %70, %72, %74, %76 in 0 : vector<16x32xf32>, vector<16x32xf32>, vector<16x32xf32>, vector<16x32xf32> -> vector<64x32xf32>
    %cst_31 = arith.constant dense<0.000000e+00> : vector<16x64xf32>
    %78 = tpu.matmul %49, %68, %cst_31 {dimension_numbers = #tpu.dot_dimension_numbers<[1], [1], [0], [0], [0, 0, 1, 0], [], []>} : vector<16x32xf32>, vector<64x32xf32>, vector<16x64xf32> -> vector<16x64xf32>
    %79 = arith.addf %78, %0 : vector<16x64xf32>
    %cst_32 = arith.constant dense<0xFF800000> : vector<16xf32>
    %80 = vector.multi_reduction <maximumf>, %79, %cst_32 [1] : vector<16x64xf32> to vector<16xf32>
    %81 = vector.shape_cast %80 : vector<16xf32> to vector<16x1xf32>
    %82 = vector.broadcast %81 : vector<16x1xf32> to vector<16x64xf32>
    %83 = arith.subf %79, %82 : vector<16x64xf32>
    %84 = math.exp %83 : vector<16x64xf32>
    %cst_33 = arith.constant dense<0.000000e+00> : vector<16x64xf32>
    %85 = tpu.matmul %84, %3, %cst_33 {dimension_numbers = #tpu.dot_dimension_numbers<[1], [0], [0], [1], [0, 0, 1, 1], [], []>} : vector<16x64xf32>, vector<64x64xf32>, vector<16x64xf32> -> vector<16x64xf32>
    %86 = arith.divf %84, %85 : vector<16x64xf32>
    %cst_34 = arith.constant dense<0.000000e+00> : vector<16x32xf32>
    %87 = tpu.matmul %86, %77, %cst_34 {dimension_numbers = #tpu.dot_dimension_numbers<[1], [0], [0], [1], [0, 0, 1, 1], [], []>} : vector<16x64xf32>, vector<64x32xf32>, vector<16x32xf32> -> vector<16x32xf32>
    %c296 = arith.constant 296 : index
    %c0_35 = arith.constant 0 : index
    %88 = vector.load %arg1[%c296, %c0_35] : memref<1744x128xf32, #tpu.memory_space<vmem>>, vector<32x32xf32>
    %cst_36 = arith.constant dense<0.000000e+00> : vector<16x32xf32>
    %89 = tpu.matmul %87, %88, %cst_36 {dimension_numbers = #tpu.dot_dimension_numbers<[1], [0], [0], [1], [0, 0, 1, 1], [], []>} : vector<16x32xf32>, vector<32x32xf32>, vector<16x32xf32> -> vector<16x32xf32>
    %c328 = arith.constant 328 : index
    %c0_37 = arith.constant 0 : index
    %90 = vector.load %arg1[%c328, %c0_37] : memref<1744x128xf32, #tpu.memory_space<vmem>>, vector<1x32xf32>
    %91 = vector.broadcast %90 : vector<1x32xf32> to vector<16x32xf32>
    %92 = arith.addf %89, %91 : vector<16x32xf32>
    %c336 = arith.constant 336 : index
    %c0_38 = arith.constant 0 : index
    %93 = vector.load %arg1[%c336, %c0_38] : memref<1744x128xf32, #tpu.memory_space<vmem>>, vector<1x32xf32>
    %c344 = arith.constant 344 : index
    %c0_39 = arith.constant 0 : index
    %94 = vector.load %arg1[%c344, %c0_39] : memref<1744x128xf32, #tpu.memory_space<vmem>>, vector<1x32xf32>
    %95 = arith.addf %44, %92 : vector<16x32xf32>
    %96 = arith.mulf %95, %95 : vector<16x32xf32>
    %97 = tpu.concatenate %95, %96 in 0 : vector<16x32xf32>, vector<16x32xf32> -> vector<32x32xf32>
    %cst_40 = arith.constant dense<0.000000e+00> : vector<32xf32>
    %98 = vector.multi_reduction <add>, %97, %cst_40 [1] : vector<32x32xf32> to vector<32xf32>
    %99 = vector.shape_cast %98 : vector<32xf32> to vector<32x1xf32>
    %cst_41 = arith.constant 3.125000e-02 : f32
    %100 = vector.broadcast %cst_41 : f32 to vector<32x1xf32>
    %101 = arith.mulf %99, %100 : vector<32x1xf32>
    %102 = vector.extract_strided_slice %101 {offsets = [0, 0], sizes = [16, 1], strides = [1, 1]} : vector<32x1xf32> to vector<16x1xf32>
    %103 = vector.extract_strided_slice %101 {offsets = [16, 0], sizes = [16, 1], strides = [1, 1]} : vector<32x1xf32> to vector<16x1xf32>
    %104 = arith.mulf %102, %102 : vector<16x1xf32>
    %105 = arith.subf %103, %104 : vector<16x1xf32>
    %106 = vector.broadcast %102 : vector<16x1xf32> to vector<16x32xf32>
    %107 = arith.subf %95, %106 : vector<16x32xf32>
    %cst_42 = arith.constant 9.99999974E-6 : f32
    %108 = vector.broadcast %cst_42 : f32 to vector<16x1xf32>
    %109 = arith.addf %105, %108 : vector<16x1xf32>
    %110 = math.rsqrt %109 : vector<16x1xf32>
    %111 = vector.broadcast %110 : vector<16x1xf32> to vector<16x32xf32>
    %112 = arith.mulf %107, %111 : vector<16x32xf32>
    %113 = vector.broadcast %93 : vector<1x32xf32> to vector<16x32xf32>
    %114 = arith.mulf %112, %113 : vector<16x32xf32>
    %115 = vector.broadcast %94 : vector<1x32xf32> to vector<16x32xf32>
    %116 = arith.addf %114, %115 : vector<16x32xf32>
    %c352 = arith.constant 352 : index
    %c0_43 = arith.constant 0 : index
    %117 = vector.load %arg1[%c352, %c0_43] : memref<1744x128xf32, #tpu.memory_space<vmem>>, vector<32x64xf32>
    %cst_44 = arith.constant dense<0.000000e+00> : vector<16x64xf32>
    %118 = tpu.matmul %116, %117, %cst_44 {dimension_numbers = #tpu.dot_dimension_numbers<[1], [0], [0], [1], [0, 0, 1, 1], [], []>} : vector<16x32xf32>, vector<32x64xf32>, vector<16x64xf32> -> vector<16x64xf32>
    %c384 = arith.constant 384 : index
    %c0_45 = arith.constant 0 : index
    %119 = vector.load %arg1[%c384, %c0_45] : memref<1744x128xf32, #tpu.memory_space<vmem>>, vector<1x64xf32>
    %120 = vector.broadcast %119 : vector<1x64xf32> to vector<16x64xf32>
    %121 = arith.addf %118, %120 : vector<16x64xf32>
    %cst_46 = arith.constant 0.000000e+00 : f32
    %122 = vector.broadcast %cst_46 : f32 to vector<16x64xf32>
    %123 = arith.maximumf %121, %122 : vector<16x64xf32>
    %c392 = arith.constant 392 : index
    %c0_47 = arith.constant 0 : index
    %124 = vector.load %arg1[%c392, %c0_47] : memref<1744x128xf32, #tpu.memory_space<vmem>>, vector<64x32xf32>
    %cst_48 = arith.constant dense<0.000000e+00> : vector<16x32xf32>
    %125 = tpu.matmul %123, %124, %cst_48 {dimension_numbers = #tpu.dot_dimension_numbers<[1], [0], [0], [1], [0, 0, 1, 1], [], []>} : vector<16x64xf32>, vector<64x32xf32>, vector<16x32xf32> -> vector<16x32xf32>
    %c456 = arith.constant 456 : index
    %c0_49 = arith.constant 0 : index
    %126 = vector.load %arg1[%c456, %c0_49] : memref<1744x128xf32, #tpu.memory_space<vmem>>, vector<1x32xf32>
    %127 = vector.broadcast %126 : vector<1x32xf32> to vector<16x32xf32>
    %128 = arith.addf %125, %127 : vector<16x32xf32>
    %c464 = arith.constant 464 : index
    %c0_50 = arith.constant 0 : index
    %129 = vector.load %arg1[%c464, %c0_50] : memref<1744x128xf32, #tpu.memory_space<vmem>>, vector<1x32xf32>
    %c472 = arith.constant 472 : index
    %c0_51 = arith.constant 0 : index
    %130 = vector.load %arg1[%c472, %c0_51] : memref<1744x128xf32, #tpu.memory_space<vmem>>, vector<1x32xf32>
    %131 = arith.addf %116, %128 : vector<16x32xf32>
    %132 = arith.mulf %131, %131 : vector<16x32xf32>
    %133 = tpu.concatenate %131, %132 in 0 : vector<16x32xf32>, vector<16x32xf32> -> vector<32x32xf32>
    %cst_52 = arith.constant dense<0.000000e+00> : vector<32xf32>
    %134 = vector.multi_reduction <add>, %133, %cst_52 [1] : vector<32x32xf32> to vector<32xf32>
    %135 = vector.shape_cast %134 : vector<32xf32> to vector<32x1xf32>
    %cst_53 = arith.constant 3.125000e-02 : f32
    %136 = vector.broadcast %cst_53 : f32 to vector<32x1xf32>
    %137 = arith.mulf %135, %136 : vector<32x1xf32>
    %138 = vector.extract_strided_slice %137 {offsets = [0, 0], sizes = [16, 1], strides = [1, 1]} : vector<32x1xf32> to vector<16x1xf32>
    %139 = vector.extract_strided_slice %137 {offsets = [16, 0], sizes = [16, 1], strides = [1, 1]} : vector<32x1xf32> to vector<16x1xf32>
    %140 = arith.mulf %138, %138 : vector<16x1xf32>
    %141 = arith.subf %139, %140 : vector<16x1xf32>
    %142 = vector.broadcast %138 : vector<16x1xf32> to vector<16x32xf32>
    %143 = arith.subf %131, %142 : vector<16x32xf32>
    %cst_54 = arith.constant 9.99999974E-6 : f32
    %144 = vector.broadcast %cst_54 : f32 to vector<16x1xf32>
    %145 = arith.addf %141, %144 : vector<16x1xf32>
    %146 = math.rsqrt %145 : vector<16x1xf32>
    %147 = vector.broadcast %146 : vector<16x1xf32> to vector<16x32xf32>
    %148 = arith.mulf %143, %147 : vector<16x32xf32>
    %149 = vector.broadcast %129 : vector<1x32xf32> to vector<16x32xf32>
    %150 = arith.mulf %148, %149 : vector<16x32xf32>
    %151 = vector.broadcast %130 : vector<1x32xf32> to vector<16x32xf32>
    %152 = arith.addf %150, %151 : vector<16x32xf32>
    %c480 = arith.constant 480 : index
    %c0_55 = arith.constant 0 : index
    %153 = vector.load %arg1[%c480, %c0_55] : memref<1744x128xf32, #tpu.memory_space<vmem>>, vector<32x32xf32>
    %cst_56 = arith.constant dense<0.000000e+00> : vector<16x32xf32>
    %154 = tpu.matmul %152, %153, %cst_56 {dimension_numbers = #tpu.dot_dimension_numbers<[1], [0], [0], [1], [0, 0, 1, 1], [], []>} : vector<16x32xf32>, vector<32x32xf32>, vector<16x32xf32> -> vector<16x32xf32>
    %c512 = arith.constant 512 : index
    %c0_57 = arith.constant 0 : index
    %155 = vector.load %arg1[%c512, %c0_57] : memref<1744x128xf32, #tpu.memory_space<vmem>>, vector<1x32xf32>
    %156 = vector.broadcast %155 : vector<1x32xf32> to vector<16x32xf32>
    %157 = arith.addf %154, %156 : vector<16x32xf32>
    %c520 = arith.constant 520 : index
    %c0_58 = arith.constant 0 : index
    %158 = vector.load %arg1[%c520, %c0_58] : memref<1744x128xf32, #tpu.memory_space<vmem>>, vector<32x32xf32>
    %cst_59 = arith.constant dense<0.000000e+00> : vector<16x32xf32>
    %159 = tpu.matmul %152, %158, %cst_59 {dimension_numbers = #tpu.dot_dimension_numbers<[1], [0], [0], [1], [0, 0, 1, 1], [], []>} : vector<16x32xf32>, vector<32x32xf32>, vector<16x32xf32> -> vector<16x32xf32>
    %c552 = arith.constant 552 : index
    %c0_60 = arith.constant 0 : index
    %160 = vector.load %arg1[%c552, %c0_60] : memref<1744x128xf32, #tpu.memory_space<vmem>>, vector<1x32xf32>
    %161 = vector.broadcast %160 : vector<1x32xf32> to vector<16x32xf32>
    %162 = arith.addf %159, %161 : vector<16x32xf32>
    %c560 = arith.constant 560 : index
    %c0_61 = arith.constant 0 : index
    %163 = vector.load %arg1[%c560, %c0_61] : memref<1744x128xf32, #tpu.memory_space<vmem>>, vector<32x32xf32>
    %cst_62 = arith.constant dense<0.000000e+00> : vector<16x32xf32>
    %164 = tpu.matmul %152, %163, %cst_62 {dimension_numbers = #tpu.dot_dimension_numbers<[1], [0], [0], [1], [0, 0, 1, 1], [], []>} : vector<16x32xf32>, vector<32x32xf32>, vector<16x32xf32> -> vector<16x32xf32>
    %c592 = arith.constant 592 : index
    %c0_63 = arith.constant 0 : index
    %165 = vector.load %arg1[%c592, %c0_63] : memref<1744x128xf32, #tpu.memory_space<vmem>>, vector<1x32xf32>
    %166 = vector.broadcast %165 : vector<1x32xf32> to vector<16x32xf32>
    %167 = arith.addf %164, %166 : vector<16x32xf32>
    %168 = vector.broadcast %15 : vector<1x32xf32> to vector<16x32xf32>
    %169 = arith.mulf %162, %168 : vector<16x32xf32>
    %170 = vector.broadcast %23 : vector<1x32xf32> to vector<16x32xf32>
    %171 = arith.mulf %162, %170 : vector<16x32xf32>
    %172 = vector.broadcast %31 : vector<1x32xf32> to vector<16x32xf32>
    %173 = arith.mulf %162, %172 : vector<16x32xf32>
    %174 = vector.broadcast %39 : vector<1x32xf32> to vector<16x32xf32>
    %175 = arith.mulf %162, %174 : vector<16x32xf32>
    %176 = tpu.concatenate %169, %171, %173, %175 in 0 : vector<16x32xf32>, vector<16x32xf32>, vector<16x32xf32>, vector<16x32xf32> -> vector<64x32xf32>
    %177 = vector.broadcast %15 : vector<1x32xf32> to vector<16x32xf32>
    %178 = arith.mulf %167, %177 : vector<16x32xf32>
    %179 = vector.broadcast %23 : vector<1x32xf32> to vector<16x32xf32>
    %180 = arith.mulf %167, %179 : vector<16x32xf32>
    %181 = vector.broadcast %31 : vector<1x32xf32> to vector<16x32xf32>
    %182 = arith.mulf %167, %181 : vector<16x32xf32>
    %183 = vector.broadcast %39 : vector<1x32xf32> to vector<16x32xf32>
    %184 = arith.mulf %167, %183 : vector<16x32xf32>
    %185 = tpu.concatenate %178, %180, %182, %184 in 0 : vector<16x32xf32>, vector<16x32xf32>, vector<16x32xf32>, vector<16x32xf32> -> vector<64x32xf32>
    %cst_64 = arith.constant dense<0.000000e+00> : vector<16x64xf32>
    %186 = tpu.matmul %157, %176, %cst_64 {dimension_numbers = #tpu.dot_dimension_numbers<[1], [1], [0], [0], [0, 0, 1, 0], [], []>} : vector<16x32xf32>, vector<64x32xf32>, vector<16x64xf32> -> vector<16x64xf32>
    %187 = arith.addf %186, %0 : vector<16x64xf32>
    %cst_65 = arith.constant dense<0xFF800000> : vector<16xf32>
    %188 = vector.multi_reduction <maximumf>, %187, %cst_65 [1] : vector<16x64xf32> to vector<16xf32>
    %189 = vector.shape_cast %188 : vector<16xf32> to vector<16x1xf32>
    %190 = vector.broadcast %189 : vector<16x1xf32> to vector<16x64xf32>
    %191 = arith.subf %187, %190 : vector<16x64xf32>
    %192 = math.exp %191 : vector<16x64xf32>
    %cst_66 = arith.constant dense<0.000000e+00> : vector<16x64xf32>
    %193 = tpu.matmul %192, %3, %cst_66 {dimension_numbers = #tpu.dot_dimension_numbers<[1], [0], [0], [1], [0, 0, 1, 1], [], []>} : vector<16x64xf32>, vector<64x64xf32>, vector<16x64xf32> -> vector<16x64xf32>
    %194 = arith.divf %192, %193 : vector<16x64xf32>
    %cst_67 = arith.constant dense<0.000000e+00> : vector<16x32xf32>
    %195 = tpu.matmul %194, %185, %cst_67 {dimension_numbers = #tpu.dot_dimension_numbers<[1], [0], [0], [1], [0, 0, 1, 1], [], []>} : vector<16x64xf32>, vector<64x32xf32>, vector<16x32xf32> -> vector<16x32xf32>
    %c600 = arith.constant 600 : index
    %c0_68 = arith.constant 0 : index
    %196 = vector.load %arg1[%c600, %c0_68] : memref<1744x128xf32, #tpu.memory_space<vmem>>, vector<32x32xf32>
    %cst_69 = arith.constant dense<0.000000e+00> : vector<16x32xf32>
    %197 = tpu.matmul %195, %196, %cst_69 {dimension_numbers = #tpu.dot_dimension_numbers<[1], [0], [0], [1], [0, 0, 1, 1], [], []>} : vector<16x32xf32>, vector<32x32xf32>, vector<16x32xf32> -> vector<16x32xf32>
    %c632 = arith.constant 632 : index
    %c0_70 = arith.constant 0 : index
    %198 = vector.load %arg1[%c632, %c0_70] : memref<1744x128xf32, #tpu.memory_space<vmem>>, vector<1x32xf32>
    %199 = vector.broadcast %198 : vector<1x32xf32> to vector<16x32xf32>
    %200 = arith.addf %197, %199 : vector<16x32xf32>
    %c640 = arith.constant 640 : index
    %c0_71 = arith.constant 0 : index
    %201 = vector.load %arg1[%c640, %c0_71] : memref<1744x128xf32, #tpu.memory_space<vmem>>, vector<1x32xf32>
    %c648 = arith.constant 648 : index
    %c0_72 = arith.constant 0 : index
    %202 = vector.load %arg1[%c648, %c0_72] : memref<1744x128xf32, #tpu.memory_space<vmem>>, vector<1x32xf32>
    %203 = arith.addf %152, %200 : vector<16x32xf32>
    %204 = arith.mulf %203, %203 : vector<16x32xf32>
    %205 = tpu.concatenate %203, %204 in 0 : vector<16x32xf32>, vector<16x32xf32> -> vector<32x32xf32>
    %cst_73 = arith.constant dense<0.000000e+00> : vector<32xf32>
    %206 = vector.multi_reduction <add>, %205, %cst_73 [1] : vector<32x32xf32> to vector<32xf32>
    %207 = vector.shape_cast %206 : vector<32xf32> to vector<32x1xf32>
    %cst_74 = arith.constant 3.125000e-02 : f32
    %208 = vector.broadcast %cst_74 : f32 to vector<32x1xf32>
    %209 = arith.mulf %207, %208 : vector<32x1xf32>
    %210 = vector.extract_strided_slice %209 {offsets = [0, 0], sizes = [16, 1], strides = [1, 1]} : vector<32x1xf32> to vector<16x1xf32>
    %211 = vector.extract_strided_slice %209 {offsets = [16, 0], sizes = [16, 1], strides = [1, 1]} : vector<32x1xf32> to vector<16x1xf32>
    %212 = arith.mulf %210, %210 : vector<16x1xf32>
    %213 = arith.subf %211, %212 : vector<16x1xf32>
    %214 = vector.broadcast %210 : vector<16x1xf32> to vector<16x32xf32>
    %215 = arith.subf %203, %214 : vector<16x32xf32>
    %cst_75 = arith.constant 9.99999974E-6 : f32
    %216 = vector.broadcast %cst_75 : f32 to vector<16x1xf32>
    %217 = arith.addf %213, %216 : vector<16x1xf32>
    %218 = math.rsqrt %217 : vector<16x1xf32>
    %219 = vector.broadcast %218 : vector<16x1xf32> to vector<16x32xf32>
    %220 = arith.mulf %215, %219 : vector<16x32xf32>
    %221 = vector.broadcast %201 : vector<1x32xf32> to vector<16x32xf32>
    %222 = arith.mulf %220, %221 : vector<16x32xf32>
    %223 = vector.broadcast %202 : vector<1x32xf32> to vector<16x32xf32>
    %224 = arith.addf %222, %223 : vector<16x32xf32>
    %c656 = arith.constant 656 : index
    %c0_76 = arith.constant 0 : index
    %225 = vector.load %arg1[%c656, %c0_76] : memref<1744x128xf32, #tpu.memory_space<vmem>>, vector<32x64xf32>
    %cst_77 = arith.constant dense<0.000000e+00> : vector<16x64xf32>
    %226 = tpu.matmul %224, %225, %cst_77 {dimension_numbers = #tpu.dot_dimension_numbers<[1], [0], [0], [1], [0, 0, 1, 1], [], []>} : vector<16x32xf32>, vector<32x64xf32>, vector<16x64xf32> -> vector<16x64xf32>
    %c688 = arith.constant 688 : index
    %c0_78 = arith.constant 0 : index
    %227 = vector.load %arg1[%c688, %c0_78] : memref<1744x128xf32, #tpu.memory_space<vmem>>, vector<1x64xf32>
    %228 = vector.broadcast %227 : vector<1x64xf32> to vector<16x64xf32>
    %229 = arith.addf %226, %228 : vector<16x64xf32>
    %cst_79 = arith.constant 0.000000e+00 : f32
    %230 = vector.broadcast %cst_79 : f32 to vector<16x64xf32>
    %231 = arith.maximumf %229, %230 : vector<16x64xf32>
    %c696 = arith.constant 696 : index
    %c0_80 = arith.constant 0 : index
    %232 = vector.load %arg1[%c696, %c0_80] : memref<1744x128xf32, #tpu.memory_space<vmem>>, vector<64x32xf32>
    %cst_81 = arith.constant dense<0.000000e+00> : vector<16x32xf32>
    %233 = tpu.matmul %231, %232, %cst_81 {dimension_numbers = #tpu.dot_dimension_numbers<[1], [0], [0], [1], [0, 0, 1, 1], [], []>} : vector<16x64xf32>, vector<64x32xf32>, vector<16x32xf32> -> vector<16x32xf32>
    %c760 = arith.constant 760 : index
    %c0_82 = arith.constant 0 : index
    %234 = vector.load %arg1[%c760, %c0_82] : memref<1744x128xf32, #tpu.memory_space<vmem>>, vector<1x32xf32>
    %235 = vector.broadcast %234 : vector<1x32xf32> to vector<16x32xf32>
    %236 = arith.addf %233, %235 : vector<16x32xf32>
    %c768 = arith.constant 768 : index
    %c0_83 = arith.constant 0 : index
    %237 = vector.load %arg1[%c768, %c0_83] : memref<1744x128xf32, #tpu.memory_space<vmem>>, vector<1x32xf32>
    %c776 = arith.constant 776 : index
    %c0_84 = arith.constant 0 : index
    %238 = vector.load %arg1[%c776, %c0_84] : memref<1744x128xf32, #tpu.memory_space<vmem>>, vector<1x32xf32>
    %239 = arith.addf %224, %236 : vector<16x32xf32>
    %240 = arith.mulf %239, %239 : vector<16x32xf32>
    %241 = tpu.concatenate %239, %240 in 0 : vector<16x32xf32>, vector<16x32xf32> -> vector<32x32xf32>
    %cst_85 = arith.constant dense<0.000000e+00> : vector<32xf32>
    %242 = vector.multi_reduction <add>, %241, %cst_85 [1] : vector<32x32xf32> to vector<32xf32>
    %243 = vector.shape_cast %242 : vector<32xf32> to vector<32x1xf32>
    %cst_86 = arith.constant 3.125000e-02 : f32
    %244 = vector.broadcast %cst_86 : f32 to vector<32x1xf32>
    %245 = arith.mulf %243, %244 : vector<32x1xf32>
    %246 = vector.extract_strided_slice %245 {offsets = [0, 0], sizes = [16, 1], strides = [1, 1]} : vector<32x1xf32> to vector<16x1xf32>
    %247 = vector.extract_strided_slice %245 {offsets = [16, 0], sizes = [16, 1], strides = [1, 1]} : vector<32x1xf32> to vector<16x1xf32>
    %248 = arith.mulf %246, %246 : vector<16x1xf32>
    %249 = arith.subf %247, %248 : vector<16x1xf32>
    %250 = vector.broadcast %246 : vector<16x1xf32> to vector<16x32xf32>
    %251 = arith.subf %239, %250 : vector<16x32xf32>
    %cst_87 = arith.constant 9.99999974E-6 : f32
    %252 = vector.broadcast %cst_87 : f32 to vector<16x1xf32>
    %253 = arith.addf %249, %252 : vector<16x1xf32>
    %254 = math.rsqrt %253 : vector<16x1xf32>
    %255 = vector.broadcast %254 : vector<16x1xf32> to vector<16x32xf32>
    %256 = arith.mulf %251, %255 : vector<16x32xf32>
    %257 = vector.broadcast %237 : vector<1x32xf32> to vector<16x32xf32>
    %258 = arith.mulf %256, %257 : vector<16x32xf32>
    %259 = vector.broadcast %238 : vector<1x32xf32> to vector<16x32xf32>
    %260 = arith.addf %258, %259 : vector<16x32xf32>
    %c24 = arith.constant 24 : index
    %c0_88 = arith.constant 0 : index
    %261 = vector.load %arg1[%c24, %c0_88] : memref<1744x128xf32, #tpu.memory_space<vmem>>, vector<8x32xf32>
    %c784 = arith.constant 784 : index
    %c0_89 = arith.constant 0 : index
    %262 = vector.load %arg1[%c784, %c0_89] : memref<1744x128xf32, #tpu.memory_space<vmem>>, vector<32x32xf32>
    %cst_90 = arith.constant dense<0.000000e+00> : vector<8x32xf32>
    %263 = tpu.matmul %261, %262, %cst_90 {dimension_numbers = #tpu.dot_dimension_numbers<[1], [0], [0], [1], [0, 0, 1, 1], [], []>} : vector<8x32xf32>, vector<32x32xf32>, vector<8x32xf32> -> vector<8x32xf32>
    %c816 = arith.constant 816 : index
    %c0_91 = arith.constant 0 : index
    %264 = vector.load %arg1[%c816, %c0_91] : memref<1744x128xf32, #tpu.memory_space<vmem>>, vector<1x32xf32>
    %265 = vector.broadcast %264 : vector<1x32xf32> to vector<8x32xf32>
    %266 = arith.addf %263, %265 : vector<8x32xf32>
    %c824 = arith.constant 824 : index
    %c0_92 = arith.constant 0 : index
    %267 = vector.load %arg1[%c824, %c0_92] : memref<1744x128xf32, #tpu.memory_space<vmem>>, vector<32x32xf32>
    %cst_93 = arith.constant dense<0.000000e+00> : vector<8x32xf32>
    %268 = tpu.matmul %261, %267, %cst_93 {dimension_numbers = #tpu.dot_dimension_numbers<[1], [0], [0], [1], [0, 0, 1, 1], [], []>} : vector<8x32xf32>, vector<32x32xf32>, vector<8x32xf32> -> vector<8x32xf32>
    %c856 = arith.constant 856 : index
    %c0_94 = arith.constant 0 : index
    %269 = vector.load %arg1[%c856, %c0_94] : memref<1744x128xf32, #tpu.memory_space<vmem>>, vector<1x32xf32>
    %270 = vector.broadcast %269 : vector<1x32xf32> to vector<8x32xf32>
    %271 = arith.addf %268, %270 : vector<8x32xf32>
    %c864 = arith.constant 864 : index
    %c0_95 = arith.constant 0 : index
    %272 = vector.load %arg1[%c864, %c0_95] : memref<1744x128xf32, #tpu.memory_space<vmem>>, vector<32x32xf32>
    %cst_96 = arith.constant dense<0.000000e+00> : vector<8x32xf32>
    %273 = tpu.matmul %261, %272, %cst_96 {dimension_numbers = #tpu.dot_dimension_numbers<[1], [0], [0], [1], [0, 0, 1, 1], [], []>} : vector<8x32xf32>, vector<32x32xf32>, vector<8x32xf32> -> vector<8x32xf32>
    %c896 = arith.constant 896 : index
    %c0_97 = arith.constant 0 : index
    %274 = vector.load %arg1[%c896, %c0_97] : memref<1744x128xf32, #tpu.memory_space<vmem>>, vector<1x32xf32>
    %275 = vector.broadcast %274 : vector<1x32xf32> to vector<8x32xf32>
    %276 = arith.addf %273, %275 : vector<8x32xf32>
    %277 = vector.broadcast %15 : vector<1x32xf32> to vector<8x32xf32>
    %278 = arith.mulf %271, %277 : vector<8x32xf32>
    %279 = vector.broadcast %23 : vector<1x32xf32> to vector<8x32xf32>
    %280 = arith.mulf %271, %279 : vector<8x32xf32>
    %281 = vector.broadcast %31 : vector<1x32xf32> to vector<8x32xf32>
    %282 = arith.mulf %271, %281 : vector<8x32xf32>
    %283 = vector.broadcast %39 : vector<1x32xf32> to vector<8x32xf32>
    %284 = arith.mulf %271, %283 : vector<8x32xf32>
    %285 = tpu.concatenate %278, %280, %282, %284 in 0 : vector<8x32xf32>, vector<8x32xf32>, vector<8x32xf32>, vector<8x32xf32> -> vector<32x32xf32>
    %286 = vector.broadcast %15 : vector<1x32xf32> to vector<8x32xf32>
    %287 = arith.mulf %276, %286 : vector<8x32xf32>
    %288 = vector.broadcast %23 : vector<1x32xf32> to vector<8x32xf32>
    %289 = arith.mulf %276, %288 : vector<8x32xf32>
    %290 = vector.broadcast %31 : vector<1x32xf32> to vector<8x32xf32>
    %291 = arith.mulf %276, %290 : vector<8x32xf32>
    %292 = vector.broadcast %39 : vector<1x32xf32> to vector<8x32xf32>
    %293 = arith.mulf %276, %292 : vector<8x32xf32>
    %294 = tpu.concatenate %287, %289, %291, %293 in 0 : vector<8x32xf32>, vector<8x32xf32>, vector<8x32xf32>, vector<8x32xf32> -> vector<32x32xf32>
    %cst_98 = arith.constant dense<0.000000e+00> : vector<8x32xf32>
    %295 = tpu.matmul %266, %285, %cst_98 {dimension_numbers = #tpu.dot_dimension_numbers<[1], [1], [0], [0], [0, 0, 1, 0], [], []>} : vector<8x32xf32>, vector<32x32xf32>, vector<8x32xf32> -> vector<8x32xf32>
    %296 = arith.addf %295, %1 : vector<8x32xf32>
    %cst_99 = arith.constant dense<0xFF800000> : vector<8xf32>
    %297 = vector.multi_reduction <maximumf>, %296, %cst_99 [1] : vector<8x32xf32> to vector<8xf32>
    %298 = vector.shape_cast %297 : vector<8xf32> to vector<8x1xf32>
    %299 = vector.broadcast %298 : vector<8x1xf32> to vector<8x32xf32>
    %300 = arith.subf %296, %299 : vector<8x32xf32>
    %301 = math.exp %300 : vector<8x32xf32>
    %cst_100 = arith.constant dense<0.000000e+00> : vector<8x32xf32>
    %302 = tpu.matmul %301, %4, %cst_100 {dimension_numbers = #tpu.dot_dimension_numbers<[1], [0], [0], [1], [0, 0, 1, 1], [], []>} : vector<8x32xf32>, vector<32x32xf32>, vector<8x32xf32> -> vector<8x32xf32>
    %303 = arith.divf %301, %302 : vector<8x32xf32>
    %cst_101 = arith.constant dense<0.000000e+00> : vector<8x32xf32>
    %304 = tpu.matmul %303, %294, %cst_101 {dimension_numbers = #tpu.dot_dimension_numbers<[1], [0], [0], [1], [0, 0, 1, 1], [], []>} : vector<8x32xf32>, vector<32x32xf32>, vector<8x32xf32> -> vector<8x32xf32>
    %c904 = arith.constant 904 : index
    %c0_102 = arith.constant 0 : index
    %305 = vector.load %arg1[%c904, %c0_102] : memref<1744x128xf32, #tpu.memory_space<vmem>>, vector<32x32xf32>
    %cst_103 = arith.constant dense<0.000000e+00> : vector<8x32xf32>
    %306 = tpu.matmul %304, %305, %cst_103 {dimension_numbers = #tpu.dot_dimension_numbers<[1], [0], [0], [1], [0, 0, 1, 1], [], []>} : vector<8x32xf32>, vector<32x32xf32>, vector<8x32xf32> -> vector<8x32xf32>
    %c936 = arith.constant 936 : index
    %c0_104 = arith.constant 0 : index
    %307 = vector.load %arg1[%c936, %c0_104] : memref<1744x128xf32, #tpu.memory_space<vmem>>, vector<1x32xf32>
    %308 = vector.broadcast %307 : vector<1x32xf32> to vector<8x32xf32>
    %309 = arith.addf %306, %308 : vector<8x32xf32>
    %c944 = arith.constant 944 : index
    %c0_105 = arith.constant 0 : index
    %310 = vector.load %arg1[%c944, %c0_105] : memref<1744x128xf32, #tpu.memory_space<vmem>>, vector<1x32xf32>
    %c952 = arith.constant 952 : index
    %c0_106 = arith.constant 0 : index
    %311 = vector.load %arg1[%c952, %c0_106] : memref<1744x128xf32, #tpu.memory_space<vmem>>, vector<1x32xf32>
    %312 = arith.addf %261, %309 : vector<8x32xf32>
    %313 = arith.mulf %312, %312 : vector<8x32xf32>
    %314 = tpu.concatenate %312, %313 in 0 : vector<8x32xf32>, vector<8x32xf32> -> vector<16x32xf32>
    %cst_107 = arith.constant dense<0.000000e+00> : vector<16xf32>
    %315 = vector.multi_reduction <add>, %314, %cst_107 [1] : vector<16x32xf32> to vector<16xf32>
    %316 = vector.shape_cast %315 : vector<16xf32> to vector<16x1xf32>
    %cst_108 = arith.constant 3.125000e-02 : f32
    %317 = vector.broadcast %cst_108 : f32 to vector<16x1xf32>
    %318 = arith.mulf %316, %317 : vector<16x1xf32>
    %319 = vector.extract_strided_slice %318 {offsets = [0, 0], sizes = [8, 1], strides = [1, 1]} : vector<16x1xf32> to vector<8x1xf32>
    %320 = vector.extract_strided_slice %318 {offsets = [8, 0], sizes = [8, 1], strides = [1, 1]} : vector<16x1xf32> to vector<8x1xf32>
    %321 = arith.mulf %319, %319 : vector<8x1xf32>
    %322 = arith.subf %320, %321 : vector<8x1xf32>
    %323 = vector.broadcast %319 : vector<8x1xf32> to vector<8x32xf32>
    %324 = arith.subf %312, %323 : vector<8x32xf32>
    %cst_109 = arith.constant 9.99999974E-6 : f32
    %325 = vector.broadcast %cst_109 : f32 to vector<8x1xf32>
    %326 = arith.addf %322, %325 : vector<8x1xf32>
    %327 = math.rsqrt %326 : vector<8x1xf32>
    %328 = vector.broadcast %327 : vector<8x1xf32> to vector<8x32xf32>
    %329 = arith.mulf %324, %328 : vector<8x32xf32>
    %330 = vector.broadcast %310 : vector<1x32xf32> to vector<8x32xf32>
    %331 = arith.mulf %329, %330 : vector<8x32xf32>
    %332 = vector.broadcast %311 : vector<1x32xf32> to vector<8x32xf32>
    %333 = arith.addf %331, %332 : vector<8x32xf32>
    %c960 = arith.constant 960 : index
    %c0_110 = arith.constant 0 : index
    %334 = vector.load %arg1[%c960, %c0_110] : memref<1744x128xf32, #tpu.memory_space<vmem>>, vector<32x32xf32>
    %cst_111 = arith.constant dense<0.000000e+00> : vector<8x32xf32>
    %335 = tpu.matmul %333, %334, %cst_111 {dimension_numbers = #tpu.dot_dimension_numbers<[1], [0], [0], [1], [0, 0, 1, 1], [], []>} : vector<8x32xf32>, vector<32x32xf32>, vector<8x32xf32> -> vector<8x32xf32>
    %c992 = arith.constant 992 : index
    %c0_112 = arith.constant 0 : index
    %336 = vector.load %arg1[%c992, %c0_112] : memref<1744x128xf32, #tpu.memory_space<vmem>>, vector<1x32xf32>
    %337 = vector.broadcast %336 : vector<1x32xf32> to vector<8x32xf32>
    %338 = arith.addf %335, %337 : vector<8x32xf32>
    %c1000 = arith.constant 1000 : index
    %c0_113 = arith.constant 0 : index
    %339 = vector.load %arg1[%c1000, %c0_113] : memref<1744x128xf32, #tpu.memory_space<vmem>>, vector<32x32xf32>
    %cst_114 = arith.constant dense<0.000000e+00> : vector<16x32xf32>
    %340 = tpu.matmul %260, %339, %cst_114 {dimension_numbers = #tpu.dot_dimension_numbers<[1], [0], [0], [1], [0, 0, 1, 1], [], []>} : vector<16x32xf32>, vector<32x32xf32>, vector<16x32xf32> -> vector<16x32xf32>
    %c1032 = arith.constant 1032 : index
    %c0_115 = arith.constant 0 : index
    %341 = vector.load %arg1[%c1032, %c0_115] : memref<1744x128xf32, #tpu.memory_space<vmem>>, vector<1x32xf32>
    %342 = vector.broadcast %341 : vector<1x32xf32> to vector<16x32xf32>
    %343 = arith.addf %340, %342 : vector<16x32xf32>
    %c1040 = arith.constant 1040 : index
    %c0_116 = arith.constant 0 : index
    %344 = vector.load %arg1[%c1040, %c0_116] : memref<1744x128xf32, #tpu.memory_space<vmem>>, vector<32x32xf32>
    %cst_117 = arith.constant dense<0.000000e+00> : vector<16x32xf32>
    %345 = tpu.matmul %260, %344, %cst_117 {dimension_numbers = #tpu.dot_dimension_numbers<[1], [0], [0], [1], [0, 0, 1, 1], [], []>} : vector<16x32xf32>, vector<32x32xf32>, vector<16x32xf32> -> vector<16x32xf32>
    %c1072 = arith.constant 1072 : index
    %c0_118 = arith.constant 0 : index
    %346 = vector.load %arg1[%c1072, %c0_118] : memref<1744x128xf32, #tpu.memory_space<vmem>>, vector<1x32xf32>
    %347 = vector.broadcast %346 : vector<1x32xf32> to vector<16x32xf32>
    %348 = arith.addf %345, %347 : vector<16x32xf32>
    %349 = vector.broadcast %15 : vector<1x32xf32> to vector<16x32xf32>
    %350 = arith.mulf %343, %349 : vector<16x32xf32>
    %351 = vector.broadcast %23 : vector<1x32xf32> to vector<16x32xf32>
    %352 = arith.mulf %343, %351 : vector<16x32xf32>
    %353 = vector.broadcast %31 : vector<1x32xf32> to vector<16x32xf32>
    %354 = arith.mulf %343, %353 : vector<16x32xf32>
    %355 = vector.broadcast %39 : vector<1x32xf32> to vector<16x32xf32>
    %356 = arith.mulf %343, %355 : vector<16x32xf32>
    %357 = tpu.concatenate %350, %352, %354, %356 in 0 : vector<16x32xf32>, vector<16x32xf32>, vector<16x32xf32>, vector<16x32xf32> -> vector<64x32xf32>
    %358 = vector.broadcast %15 : vector<1x32xf32> to vector<16x32xf32>
    %359 = arith.mulf %348, %358 : vector<16x32xf32>
    %360 = vector.broadcast %23 : vector<1x32xf32> to vector<16x32xf32>
    %361 = arith.mulf %348, %360 : vector<16x32xf32>
    %362 = vector.broadcast %31 : vector<1x32xf32> to vector<16x32xf32>
    %363 = arith.mulf %348, %362 : vector<16x32xf32>
    %364 = vector.broadcast %39 : vector<1x32xf32> to vector<16x32xf32>
    %365 = arith.mulf %348, %364 : vector<16x32xf32>
    %366 = tpu.concatenate %359, %361, %363, %365 in 0 : vector<16x32xf32>, vector<16x32xf32>, vector<16x32xf32>, vector<16x32xf32> -> vector<64x32xf32>
    %cst_119 = arith.constant dense<0.000000e+00> : vector<8x64xf32>
    %367 = tpu.matmul %338, %357, %cst_119 {dimension_numbers = #tpu.dot_dimension_numbers<[1], [1], [0], [0], [0, 0, 1, 0], [], []>} : vector<8x32xf32>, vector<64x32xf32>, vector<8x64xf32> -> vector<8x64xf32>
    %368 = arith.addf %367, %2 : vector<8x64xf32>
    %cst_120 = arith.constant dense<0xFF800000> : vector<8xf32>
    %369 = vector.multi_reduction <maximumf>, %368, %cst_120 [1] : vector<8x64xf32> to vector<8xf32>
    %370 = vector.shape_cast %369 : vector<8xf32> to vector<8x1xf32>
    %371 = vector.broadcast %370 : vector<8x1xf32> to vector<8x64xf32>
    %372 = arith.subf %368, %371 : vector<8x64xf32>
    %373 = math.exp %372 : vector<8x64xf32>
    %cst_121 = arith.constant dense<0.000000e+00> : vector<8x64xf32>
    %374 = tpu.matmul %373, %3, %cst_121 {dimension_numbers = #tpu.dot_dimension_numbers<[1], [0], [0], [1], [0, 0, 1, 1], [], []>} : vector<8x64xf32>, vector<64x64xf32>, vector<8x64xf32> -> vector<8x64xf32>
    %375 = arith.divf %373, %374 : vector<8x64xf32>
    %cst_122 = arith.constant dense<0.000000e+00> : vector<8x32xf32>
    %376 = tpu.matmul %375, %366, %cst_122 {dimension_numbers = #tpu.dot_dimension_numbers<[1], [0], [0], [1], [0, 0, 1, 1], [], []>} : vector<8x64xf32>, vector<64x32xf32>, vector<8x32xf32> -> vector<8x32xf32>
    %c1080 = arith.constant 1080 : index
    %c0_123 = arith.constant 0 : index
    %377 = vector.load %arg1[%c1080, %c0_123] : memref<1744x128xf32, #tpu.memory_space<vmem>>, vector<32x32xf32>
    %cst_124 = arith.constant dense<0.000000e+00> : vector<8x32xf32>
    %378 = tpu.matmul %376, %377, %cst_124 {dimension_numbers = #tpu.dot_dimension_numbers<[1], [0], [0], [1], [0, 0, 1, 1], [], []>} : vector<8x32xf32>, vector<32x32xf32>, vector<8x32xf32> -> vector<8x32xf32>
    %c1112 = arith.constant 1112 : index
    %c0_125 = arith.constant 0 : index
    %379 = vector.load %arg1[%c1112, %c0_125] : memref<1744x128xf32, #tpu.memory_space<vmem>>, vector<1x32xf32>
    %380 = vector.broadcast %379 : vector<1x32xf32> to vector<8x32xf32>
    %381 = arith.addf %378, %380 : vector<8x32xf32>
    %c1120 = arith.constant 1120 : index
    %c0_126 = arith.constant 0 : index
    %382 = vector.load %arg1[%c1120, %c0_126] : memref<1744x128xf32, #tpu.memory_space<vmem>>, vector<1x32xf32>
    %c1128 = arith.constant 1128 : index
    %c0_127 = arith.constant 0 : index
    %383 = vector.load %arg1[%c1128, %c0_127] : memref<1744x128xf32, #tpu.memory_space<vmem>>, vector<1x32xf32>
    %384 = arith.addf %333, %381 : vector<8x32xf32>
    %385 = arith.mulf %384, %384 : vector<8x32xf32>
    %386 = tpu.concatenate %384, %385 in 0 : vector<8x32xf32>, vector<8x32xf32> -> vector<16x32xf32>
    %cst_128 = arith.constant dense<0.000000e+00> : vector<16xf32>
    %387 = vector.multi_reduction <add>, %386, %cst_128 [1] : vector<16x32xf32> to vector<16xf32>
    %388 = vector.shape_cast %387 : vector<16xf32> to vector<16x1xf32>
    %cst_129 = arith.constant 3.125000e-02 : f32
    %389 = vector.broadcast %cst_129 : f32 to vector<16x1xf32>
    %390 = arith.mulf %388, %389 : vector<16x1xf32>
    %391 = vector.extract_strided_slice %390 {offsets = [0, 0], sizes = [8, 1], strides = [1, 1]} : vector<16x1xf32> to vector<8x1xf32>
    %392 = vector.extract_strided_slice %390 {offsets = [8, 0], sizes = [8, 1], strides = [1, 1]} : vector<16x1xf32> to vector<8x1xf32>
    %393 = arith.mulf %391, %391 : vector<8x1xf32>
    %394 = arith.subf %392, %393 : vector<8x1xf32>
    %395 = vector.broadcast %391 : vector<8x1xf32> to vector<8x32xf32>
    %396 = arith.subf %384, %395 : vector<8x32xf32>
    %cst_130 = arith.constant 9.99999974E-6 : f32
    %397 = vector.broadcast %cst_130 : f32 to vector<8x1xf32>
    %398 = arith.addf %394, %397 : vector<8x1xf32>
    %399 = math.rsqrt %398 : vector<8x1xf32>
    %400 = vector.broadcast %399 : vector<8x1xf32> to vector<8x32xf32>
    %401 = arith.mulf %396, %400 : vector<8x32xf32>
    %402 = vector.broadcast %382 : vector<1x32xf32> to vector<8x32xf32>
    %403 = arith.mulf %401, %402 : vector<8x32xf32>
    %404 = vector.broadcast %383 : vector<1x32xf32> to vector<8x32xf32>
    %405 = arith.addf %403, %404 : vector<8x32xf32>
    %c1136 = arith.constant 1136 : index
    %c0_131 = arith.constant 0 : index
    %406 = vector.load %arg1[%c1136, %c0_131] : memref<1744x128xf32, #tpu.memory_space<vmem>>, vector<32x64xf32>
    %cst_132 = arith.constant dense<0.000000e+00> : vector<8x64xf32>
    %407 = tpu.matmul %405, %406, %cst_132 {dimension_numbers = #tpu.dot_dimension_numbers<[1], [0], [0], [1], [0, 0, 1, 1], [], []>} : vector<8x32xf32>, vector<32x64xf32>, vector<8x64xf32> -> vector<8x64xf32>
    %c1168 = arith.constant 1168 : index
    %c0_133 = arith.constant 0 : index
    %408 = vector.load %arg1[%c1168, %c0_133] : memref<1744x128xf32, #tpu.memory_space<vmem>>, vector<1x64xf32>
    %409 = vector.broadcast %408 : vector<1x64xf32> to vector<8x64xf32>
    %410 = arith.addf %407, %409 : vector<8x64xf32>
    %cst_134 = arith.constant 0.000000e+00 : f32
    %411 = vector.broadcast %cst_134 : f32 to vector<8x64xf32>
    %412 = arith.maximumf %410, %411 : vector<8x64xf32>
    %c1176 = arith.constant 1176 : index
    %c0_135 = arith.constant 0 : index
    %413 = vector.load %arg1[%c1176, %c0_135] : memref<1744x128xf32, #tpu.memory_space<vmem>>, vector<64x32xf32>
    %cst_136 = arith.constant dense<0.000000e+00> : vector<8x32xf32>
    %414 = tpu.matmul %412, %413, %cst_136 {dimension_numbers = #tpu.dot_dimension_numbers<[1], [0], [0], [1], [0, 0, 1, 1], [], []>} : vector<8x64xf32>, vector<64x32xf32>, vector<8x32xf32> -> vector<8x32xf32>
    %c1240 = arith.constant 1240 : index
    %c0_137 = arith.constant 0 : index
    %415 = vector.load %arg1[%c1240, %c0_137] : memref<1744x128xf32, #tpu.memory_space<vmem>>, vector<1x32xf32>
    %416 = vector.broadcast %415 : vector<1x32xf32> to vector<8x32xf32>
    %417 = arith.addf %414, %416 : vector<8x32xf32>
    %c1248 = arith.constant 1248 : index
    %c0_138 = arith.constant 0 : index
    %418 = vector.load %arg1[%c1248, %c0_138] : memref<1744x128xf32, #tpu.memory_space<vmem>>, vector<1x32xf32>
    %c1256 = arith.constant 1256 : index
    %c0_139 = arith.constant 0 : index
    %419 = vector.load %arg1[%c1256, %c0_139] : memref<1744x128xf32, #tpu.memory_space<vmem>>, vector<1x32xf32>
    %420 = arith.addf %405, %417 : vector<8x32xf32>
    %421 = arith.mulf %420, %420 : vector<8x32xf32>
    %422 = tpu.concatenate %420, %421 in 0 : vector<8x32xf32>, vector<8x32xf32> -> vector<16x32xf32>
    %cst_140 = arith.constant dense<0.000000e+00> : vector<16xf32>
    %423 = vector.multi_reduction <add>, %422, %cst_140 [1] : vector<16x32xf32> to vector<16xf32>
    %424 = vector.shape_cast %423 : vector<16xf32> to vector<16x1xf32>
    %cst_141 = arith.constant 3.125000e-02 : f32
    %425 = vector.broadcast %cst_141 : f32 to vector<16x1xf32>
    %426 = arith.mulf %424, %425 : vector<16x1xf32>
    %427 = vector.extract_strided_slice %426 {offsets = [0, 0], sizes = [8, 1], strides = [1, 1]} : vector<16x1xf32> to vector<8x1xf32>
    %428 = vector.extract_strided_slice %426 {offsets = [8, 0], sizes = [8, 1], strides = [1, 1]} : vector<16x1xf32> to vector<8x1xf32>
    %429 = arith.mulf %427, %427 : vector<8x1xf32>
    %430 = arith.subf %428, %429 : vector<8x1xf32>
    %431 = vector.broadcast %427 : vector<8x1xf32> to vector<8x32xf32>
    %432 = arith.subf %420, %431 : vector<8x32xf32>
    %cst_142 = arith.constant 9.99999974E-6 : f32
    %433 = vector.broadcast %cst_142 : f32 to vector<8x1xf32>
    %434 = arith.addf %430, %433 : vector<8x1xf32>
    %435 = math.rsqrt %434 : vector<8x1xf32>
    %436 = vector.broadcast %435 : vector<8x1xf32> to vector<8x32xf32>
    %437 = arith.mulf %432, %436 : vector<8x32xf32>
    %438 = vector.broadcast %418 : vector<1x32xf32> to vector<8x32xf32>
    %439 = arith.mulf %437, %438 : vector<8x32xf32>
    %440 = vector.broadcast %419 : vector<1x32xf32> to vector<8x32xf32>
    %441 = arith.addf %439, %440 : vector<8x32xf32>
    %c1264 = arith.constant 1264 : index
    %c0_143 = arith.constant 0 : index
    %442 = vector.load %arg1[%c1264, %c0_143] : memref<1744x128xf32, #tpu.memory_space<vmem>>, vector<32x32xf32>
    %cst_144 = arith.constant dense<0.000000e+00> : vector<8x32xf32>
    %443 = tpu.matmul %441, %442, %cst_144 {dimension_numbers = #tpu.dot_dimension_numbers<[1], [0], [0], [1], [0, 0, 1, 1], [], []>} : vector<8x32xf32>, vector<32x32xf32>, vector<8x32xf32> -> vector<8x32xf32>
    %c1296 = arith.constant 1296 : index
    %c0_145 = arith.constant 0 : index
    %444 = vector.load %arg1[%c1296, %c0_145] : memref<1744x128xf32, #tpu.memory_space<vmem>>, vector<1x32xf32>
    %445 = vector.broadcast %444 : vector<1x32xf32> to vector<8x32xf32>
    %446 = arith.addf %443, %445 : vector<8x32xf32>
    %c1304 = arith.constant 1304 : index
    %c0_146 = arith.constant 0 : index
    %447 = vector.load %arg1[%c1304, %c0_146] : memref<1744x128xf32, #tpu.memory_space<vmem>>, vector<32x32xf32>
    %cst_147 = arith.constant dense<0.000000e+00> : vector<8x32xf32>
    %448 = tpu.matmul %441, %447, %cst_147 {dimension_numbers = #tpu.dot_dimension_numbers<[1], [0], [0], [1], [0, 0, 1, 1], [], []>} : vector<8x32xf32>, vector<32x32xf32>, vector<8x32xf32> -> vector<8x32xf32>
    %c1336 = arith.constant 1336 : index
    %c0_148 = arith.constant 0 : index
    %449 = vector.load %arg1[%c1336, %c0_148] : memref<1744x128xf32, #tpu.memory_space<vmem>>, vector<1x32xf32>
    %450 = vector.broadcast %449 : vector<1x32xf32> to vector<8x32xf32>
    %451 = arith.addf %448, %450 : vector<8x32xf32>
    %c1344 = arith.constant 1344 : index
    %c0_149 = arith.constant 0 : index
    %452 = vector.load %arg1[%c1344, %c0_149] : memref<1744x128xf32, #tpu.memory_space<vmem>>, vector<32x32xf32>
    %cst_150 = arith.constant dense<0.000000e+00> : vector<8x32xf32>
    %453 = tpu.matmul %441, %452, %cst_150 {dimension_numbers = #tpu.dot_dimension_numbers<[1], [0], [0], [1], [0, 0, 1, 1], [], []>} : vector<8x32xf32>, vector<32x32xf32>, vector<8x32xf32> -> vector<8x32xf32>
    %c1376 = arith.constant 1376 : index
    %c0_151 = arith.constant 0 : index
    %454 = vector.load %arg1[%c1376, %c0_151] : memref<1744x128xf32, #tpu.memory_space<vmem>>, vector<1x32xf32>
    %455 = vector.broadcast %454 : vector<1x32xf32> to vector<8x32xf32>
    %456 = arith.addf %453, %455 : vector<8x32xf32>
    %457 = vector.broadcast %15 : vector<1x32xf32> to vector<8x32xf32>
    %458 = arith.mulf %451, %457 : vector<8x32xf32>
    %459 = vector.broadcast %23 : vector<1x32xf32> to vector<8x32xf32>
    %460 = arith.mulf %451, %459 : vector<8x32xf32>
    %461 = vector.broadcast %31 : vector<1x32xf32> to vector<8x32xf32>
    %462 = arith.mulf %451, %461 : vector<8x32xf32>
    %463 = vector.broadcast %39 : vector<1x32xf32> to vector<8x32xf32>
    %464 = arith.mulf %451, %463 : vector<8x32xf32>
    %465 = tpu.concatenate %458, %460, %462, %464 in 0 : vector<8x32xf32>, vector<8x32xf32>, vector<8x32xf32>, vector<8x32xf32> -> vector<32x32xf32>
    %466 = vector.broadcast %15 : vector<1x32xf32> to vector<8x32xf32>
    %467 = arith.mulf %456, %466 : vector<8x32xf32>
    %468 = vector.broadcast %23 : vector<1x32xf32> to vector<8x32xf32>
    %469 = arith.mulf %456, %468 : vector<8x32xf32>
    %470 = vector.broadcast %31 : vector<1x32xf32> to vector<8x32xf32>
    %471 = arith.mulf %456, %470 : vector<8x32xf32>
    %472 = vector.broadcast %39 : vector<1x32xf32> to vector<8x32xf32>
    %473 = arith.mulf %456, %472 : vector<8x32xf32>
    %474 = tpu.concatenate %467, %469, %471, %473 in 0 : vector<8x32xf32>, vector<8x32xf32>, vector<8x32xf32>, vector<8x32xf32> -> vector<32x32xf32>
    %cst_152 = arith.constant dense<0.000000e+00> : vector<8x32xf32>
    %475 = tpu.matmul %446, %465, %cst_152 {dimension_numbers = #tpu.dot_dimension_numbers<[1], [1], [0], [0], [0, 0, 1, 0], [], []>} : vector<8x32xf32>, vector<32x32xf32>, vector<8x32xf32> -> vector<8x32xf32>
    %476 = arith.addf %475, %1 : vector<8x32xf32>
    %cst_153 = arith.constant dense<0xFF800000> : vector<8xf32>
    %477 = vector.multi_reduction <maximumf>, %476, %cst_153 [1] : vector<8x32xf32> to vector<8xf32>
    %478 = vector.shape_cast %477 : vector<8xf32> to vector<8x1xf32>
    %479 = vector.broadcast %478 : vector<8x1xf32> to vector<8x32xf32>
    %480 = arith.subf %476, %479 : vector<8x32xf32>
    %481 = math.exp %480 : vector<8x32xf32>
    %cst_154 = arith.constant dense<0.000000e+00> : vector<8x32xf32>
    %482 = tpu.matmul %481, %4, %cst_154 {dimension_numbers = #tpu.dot_dimension_numbers<[1], [0], [0], [1], [0, 0, 1, 1], [], []>} : vector<8x32xf32>, vector<32x32xf32>, vector<8x32xf32> -> vector<8x32xf32>
    %483 = arith.divf %481, %482 : vector<8x32xf32>
    %cst_155 = arith.constant dense<0.000000e+00> : vector<8x32xf32>
    %484 = tpu.matmul %483, %474, %cst_155 {dimension_numbers = #tpu.dot_dimension_numbers<[1], [0], [0], [1], [0, 0, 1, 1], [], []>} : vector<8x32xf32>, vector<32x32xf32>, vector<8x32xf32> -> vector<8x32xf32>
    %c1384 = arith.constant 1384 : index
    %c0_156 = arith.constant 0 : index
    %485 = vector.load %arg1[%c1384, %c0_156] : memref<1744x128xf32, #tpu.memory_space<vmem>>, vector<32x32xf32>
    %cst_157 = arith.constant dense<0.000000e+00> : vector<8x32xf32>
    %486 = tpu.matmul %484, %485, %cst_157 {dimension_numbers = #tpu.dot_dimension_numbers<[1], [0], [0], [1], [0, 0, 1, 1], [], []>} : vector<8x32xf32>, vector<32x32xf32>, vector<8x32xf32> -> vector<8x32xf32>
    %c1416 = arith.constant 1416 : index
    %c0_158 = arith.constant 0 : index
    %487 = vector.load %arg1[%c1416, %c0_158] : memref<1744x128xf32, #tpu.memory_space<vmem>>, vector<1x32xf32>
    %488 = vector.broadcast %487 : vector<1x32xf32> to vector<8x32xf32>
    %489 = arith.addf %486, %488 : vector<8x32xf32>
    %c1424 = arith.constant 1424 : index
    %c0_159 = arith.constant 0 : index
    %490 = vector.load %arg1[%c1424, %c0_159] : memref<1744x128xf32, #tpu.memory_space<vmem>>, vector<1x32xf32>
    %c1432 = arith.constant 1432 : index
    %c0_160 = arith.constant 0 : index
    %491 = vector.load %arg1[%c1432, %c0_160] : memref<1744x128xf32, #tpu.memory_space<vmem>>, vector<1x32xf32>
    %492 = arith.addf %441, %489 : vector<8x32xf32>
    %493 = arith.mulf %492, %492 : vector<8x32xf32>
    %494 = tpu.concatenate %492, %493 in 0 : vector<8x32xf32>, vector<8x32xf32> -> vector<16x32xf32>
    %cst_161 = arith.constant dense<0.000000e+00> : vector<16xf32>
    %495 = vector.multi_reduction <add>, %494, %cst_161 [1] : vector<16x32xf32> to vector<16xf32>
    %496 = vector.shape_cast %495 : vector<16xf32> to vector<16x1xf32>
    %cst_162 = arith.constant 3.125000e-02 : f32
    %497 = vector.broadcast %cst_162 : f32 to vector<16x1xf32>
    %498 = arith.mulf %496, %497 : vector<16x1xf32>
    %499 = vector.extract_strided_slice %498 {offsets = [0, 0], sizes = [8, 1], strides = [1, 1]} : vector<16x1xf32> to vector<8x1xf32>
    %500 = vector.extract_strided_slice %498 {offsets = [8, 0], sizes = [8, 1], strides = [1, 1]} : vector<16x1xf32> to vector<8x1xf32>
    %501 = arith.mulf %499, %499 : vector<8x1xf32>
    %502 = arith.subf %500, %501 : vector<8x1xf32>
    %503 = vector.broadcast %499 : vector<8x1xf32> to vector<8x32xf32>
    %504 = arith.subf %492, %503 : vector<8x32xf32>
    %cst_163 = arith.constant 9.99999974E-6 : f32
    %505 = vector.broadcast %cst_163 : f32 to vector<8x1xf32>
    %506 = arith.addf %502, %505 : vector<8x1xf32>
    %507 = math.rsqrt %506 : vector<8x1xf32>
    %508 = vector.broadcast %507 : vector<8x1xf32> to vector<8x32xf32>
    %509 = arith.mulf %504, %508 : vector<8x32xf32>
    %510 = vector.broadcast %490 : vector<1x32xf32> to vector<8x32xf32>
    %511 = arith.mulf %509, %510 : vector<8x32xf32>
    %512 = vector.broadcast %491 : vector<1x32xf32> to vector<8x32xf32>
    %513 = arith.addf %511, %512 : vector<8x32xf32>
    %c1440 = arith.constant 1440 : index
    %c0_164 = arith.constant 0 : index
    %514 = vector.load %arg1[%c1440, %c0_164] : memref<1744x128xf32, #tpu.memory_space<vmem>>, vector<32x32xf32>
    %cst_165 = arith.constant dense<0.000000e+00> : vector<8x32xf32>
    %515 = tpu.matmul %513, %514, %cst_165 {dimension_numbers = #tpu.dot_dimension_numbers<[1], [0], [0], [1], [0, 0, 1, 1], [], []>} : vector<8x32xf32>, vector<32x32xf32>, vector<8x32xf32> -> vector<8x32xf32>
    %c1472 = arith.constant 1472 : index
    %c0_166 = arith.constant 0 : index
    %516 = vector.load %arg1[%c1472, %c0_166] : memref<1744x128xf32, #tpu.memory_space<vmem>>, vector<1x32xf32>
    %517 = vector.broadcast %516 : vector<1x32xf32> to vector<8x32xf32>
    %518 = arith.addf %515, %517 : vector<8x32xf32>
    %c1480 = arith.constant 1480 : index
    %c0_167 = arith.constant 0 : index
    %519 = vector.load %arg1[%c1480, %c0_167] : memref<1744x128xf32, #tpu.memory_space<vmem>>, vector<32x32xf32>
    %cst_168 = arith.constant dense<0.000000e+00> : vector<16x32xf32>
    %520 = tpu.matmul %260, %519, %cst_168 {dimension_numbers = #tpu.dot_dimension_numbers<[1], [0], [0], [1], [0, 0, 1, 1], [], []>} : vector<16x32xf32>, vector<32x32xf32>, vector<16x32xf32> -> vector<16x32xf32>
    %c1512 = arith.constant 1512 : index
    %c0_169 = arith.constant 0 : index
    %521 = vector.load %arg1[%c1512, %c0_169] : memref<1744x128xf32, #tpu.memory_space<vmem>>, vector<1x32xf32>
    %522 = vector.broadcast %521 : vector<1x32xf32> to vector<16x32xf32>
    %523 = arith.addf %520, %522 : vector<16x32xf32>
    %c1520 = arith.constant 1520 : index
    %c0_170 = arith.constant 0 : index
    %524 = vector.load %arg1[%c1520, %c0_170] : memref<1744x128xf32, #tpu.memory_space<vmem>>, vector<32x32xf32>
    %cst_171 = arith.constant dense<0.000000e+00> : vector<16x32xf32>
    %525 = tpu.matmul %260, %524, %cst_171 {dimension_numbers = #tpu.dot_dimension_numbers<[1], [0], [0], [1], [0, 0, 1, 1], [], []>} : vector<16x32xf32>, vector<32x32xf32>, vector<16x32xf32> -> vector<16x32xf32>
    %c1552 = arith.constant 1552 : index
    %c0_172 = arith.constant 0 : index
    %526 = vector.load %arg1[%c1552, %c0_172] : memref<1744x128xf32, #tpu.memory_space<vmem>>, vector<1x32xf32>
    %527 = vector.broadcast %526 : vector<1x32xf32> to vector<16x32xf32>
    %528 = arith.addf %525, %527 : vector<16x32xf32>
    %529 = vector.broadcast %15 : vector<1x32xf32> to vector<16x32xf32>
    %530 = arith.mulf %523, %529 : vector<16x32xf32>
    %531 = vector.broadcast %23 : vector<1x32xf32> to vector<16x32xf32>
    %532 = arith.mulf %523, %531 : vector<16x32xf32>
    %533 = vector.broadcast %31 : vector<1x32xf32> to vector<16x32xf32>
    %534 = arith.mulf %523, %533 : vector<16x32xf32>
    %535 = vector.broadcast %39 : vector<1x32xf32> to vector<16x32xf32>
    %536 = arith.mulf %523, %535 : vector<16x32xf32>
    %537 = tpu.concatenate %530, %532, %534, %536 in 0 : vector<16x32xf32>, vector<16x32xf32>, vector<16x32xf32>, vector<16x32xf32> -> vector<64x32xf32>
    %538 = vector.broadcast %15 : vector<1x32xf32> to vector<16x32xf32>
    %539 = arith.mulf %528, %538 : vector<16x32xf32>
    %540 = vector.broadcast %23 : vector<1x32xf32> to vector<16x32xf32>
    %541 = arith.mulf %528, %540 : vector<16x32xf32>
    %542 = vector.broadcast %31 : vector<1x32xf32> to vector<16x32xf32>
    %543 = arith.mulf %528, %542 : vector<16x32xf32>
    %544 = vector.broadcast %39 : vector<1x32xf32> to vector<16x32xf32>
    %545 = arith.mulf %528, %544 : vector<16x32xf32>
    %546 = tpu.concatenate %539, %541, %543, %545 in 0 : vector<16x32xf32>, vector<16x32xf32>, vector<16x32xf32>, vector<16x32xf32> -> vector<64x32xf32>
    %cst_173 = arith.constant dense<0.000000e+00> : vector<8x64xf32>
    %547 = tpu.matmul %518, %537, %cst_173 {dimension_numbers = #tpu.dot_dimension_numbers<[1], [1], [0], [0], [0, 0, 1, 0], [], []>} : vector<8x32xf32>, vector<64x32xf32>, vector<8x64xf32> -> vector<8x64xf32>
    %548 = arith.addf %547, %2 : vector<8x64xf32>
    %cst_174 = arith.constant dense<0xFF800000> : vector<8xf32>
    %549 = vector.multi_reduction <maximumf>, %548, %cst_174 [1] : vector<8x64xf32> to vector<8xf32>
    %550 = vector.shape_cast %549 : vector<8xf32> to vector<8x1xf32>
    %551 = vector.broadcast %550 : vector<8x1xf32> to vector<8x64xf32>
    %552 = arith.subf %548, %551 : vector<8x64xf32>
    %553 = math.exp %552 : vector<8x64xf32>
    %cst_175 = arith.constant dense<0.000000e+00> : vector<8x64xf32>
    %554 = tpu.matmul %553, %3, %cst_175 {dimension_numbers = #tpu.dot_dimension_numbers<[1], [0], [0], [1], [0, 0, 1, 1], [], []>} : vector<8x64xf32>, vector<64x64xf32>, vector<8x64xf32> -> vector<8x64xf32>
    %555 = arith.divf %553, %554 : vector<8x64xf32>
    %cst_176 = arith.constant dense<0.000000e+00> : vector<8x32xf32>
    %556 = tpu.matmul %555, %546, %cst_176 {dimension_numbers = #tpu.dot_dimension_numbers<[1], [0], [0], [1], [0, 0, 1, 1], [], []>} : vector<8x64xf32>, vector<64x32xf32>, vector<8x32xf32> -> vector<8x32xf32>
    %c1560 = arith.constant 1560 : index
    %c0_177 = arith.constant 0 : index
    %557 = vector.load %arg1[%c1560, %c0_177] : memref<1744x128xf32, #tpu.memory_space<vmem>>, vector<32x32xf32>
    %cst_178 = arith.constant dense<0.000000e+00> : vector<8x32xf32>
    %558 = tpu.matmul %556, %557, %cst_178 {dimension_numbers = #tpu.dot_dimension_numbers<[1], [0], [0], [1], [0, 0, 1, 1], [], []>} : vector<8x32xf32>, vector<32x32xf32>, vector<8x32xf32> -> vector<8x32xf32>
    %c1592 = arith.constant 1592 : index
    %c0_179 = arith.constant 0 : index
    %559 = vector.load %arg1[%c1592, %c0_179] : memref<1744x128xf32, #tpu.memory_space<vmem>>, vector<1x32xf32>
    %560 = vector.broadcast %559 : vector<1x32xf32> to vector<8x32xf32>
    %561 = arith.addf %558, %560 : vector<8x32xf32>
    %c1600 = arith.constant 1600 : index
    %c0_180 = arith.constant 0 : index
    %562 = vector.load %arg1[%c1600, %c0_180] : memref<1744x128xf32, #tpu.memory_space<vmem>>, vector<1x32xf32>
    %c1608 = arith.constant 1608 : index
    %c0_181 = arith.constant 0 : index
    %563 = vector.load %arg1[%c1608, %c0_181] : memref<1744x128xf32, #tpu.memory_space<vmem>>, vector<1x32xf32>
    %564 = arith.addf %513, %561 : vector<8x32xf32>
    %565 = arith.mulf %564, %564 : vector<8x32xf32>
    %566 = tpu.concatenate %564, %565 in 0 : vector<8x32xf32>, vector<8x32xf32> -> vector<16x32xf32>
    %cst_182 = arith.constant dense<0.000000e+00> : vector<16xf32>
    %567 = vector.multi_reduction <add>, %566, %cst_182 [1] : vector<16x32xf32> to vector<16xf32>
    %568 = vector.shape_cast %567 : vector<16xf32> to vector<16x1xf32>
    %cst_183 = arith.constant 3.125000e-02 : f32
    %569 = vector.broadcast %cst_183 : f32 to vector<16x1xf32>
    %570 = arith.mulf %568, %569 : vector<16x1xf32>
    %571 = vector.extract_strided_slice %570 {offsets = [0, 0], sizes = [8, 1], strides = [1, 1]} : vector<16x1xf32> to vector<8x1xf32>
    %572 = vector.extract_strided_slice %570 {offsets = [8, 0], sizes = [8, 1], strides = [1, 1]} : vector<16x1xf32> to vector<8x1xf32>
    %573 = arith.mulf %571, %571 : vector<8x1xf32>
    %574 = arith.subf %572, %573 : vector<8x1xf32>
    %575 = vector.broadcast %571 : vector<8x1xf32> to vector<8x32xf32>
    %576 = arith.subf %564, %575 : vector<8x32xf32>
    %cst_184 = arith.constant 9.99999974E-6 : f32
    %577 = vector.broadcast %cst_184 : f32 to vector<8x1xf32>
    %578 = arith.addf %574, %577 : vector<8x1xf32>
    %579 = math.rsqrt %578 : vector<8x1xf32>
    %580 = vector.broadcast %579 : vector<8x1xf32> to vector<8x32xf32>
    %581 = arith.mulf %576, %580 : vector<8x32xf32>
    %582 = vector.broadcast %562 : vector<1x32xf32> to vector<8x32xf32>
    %583 = arith.mulf %581, %582 : vector<8x32xf32>
    %584 = vector.broadcast %563 : vector<1x32xf32> to vector<8x32xf32>
    %585 = arith.addf %583, %584 : vector<8x32xf32>
    %c1616 = arith.constant 1616 : index
    %c0_185 = arith.constant 0 : index
    %586 = vector.load %arg1[%c1616, %c0_185] : memref<1744x128xf32, #tpu.memory_space<vmem>>, vector<32x64xf32>
    %cst_186 = arith.constant dense<0.000000e+00> : vector<8x64xf32>
    %587 = tpu.matmul %585, %586, %cst_186 {dimension_numbers = #tpu.dot_dimension_numbers<[1], [0], [0], [1], [0, 0, 1, 1], [], []>} : vector<8x32xf32>, vector<32x64xf32>, vector<8x64xf32> -> vector<8x64xf32>
    %c1648 = arith.constant 1648 : index
    %c0_187 = arith.constant 0 : index
    %588 = vector.load %arg1[%c1648, %c0_187] : memref<1744x128xf32, #tpu.memory_space<vmem>>, vector<1x64xf32>
    %589 = vector.broadcast %588 : vector<1x64xf32> to vector<8x64xf32>
    %590 = arith.addf %587, %589 : vector<8x64xf32>
    %cst_188 = arith.constant 0.000000e+00 : f32
    %591 = vector.broadcast %cst_188 : f32 to vector<8x64xf32>
    %592 = arith.maximumf %590, %591 : vector<8x64xf32>
    %c1656 = arith.constant 1656 : index
    %c0_189 = arith.constant 0 : index
    %593 = vector.load %arg1[%c1656, %c0_189] : memref<1744x128xf32, #tpu.memory_space<vmem>>, vector<64x32xf32>
    %cst_190 = arith.constant dense<0.000000e+00> : vector<8x32xf32>
    %594 = tpu.matmul %592, %593, %cst_190 {dimension_numbers = #tpu.dot_dimension_numbers<[1], [0], [0], [1], [0, 0, 1, 1], [], []>} : vector<8x64xf32>, vector<64x32xf32>, vector<8x32xf32> -> vector<8x32xf32>
    %c1720 = arith.constant 1720 : index
    %c0_191 = arith.constant 0 : index
    %595 = vector.load %arg1[%c1720, %c0_191] : memref<1744x128xf32, #tpu.memory_space<vmem>>, vector<1x32xf32>
    %596 = vector.broadcast %595 : vector<1x32xf32> to vector<8x32xf32>
    %597 = arith.addf %594, %596 : vector<8x32xf32>
    %c1728 = arith.constant 1728 : index
    %c0_192 = arith.constant 0 : index
    %598 = vector.load %arg1[%c1728, %c0_192] : memref<1744x128xf32, #tpu.memory_space<vmem>>, vector<1x32xf32>
    %c1736 = arith.constant 1736 : index
    %c0_193 = arith.constant 0 : index
    %599 = vector.load %arg1[%c1736, %c0_193] : memref<1744x128xf32, #tpu.memory_space<vmem>>, vector<1x32xf32>
    %600 = arith.addf %585, %597 : vector<8x32xf32>
    %601 = arith.mulf %600, %600 : vector<8x32xf32>
    %602 = tpu.concatenate %600, %601 in 0 : vector<8x32xf32>, vector<8x32xf32> -> vector<16x32xf32>
    %cst_194 = arith.constant dense<0.000000e+00> : vector<16xf32>
    %603 = vector.multi_reduction <add>, %602, %cst_194 [1] : vector<16x32xf32> to vector<16xf32>
    %604 = vector.shape_cast %603 : vector<16xf32> to vector<16x1xf32>
    %cst_195 = arith.constant 3.125000e-02 : f32
    %605 = vector.broadcast %cst_195 : f32 to vector<16x1xf32>
    %606 = arith.mulf %604, %605 : vector<16x1xf32>
    %607 = vector.extract_strided_slice %606 {offsets = [0, 0], sizes = [8, 1], strides = [1, 1]} : vector<16x1xf32> to vector<8x1xf32>
    %608 = vector.extract_strided_slice %606 {offsets = [8, 0], sizes = [8, 1], strides = [1, 1]} : vector<16x1xf32> to vector<8x1xf32>
    %609 = arith.mulf %607, %607 : vector<8x1xf32>
    %610 = arith.subf %608, %609 : vector<8x1xf32>
    %611 = vector.broadcast %607 : vector<8x1xf32> to vector<8x32xf32>
    %612 = arith.subf %600, %611 : vector<8x32xf32>
    %cst_196 = arith.constant 9.99999974E-6 : f32
    %613 = vector.broadcast %cst_196 : f32 to vector<8x1xf32>
    %614 = arith.addf %610, %613 : vector<8x1xf32>
    %615 = math.rsqrt %614 : vector<8x1xf32>
    %616 = vector.broadcast %615 : vector<8x1xf32> to vector<8x32xf32>
    %617 = arith.mulf %612, %616 : vector<8x32xf32>
    %618 = vector.broadcast %598 : vector<1x32xf32> to vector<8x32xf32>
    %619 = arith.mulf %617, %618 : vector<8x32xf32>
    %620 = vector.broadcast %599 : vector<1x32xf32> to vector<8x32xf32>
    %621 = arith.addf %619, %620 : vector<8x32xf32>
    %622 = vector.broadcast %5 : vector<1x32xf32> to vector<8x32xf32>
    %623 = arith.mulf %621, %622 : vector<8x32xf32>
    %cst_197 = arith.constant dense<0.000000e+00> : vector<8xf32>
    %624 = vector.multi_reduction <add>, %623, %cst_197 [1] : vector<8x32xf32> to vector<8xf32>
    %625 = vector.shape_cast %624 : vector<8xf32> to vector<8x1xf32>
    %626 = vector.broadcast %6 : vector<1x1xf32> to vector<8x1xf32>
    %627 = arith.addf %625, %626 : vector<8x1xf32>
    %c0_198 = arith.constant 0 : index
    %c0_199 = arith.constant 0 : index
    %628 = vector.load %arg2[%c0_198, %c0_199] : memref<8x1xf32, #tpu.memory_space<vmem>>, vector<8x1xf32>
    tpu.vector_store %arg2[%c0_198, %c0_199], %627 {strides = array<i32>} : memref<8x1xf32, #tpu.memory_space<vmem>>, vector<8x1xf32>,
    return
  }
}

</mosaic_0001>

<llo_original>
// kernel: forward.1
$region0: #{forward.1}
  #allocation0 [shape = 'u32[]', space=smem, size = 0x4, offset = 0x4, fixed_abs, tag = 'smem constant byte address 0x4 - core index']
  #allocation1 [shape = 'u32[72,128]{1,0:T(1,128)}', space=vmem, size = 0x9000, scoped, tag = 'internal scratch']
  %s0 = inlined_call_operand.vmem [shape: f32[16,4], index: 0, kind: input, shape index: {}]
  %s1 = inlined_call_operand.hbm [shape: f32[1744,128], index: 1, kind: input, shape index: {}]
  %s2 = inlined_call_operand.vmem [shape: f32[8,1], index: 2, kind: output, shape index: {}]
  %s3 = sld [smem:[#allocation0]]
  $region22: #{forward.1} parent=0
    _
  %s5 = ssub.s32 1, %s3
  %s6 = scalar_select 0, %s5, %s3
  $region1: #{forward.1} parent=0
    #allocation2 [shape = 'u8[892928]{0}', space=vmem, size = 0xda000, scoped, tag = 'input window, operand 1, single buffered']
    #allocation3 [shape = 's32[1]{0}', space=sflag, size = 0x4, scoped, tag = 'scoped memory for forward.1']
    %7 = vsyncpa [#allocation3], 0
    // Predicated region
    $region2: #{forward.1} parent=1 // pred_check
      _
    $region3: #{forward.1} parent=1 // pred_check_branch
      %9 = sbr.rel (0) target = $region5
    $region4: #{forward.1} parent=1 // pred_region
      _
    $region5: #{forward.1} parent=1 // pred_fallthru
      _
    // Predicated region
    $region6: #{forward.1} parent=1 // pred_check
      _
    $region7: #{forward.1} parent=1 // pred_check_branch
      %11 = sbr.rel (0) target = $region9
    $region8: #{forward.1} parent=1 // pred_region
      %13 = vsyncadd [#allocation3], 0
      %s14 = sshll.u32 %s1, 4
      %s15 = int_to_ptr.hbm [resolvable:$true] %s14
      %s16 = sshll.u32 [#allocation2], 4
      %s17 = int_to_ptr.vmem [resolvable:$true] %s16
      %22 = dma.hbm_to_vmem [thread:$0]  %s15, 27904, %s17, [#allocation3], 128, 128, 8
    $region9: #{forward.1} parent=1 // pred_fallthru
      _
    // Predicated region
    $region10: #{forward.1} parent=1 // pred_check
      _
    $region11: #{forward.1} parent=1 // pred_check_branch
      %24 = sbr.rel (0) target = $region13
    $region12: #{forward.1} parent=1 // pred_region
      %26 = dma.done [#allocation3], 27904
    $region13: #{forward.1} parent=1 // pred_fallthru
      _
    %v27 = vld [vmem:[#allocation2 + $0x20] sm:$0xff]
    %v28 = vld [vmem:[#allocation2 + $0x28] sm:$0xff]
    %v29 = vld [vmem:[#allocation2 + $0x30] sm:$0xff]
    %v30 = vld [vmem:[#allocation2 + $0x38] sm:$0xff]
    %v31 = vld [vmem:[#allocation2 + $0x40] sm:$0xff]
    %v32 = vld [vmem:[#allocation2 + $0x48] sm:$0xff]
    %v33 = vld [vmem:[#allocation2 + $0x50] sm:$0xff]
    %v34 = vld [vmem:[#allocation2 + $0x58] sm:$0xff]
    %v35 = vld [vmem:[#allocation2 + $0x60] sm:$0xff]
    %v36 = vld [vmem:[#allocation2 + $0x68] sm:$0xff]
    %v37 = vld [vmem:[#allocation2 + $0x70] sm:$0xff]
    %v38 = vld [vmem:[#allocation2 + $0x78] sm:$0xff]
    %v39 = vld [vmem:[#allocation2 + $0x80] sm:$0xff]
    %v40 = vld [vmem:[#allocation2 + $0x88] sm:$0xff]
    %v41 = vld [vmem:[#allocation2 + $0x90] sm:$0xff]
    %v42 = vld [vmem:[#allocation2 + $0x98] sm:$0xff]
    %v43 = vld [vmem:[#allocation2 + $0xa0] sm:$0x1]
    %v44 = vld [vmem:[#allocation2 + $0xa8] sm:$0x1]
    %v45 = vlaneseq
    %v46 = vand.u32 %v45, 127
    %vm47 = vcmp.ge.s32.totalorder %v46, 0
    %vm48 = vcmp.lt.s32.totalorder %v46, 8
    %vm49 = vmand %vm47, %vm48
    %v50 = vsel %vm49, 1.0, 0.0
    %vm51 = vcmp.ge.s32.totalorder %v46, 8
    %vm52 = vcmp.lt.s32.totalorder %v46, 16
    %vm53 = vmand %vm51, %vm52
    %v54 = vsel %vm53, 1.0, 0.0
    %vm55 = vcmp.ge.s32.totalorder %v46, 16
    %vm56 = vcmp.lt.s32.totalorder %v46, 24
    %vm57 = vmand %vm55, %vm56
    %v58 = vsel %vm57, 1.0, 0.0
    %vm59 = vcmp.ge.s32.totalorder %v46, 24
    %vm60 = vcmp.lt.s32.totalorder %v46, 32
    %vm61 = vmand %vm59, %vm60
    %v62 = vsel %vm61, 1.0, 0.0
    %v63 = vld [vmem:[%s0] sm:$0xff]
    %v64 = vld [vmem:[%s0 + $0x8] sm:$0xff]
    %v65 = vld [vmem:[#allocation2] sm:$0xf]
    %v66 = vld [vmem:[#allocation2 + $0x8] sm:$0xff]
    %v67 = vld [vmem:[#allocation2 + $0x10] sm:$0xff]
    %vm68 = vcmask 31744
    %v70 = vsel %vm68, %v63, 0
    %v73 = vsel %vm68, %v64, 0
    %vm75 = vcmask 1043456
    %v77 = vsel %vm75, %v65, 0
    %79 = vmatpush.msra.mxu0 0.0
    %80 = vmatpush.msra.mxu0 0.0
    %81 = vmatpush.msra.mxu0 0.0
    %82 = vmatpush.msra.mxu0 0.0
    %83 = vmatpush.msra.mxu0 0.0
    %84 = vmatpush.msra.mxu0 0.0
    %85 = vmatpush.msra.mxu0 0.0
    %86 = vmatpush.msra.mxu0 0.0
    %87 = vmatpush.msra.mxu0 0.0
    %88 = vmatpush.msra.mxu0 0.0
    %89 = vmatpush.msra.mxu0 0.0
    %90 = vmatpush.msra.mxu0 0.0
    %91 = vmatpush.msra.mxu0 0.0
    %92 = vmatpush.msra.mxu0 0.0
    %93 = vmatpush.msra.mxu0 0.0
    %94 = vmatpush.msra.mxu0 %v77
    %95 = vmatmul.f32.gmra.mxu0 %v70
    %v96 = vpop.f32.mrf.mxu0
    %v97 = vadd.f32 %v66, %v96
    %98 = vmatmul.f32.gmra.mxu0 %v73
    %v99 = vpop.f32.mrf.mxu0
    %v100 = vadd.f32 %v67, %v99
    %101 = vdwg.mxu0
    %v102 = vld [vmem:[#allocation2 + $0xb0] sm:$0xff]
    %v103 = vld [vmem:[#allocation2 + $0xb8] sm:$0xff]
    %v104 = vld [vmem:[#allocation2 + $0xc0] sm:$0xff]
    %v105 = vld [vmem:[#allocation2 + $0xc8] sm:$0xff]
    %v106 = vld [vmem:[#allocation2 + $0xd0] sm:$0x1]
    %v107 = vperm.slane %v106, 0
    %vm108 = vcmask 261120
    %v110 = vsel %vm108, %v97, 0
    %v113 = vsel %vm108, %v100, 0
    %115 = vmatpush.msra.mxu0 0.0
    %116 = vmatpush.msra.mxu0 0.0
    %117 = vmatpush.msra.mxu0 0.0
    %118 = vmatpush.msra.mxu0 0.0
    %119 = vmatpush.msra.mxu0 0.0
    %120 = vmatpush.msra.mxu0 0.0
    %121 = vmatpush.msra.mxu0 0.0
    %122 = vmatpush.msra.mxu0 0.0
    %123 = vmatpush.msra.mxu0 0.0
    %124 = vmatpush.msra.mxu0 0.0
    %125 = vmatpush.msra.mxu0 0.0
    %126 = vmatpush.msra.mxu0 0.0
    %127 = vmatpush.msra.mxu0 %v105
    %128 = vmatpush.msra.mxu0 %v104
    %129 = vmatpush.msra.mxu0 %v103
    %130 = vmatpush.msra.mxu0 %v102
    %131 = vmatmul.f32.gmra.mxu0 %v110
    %v132 = vpop.f32.mrf.mxu0
    %v133 = vadd.f32 %v107, %v132
    %134 = vmatmul.f32.gmra.mxu0 %v113
    %v135 = vpop.f32.mrf.mxu0
    %v136 = vadd.f32 %v107, %v135
    %137 = vdwg.mxu0
    %v138 = vld [vmem:[#allocation2 + $0xd8] sm:$0xff]
    %v139 = vld [vmem:[#allocation2 + $0xe0] sm:$0xff]
    %v140 = vld [vmem:[#allocation2 + $0xe8] sm:$0xff]
    %v141 = vld [vmem:[#allocation2 + $0xf0] sm:$0xff]
    %v142 = vld [vmem:[#allocation2 + $0xf8] sm:$0x1]
    %v143 = vperm.slane %v142, 0
    %144 = vmatpush.msra.mxu0 0.0
    %145 = vmatpush.msra.mxu0 0.0
    %146 = vmatpush.msra.mxu0 0.0
    %147 = vmatpush.msra.mxu0 0.0
    %148 = vmatpush.msra.mxu0 0.0
    %149 = vmatpush.msra.mxu0 0.0
    %150 = vmatpush.msra.mxu0 0.0
    %151 = vmatpush.msra.mxu0 0.0
    %152 = vmatpush.msra.mxu0 0.0
    %153 = vmatpush.msra.mxu0 0.0
    %154 = vmatpush.msra.mxu0 0.0
    %155 = vmatpush.msra.mxu0 0.0
    %156 = vmatpush.msra.mxu0 %v141
    %157 = vmatpush.msra.mxu0 %v140
    %158 = vmatpush.msra.mxu0 %v139
    %159 = vmatpush.msra.mxu0 %v138
    %160 = vmatmul.f32.gmra.mxu0 %v110
    %v161 = vpop.f32.mrf.mxu0
    %v162 = vadd.f32 %v143, %v161
    %163 = vmatmul.f32.gmra.mxu0 %v113
    %v164 = vpop.f32.mrf.mxu0
    %v165 = vadd.f32 %v143, %v164
    %166 = vdwg.mxu0
    %v167 = vld [vmem:[#allocation2 + $0x100] sm:$0xff]
    %v168 = vld [vmem:[#allocation2 + $0x108] sm:$0xff]
    %v169 = vld [vmem:[#allocation2 + $0x110] sm:$0xff]
    %v170 = vld [vmem:[#allocation2 + $0x118] sm:$0xff]
    %v171 = vld [vmem:[#allocation2 + $0x120] sm:$0x1]
    %v172 = vperm.slane %v171, 0
    %173 = vmatpush.msra.mxu0 0.0
    %174 = vmatpush.msra.mxu0 0.0
    %175 = vmatpush.msra.mxu0 0.0
    %176 = vmatpush.msra.mxu0 0.0
    %177 = vmatpush.msra.mxu0 0.0
    %178 = vmatpush.msra.mxu0 0.0
    %179 = vmatpush.msra.mxu0 0.0
    %180 = vmatpush.msra.mxu0 0.0
    %181 = vmatpush.msra.mxu0 0.0
    %182 = vmatpush.msra.mxu0 0.0
    %183 = vmatpush.msra.mxu0 0.0
    %184 = vmatpush.msra.mxu0 0.0
    %185 = vmatpush.msra.mxu0 %v170
    %186 = vmatpush.msra.mxu0 %v169
    %187 = vmatpush.msra.mxu0 %v168
    %188 = vmatpush.msra.mxu0 %v167
    %189 = vmatmul.f32.gmra.mxu0 %v110
    %v190 = vpop.f32.mrf.mxu0
    %v191 = vadd.f32 %v172, %v190
    %192 = vmatmul.f32.gmra.mxu0 %v113
    %v193 = vpop.f32.mrf.mxu0
    %v194 = vadd.f32 %v172, %v193
    %195 = vdwg.mxu0
    %v196 = vmul.f32 %v162, %v50
    %v197 = vmul.f32 %v165, %v50
    %v198 = vmul.f32 %v162, %v54
    %v199 = vmul.f32 %v165, %v54
    %v200 = vmul.f32 %v162, %v58
    %v201 = vmul.f32 %v165, %v58
    %v202 = vmul.f32 %v162, %v62
    %v203 = vmul.f32 %v165, %v62
    %v204 = vmul.f32 %v191, %v50
    %v205 = vmul.f32 %v194, %v50
    %v206 = vmul.f32 %v191, %v54
    %v207 = vmul.f32 %v194, %v54
    %v208 = vmul.f32 %v191, %v58
    %v209 = vmul.f32 %v194, %v58
    %v210 = vmul.f32 %v191, %v62
    %v211 = vmul.f32 %v194, %v62
    %v213 = vsel %vm108, %v133, 0
    %v216 = vsel %vm108, %v136, 0
    %v219 = vsel %vm108, %v196, 0
    %v222 = vsel %vm108, %v197, 0
    %v225 = vsel %vm108, %v198, 0
    %v228 = vsel %vm108, %v199, 0
    %v231 = vsel %vm108, %v200, 0
    %v234 = vsel %vm108, %v201, 0
    %v237 = vsel %vm108, %v202, 0
    %v240 = vsel %vm108, %v203, 0
    %242 = vmatpush.xpose.msra.mxu0 0.0
    %243 = vmatpush.xpose.msra.mxu0 0.0
    %244 = vmatpush.xpose.msra.mxu0 0.0
    %245 = vmatpush.xpose.msra.mxu0 0.0
    %246 = vmatpush.xpose.msra.mxu0 0.0
    %247 = vmatpush.xpose.msra.mxu0 0.0
    %248 = vmatpush.xpose.msra.mxu0 0.0
    %249 = vmatpush.xpose.msra.mxu0 0.0
    %250 = vmatpush.xpose.msra.mxu0 %v240
    %251 = vmatpush.xpose.msra.mxu0 %v237
    %252 = vmatpush.xpose.msra.mxu0 %v234
    %253 = vmatpush.xpose.msra.mxu0 %v231
    %254 = vmatpush.xpose.msra.mxu0 %v228
    %255 = vmatpush.xpose.msra.mxu0 %v225
    %256 = vmatpush.xpose.msra.mxu0 %v222
    %257 = vmatpush.xpose.msra.mxu0 %v219
    %258 = vmatmul.f32.gmra.mxu0 %v213
    %v259 = vpop.f32.mrf.mxu0
    %v260 = vadd.f32 %v27, %v259
    %261 = vmatmul.f32.gmra.mxu0 %v216
    %v262 = vpop.f32.mrf.mxu0
    %v263 = vadd.f32 %v28, %v262
    %264 = vdwg.mxu0
    %vm265 = vcmask 523264
    %v266 = vsel %vm265, %v260, -inf
    %267 = vmax.xlane.f32.xlu0 %v266
    %v268 = vpop.xlane.xlu0 %267
    %v269 = vsel %vm265, %v263, -inf
    %270 = vmax.xlane.f32.xlu0 %v269
    %v271 = vpop.xlane.xlu0 %270
    %v272 = vsub.f32 %v260, %v268
    %v273 = vsub.f32 %v263, %v271
    %v274 = vmul.f32 %v272, 1.442695
    %v275 = vpow.pop %v274
    %v276 = vmul.f32 %v273, 1.442695
    %v277 = vpow.pop %v276
    %v279 = vsel %vm265, %v275, 0
    %v282 = vsel %vm265, %v277, 0
    %284 = vmatpush.msra.mxu0 0.0
    %285 = vmatpush.msra.mxu0 0.0
    %286 = vmatpush.msra.mxu0 0.0
    %287 = vmatpush.msra.mxu0 0.0
    %288 = vmatpush.msra.mxu0 0.0
    %289 = vmatpush.msra.mxu0 0.0
    %290 = vmatpush.msra.mxu0 0.0
    %291 = vmatpush.msra.mxu0 0.0
    %292 = vmatpush.msra.mxu0 %v38
    %293 = vmatpush.msra.mxu0 %v37
    %294 = vmatpush.msra.mxu0 %v36
    %295 = vmatpush.msra.mxu0 %v35
    %296 = vmatpush.msra.mxu0 %v34
    %297 = vmatpush.msra.mxu0 %v33
    %298 = vmatpush.msra.mxu0 %v32
    %299 = vmatpush.msra.mxu0 %v31
    %300 = vmatmul.f32.gmra.mxu0 %v279
    %v301 = vpop.f32.mrf.mxu0
    %v302 = vadd.f32 0.0, %v301
    %303 = vmatmul.f32.gmra.mxu0 %v282
    %v304 = vpop.f32.mrf.mxu0
    %v305 = vadd.f32 0.0, %v304
    %306 = vdwg.mxu0
    %v307 = vrcp.pop %v302
    %v308 = vmul.f32 %v302, %v307
    %v309 = vsub.f32 1.0, %v308
    %v310 = vmul.f32 %v307, %v309
    %v311 = vadd.f32 %v307, %v310
    %vm312 = vweird.f32 %v302
    %vm313 = vweird.f32 %v307
    %vm314 = vmor %vm312, %vm313
    %v315 = vsel %vm314, %v307, %v311
    %v316 = vand.u32 2147483647, %v302
    %vm317 = vcmp.eq.f32.partialorder %v316, 8.507059e+37
    %v318 = vand.u32 %v302, 2147483648
    %v319 = vor.u32 1.1754944e-38, %v318
    %v320 = vsel %vm317, %v319, %v315
    %v321 = vmul.f32 %v275, %v320
    %v322 = vrcp.pop %v305
    %v323 = vmul.f32 %v305, %v322
    %v324 = vsub.f32 1.0, %v323
    %v325 = vmul.f32 %v322, %v324
    %v326 = vadd.f32 %v322, %v325
    %vm327 = vweird.f32 %v305
    %vm328 = vweird.f32 %v322
    %vm329 = vmor %vm327, %vm328
    %v330 = vsel %vm329, %v322, %v326
    %v331 = vand.u32 2147483647, %v305
    %vm332 = vcmp.eq.f32.partialorder %v331, 8.507059e+37
    %v333 = vand.u32 %v305, 2147483648
    %v334 = vor.u32 1.1754944e-38, %v333
    %v335 = vsel %vm332, %v334, %v330
    %v336 = vmul.f32 %v277, %v335
    %v338 = vsel %vm265, %v321, 0
    %v341 = vsel %vm265, %v336, 0
    %343 = vmatpush.msra.mxu0 0.0
    %344 = vmatpush.msra.mxu0 0.0
    %345 = vmatpush.msra.mxu0 0.0
    %346 = vmatpush.msra.mxu0 0.0
    %347 = vmatpush.msra.mxu0 0.0
    %348 = vmatpush.msra.mxu0 0.0
    %349 = vmatpush.msra.mxu0 0.0
    %350 = vmatpush.msra.mxu0 0.0
    %351 = vmatpush.msra.mxu0 %v211
    %352 = vmatpush.msra.mxu0 %v210
    %353 = vmatpush.msra.mxu0 %v209
    %354 = vmatpush.msra.mxu0 %v208
    %355 = vmatpush.msra.mxu0 %v207
    %356 = vmatpush.msra.mxu0 %v206
    %357 = vmatpush.msra.mxu0 %v205
    %358 = vmatpush.msra.mxu0 %v204
    %359 = vmatmul.f32.gmra.mxu0 %v338
    %v360 = vpop.f32.mrf.mxu0
    %v361 = vadd.f32 0.0, %v360
    %362 = vmatmul.f32.gmra.mxu0 %v341
    %v363 = vpop.f32.mrf.mxu0
    %v364 = vadd.f32 0.0, %v363
    %365 = vdwg.mxu0
    %v366 = vld [vmem:[#allocation2 + $0x128] sm:$0xff]
    %v367 = vld [vmem:[#allocation2 + $0x130] sm:$0xff]
    %v368 = vld [vmem:[#allocation2 + $0x138] sm:$0xff]
    %v369 = vld [vmem:[#allocation2 + $0x140] sm:$0xff]
    %v370 = vld [vmem:[#allocation2 + $0x148] sm:$0x1]
    %v371 = vperm.slane %v370, 0
    %v373 = vsel %vm108, %v361, 0
    %v376 = vsel %vm108, %v364, 0
    %378 = vmatpush.msra.mxu0 0.0
    %379 = vmatpush.msra.mxu0 0.0
    %380 = vmatpush.msra.mxu0 0.0
    %381 = vmatpush.msra.mxu0 0.0
    %382 = vmatpush.msra.mxu0 0.0
    %383 = vmatpush.msra.mxu0 0.0
    %384 = vmatpush.msra.mxu0 0.0
    %385 = vmatpush.msra.mxu0 0.0
    %386 = vmatpush.msra.mxu0 0.0
    %387 = vmatpush.msra.mxu0 0.0
    %388 = vmatpush.msra.mxu0 0.0
    %389 = vmatpush.msra.mxu0 0.0
    %390 = vmatpush.msra.mxu0 %v369
    %391 = vmatpush.msra.mxu0 %v368
    %392 = vmatpush.msra.mxu0 %v367
    %393 = vmatpush.msra.mxu0 %v366
    %394 = vmatmul.f32.gmra.mxu0 %v373
    %v395 = vpop.f32.mrf.mxu0
    %v396 = vadd.f32 %v371, %v395
    %397 = vmatmul.f32.gmra.mxu0 %v376
    %v398 = vpop.f32.mrf.mxu0
    %v399 = vadd.f32 %v371, %v398
    %400 = vdwg.mxu0
    %v401 = vld [vmem:[#allocation2 + $0x150] sm:$0x1]
    %v402 = vld [vmem:[#allocation2 + $0x158] sm:$0x1]
    %v403 = vadd.f32 %v97, %v396
    %v404 = vadd.f32 %v100, %v399
    %v405 = vmul.f32 %v403, %v403
    %v406 = vmul.f32 %v404, %v404
    %v407 = vsel %vm108, %v403, 0.0
    %408 = vadd.xlane.f32.xlu0 %v407
    %v409 = vpop.xlane.xlu0 %408
    %v410 = vsel %vm108, %v404, 0.0
    %411 = vadd.xlane.f32.xlu0 %v410
    %v412 = vpop.xlane.xlu0 %411
    %v413 = vsel %vm108, %v405, 0.0
    %414 = vadd.xlane.f32.xlu0 %v413
    %v415 = vpop.xlane.xlu0 %414
    %v416 = vsel %vm108, %v406, 0.0
    %417 = vadd.xlane.f32.xlu0 %v416
    %v418 = vpop.xlane.xlu0 %417
    %v419 = vmul.f32 %v409, 0.03125
    %v420 = vmul.f32 %v412, 0.03125
    %v421 = vmul.f32 %v415, 0.03125
    %v422 = vmul.f32 %v418, 0.03125
    %v423 = vmul.f32 %v419, %v419
    %v424 = vmul.f32 %v420, %v420
    %v425 = vsub.f32 %v421, %v423
    %v426 = vsub.f32 %v422, %v424
    %v427 = vsub.f32 %v403, %v419
    %v428 = vsub.f32 %v404, %v420
    %v429 = vadd.f32 %v425, 1e-05
    %v430 = vadd.f32 %v426, 1e-05
    %v431 = vrsqrt.pop %v429
    %v432 = vmul.f32 %v431, %v429
    %v433 = vmul.f32 %v432, %v431
    %v434 = vmul.f32 0.5, %v433
    %v435 = vsub.f32 1.5, %v434
    %v436 = vmul.f32 %v431, %v435
    %vm437 = vweird.f32 %v429
    %vm438 = vweird.f32 %v431
    %vm439 = vmor %vm437, %vm438
    %v440 = vsel %vm439, %v431, %v436
    %v441 = vrsqrt.pop %v430
    %v442 = vmul.f32 %v441, %v430
    %v443 = vmul.f32 %v442, %v441
    %v444 = vmul.f32 0.5, %v443
    %v445 = vsub.f32 1.5, %v444
    %v446 = vmul.f32 %v441, %v445
    %vm447 = vweird.f32 %v430
    %vm448 = vweird.f32 %v441
    %vm449 = vmor %vm447, %vm448
    %v450 = vsel %vm449, %v441, %v446
    %v451 = vmul.f32 %v427, %v440
    %v452 = vmul.f32 %v428, %v450
    %v453 = vperm.slane %v401, 0
    %v454 = vmul.f32 %v451, %v453
    %v455 = vmul.f32 %v452, %v453
    %v456 = vperm.slane %v402, 0
    %v457 = vadd.f32 %v454, %v456
    %v458 = vadd.f32 %v455, %v456
    %v459 = vld [vmem:[#allocation2 + $0x160] sm:$0xff]
    %v460 = vld [vmem:[#allocation2 + $0x168] sm:$0xff]
    %v461 = vld [vmem:[#allocation2 + $0x170] sm:$0xff]
    %v462 = vld [vmem:[#allocation2 + $0x178] sm:$0xff]
    %v463 = vld [vmem:[#allocation2 + $0x180] sm:$0x1]
    %v464 = vperm.slane %v463, 0
    %v466 = vsel %vm108, %v457, 0
    %v469 = vsel %vm108, %v458, 0
    %471 = vmatpush.msra.mxu0 0.0
    %472 = vmatpush.msra.mxu0 0.0
    %473 = vmatpush.msra.mxu0 0.0
    %474 = vmatpush.msra.mxu0 0.0
    %475 = vmatpush.msra.mxu0 0.0
    %476 = vmatpush.msra.mxu0 0.0
    %477 = vmatpush.msra.mxu0 0.0
    %478 = vmatpush.msra.mxu0 0.0
    %479 = vmatpush.msra.mxu0 0.0
    %480 = vmatpush.msra.mxu0 0.0
    %481 = vmatpush.msra.mxu0 0.0
    %482 = vmatpush.msra.mxu0 0.0
    %483 = vmatpush.msra.mxu0 %v462
    %484 = vmatpush.msra.mxu0 %v461
    %485 = vmatpush.msra.mxu0 %v460
    %486 = vmatpush.msra.mxu0 %v459
    %487 = vmatmul.f32.gmra.mxu0 %v466
    %v488 = vpop.f32.mrf.mxu0
    %v489 = vadd.f32 %v464, %v488
    %490 = vmatmul.f32.gmra.mxu0 %v469
    %v491 = vpop.f32.mrf.mxu0
    %v492 = vadd.f32 %v464, %v491
    %493 = vdwg.mxu0
    %v494 = vmax.f32 %v489, 0.0
    %v495 = vmax.f32 %v492, 0.0
    %v496 = vld [vmem:[#allocation2 + $0x188] sm:$0xff]
    %v497 = vld [vmem:[#allocation2 + $0x190] sm:$0xff]
    %v498 = vld [vmem:[#allocation2 + $0x198] sm:$0xff]
    %v499 = vld [vmem:[#allocation2 + $0x1a0] sm:$0xff]
    %v500 = vld [vmem:[#allocation2 + $0x1a8] sm:$0xff]
    %v501 = vld [vmem:[#allocation2 + $0x1b0] sm:$0xff]
    %v502 = vld [vmem:[#allocation2 + $0x1b8] sm:$0xff]
    %v503 = vld [vmem:[#allocation2 + $0x1c0] sm:$0xff]
    %v504 = vld [vmem:[#allocation2 + $0x1c8] sm:$0x1]
    %v505 = vperm.slane %v504, 0
    %v507 = vsel %vm265, %v494, 0
    %v510 = vsel %vm265, %v495, 0
    %512 = vmatpush.msra.mxu0 0.0
    %513 = vmatpush.msra.mxu0 0.0
    %514 = vmatpush.msra.mxu0 0.0
    %515 = vmatpush.msra.mxu0 0.0
    %516 = vmatpush.msra.mxu0 0.0
    %517 = vmatpush.msra.mxu0 0.0
    %518 = vmatpush.msra.mxu0 0.0
    %519 = vmatpush.msra.mxu0 0.0
    %520 = vmatpush.msra.mxu0 %v503
    %521 = vmatpush.msra.mxu0 %v502
    %522 = vmatpush.msra.mxu0 %v501
    %523 = vmatpush.msra.mxu0 %v500
    %524 = vmatpush.msra.mxu0 %v499
    %525 = vmatpush.msra.mxu0 %v498
    %526 = vmatpush.msra.mxu0 %v497
    %527 = vmatpush.msra.mxu0 %v496
    %528 = vmatmul.f32.gmra.mxu0 %v507
    %v529 = vpop.f32.mrf.mxu0
    %v530 = vadd.f32 %v505, %v529
    %531 = vmatmul.f32.gmra.mxu0 %v510
    %v532 = vpop.f32.mrf.mxu0
    %v533 = vadd.f32 %v505, %v532
    %534 = vdwg.mxu0
    %v535 = vld [vmem:[#allocation2 + $0x1d0] sm:$0x1]
    %v536 = vld [vmem:[#allocation2 + $0x1d8] sm:$0x1]
    %v537 = vadd.f32 %v457, %v530
    %v538 = vadd.f32 %v458, %v533
    %v539 = vmul.f32 %v537, %v537
    %v540 = vmul.f32 %v538, %v538
    %v541 = vsel %vm108, %v537, 0.0
    %542 = vadd.xlane.f32.xlu0 %v541
    %v543 = vpop.xlane.xlu0 %542
    %v544 = vsel %vm108, %v538, 0.0
    %545 = vadd.xlane.f32.xlu0 %v544
    %v546 = vpop.xlane.xlu0 %545
    %v547 = vsel %vm108, %v539, 0.0
    %548 = vadd.xlane.f32.xlu0 %v547
    %v549 = vpop.xlane.xlu0 %548
    %v550 = vsel %vm108, %v540, 0.0
    %551 = vadd.xlane.f32.xlu0 %v550
    %v552 = vpop.xlane.xlu0 %551
    %v553 = vmul.f32 %v543, 0.03125
    %v554 = vmul.f32 %v546, 0.03125
    %v555 = vmul.f32 %v549, 0.03125
    %v556 = vmul.f32 %v552, 0.03125
    %v557 = vmul.f32 %v553, %v553
    %v558 = vmul.f32 %v554, %v554
    %v559 = vsub.f32 %v555, %v557
    %v560 = vsub.f32 %v556, %v558
    %v561 = vsub.f32 %v537, %v553
    %v562 = vsub.f32 %v538, %v554
    %v563 = vadd.f32 %v559, 1e-05
    %v564 = vadd.f32 %v560, 1e-05
    %v565 = vrsqrt.pop %v563
    %v566 = vmul.f32 %v565, %v563
    %v567 = vmul.f32 %v566, %v565
    %v568 = vmul.f32 0.5, %v567
    %v569 = vsub.f32 1.5, %v568
    %v570 = vmul.f32 %v565, %v569
    %vm571 = vweird.f32 %v563
    %vm572 = vweird.f32 %v565
    %vm573 = vmor %vm571, %vm572
    %v574 = vsel %vm573, %v565, %v570
    %v575 = vrsqrt.pop %v564
    %v576 = vmul.f32 %v575, %v564
    %v577 = vmul.f32 %v576, %v575
    %v578 = vmul.f32 0.5, %v577
    %v579 = vsub.f32 1.5, %v578
    %v580 = vmul.f32 %v575, %v579
    %vm581 = vweird.f32 %v564
    %vm582 = vweird.f32 %v575
    %vm583 = vmor %vm581, %vm582
    %v584 = vsel %vm583, %v575, %v580
    %v585 = vmul.f32 %v561, %v574
    %v586 = vmul.f32 %v562, %v584
    %v587 = vperm.slane %v535, 0
    %v588 = vmul.f32 %v585, %v587
    %v589 = vmul.f32 %v586, %v587
    %v590 = vperm.slane %v536, 0
    %v591 = vadd.f32 %v588, %v590
    %v592 = vadd.f32 %v589, %v590
    %v593 = vld [vmem:[#allocation2 + $0x1e0] sm:$0xff]
    %v594 = vld [vmem:[#allocation2 + $0x1e8] sm:$0xff]
    %v595 = vld [vmem:[#allocation2 + $0x1f0] sm:$0xff]
    %v596 = vld [vmem:[#allocation2 + $0x1f8] sm:$0xff]
    %v597 = vld [vmem:[#allocation2 + $0x200] sm:$0x1]
    %v598 = vperm.slane %v597, 0
    %v600 = vsel %vm108, %v591, 0
    %v603 = vsel %vm108, %v592, 0
    %605 = vmatpush.msra.mxu0 0.0
    %606 = vmatpush.msra.mxu0 0.0
    %607 = vmatpush.msra.mxu0 0.0
    %608 = vmatpush.msra.mxu0 0.0
    %609 = vmatpush.msra.mxu0 0.0
    %610 = vmatpush.msra.mxu0 0.0
    %611 = vmatpush.msra.mxu0 0.0
    %612 = vmatpush.msra.mxu0 0.0
    %613 = vmatpush.msra.mxu0 0.0
    %614 = vmatpush.msra.mxu0 0.0
    %615 = vmatpush.msra.mxu0 0.0
    %616 = vmatpush.msra.mxu0 0.0
    %617 = vmatpush.msra.mxu0 %v596
    %618 = vmatpush.msra.mxu0 %v595
    %619 = vmatpush.msra.mxu0 %v594
    %620 = vmatpush.msra.mxu0 %v593
    %621 = vmatmul.f32.gmra.mxu0 %v600
    %v622 = vpop.f32.mrf.mxu0
    %v623 = vadd.f32 %v598, %v622
    %624 = vmatmul.f32.gmra.mxu0 %v603
    %v625 = vpop.f32.mrf.mxu0
    %v626 = vadd.f32 %v598, %v625
    %627 = vdwg.mxu0
    %v628 = vld [vmem:[#allocation2 + $0x208] sm:$0xff]
    %v629 = vld [vmem:[#allocation2 + $0x210] sm:$0xff]
    %v630 = vld [vmem:[#allocation2 + $0x218] sm:$0xff]
    %v631 = vld [vmem:[#allocation2 + $0x220] sm:$0xff]
    %v632 = vld [vmem:[#allocation2 + $0x228] sm:$0x1]
    %v633 = vperm.slane %v632, 0
    %634 = vmatpush.msra.mxu0 0.0
    %635 = vmatpush.msra.mxu0 0.0
    %636 = vmatpush.msra.mxu0 0.0
    %637 = vmatpush.msra.mxu0 0.0
    %638 = vmatpush.msra.mxu0 0.0
    %639 = vmatpush.msra.mxu0 0.0
    %640 = vmatpush.msra.mxu0 0.0
    %641 = vmatpush.msra.mxu0 0.0
    %642 = vmatpush.msra.mxu0 0.0
    %643 = vmatpush.msra.mxu0 0.0
    %644 = vmatpush.msra.mxu0 0.0
    %645 = vmatpush.msra.mxu0 0.0
    %646 = vmatpush.msra.mxu0 %v631
    %647 = vmatpush.msra.mxu0 %v630
    %648 = vmatpush.msra.mxu0 %v629
    %649 = vmatpush.msra.mxu0 %v628
    %650 = vmatmul.f32.gmra.mxu0 %v600
    %v651 = vpop.f32.mrf.mxu0
    %v652 = vadd.f32 %v633, %v651
    %653 = vmatmul.f32.gmra.mxu0 %v603
    %v654 = vpop.f32.mrf.mxu0
    %v655 = vadd.f32 %v633, %v654
    %656 = vdwg.mxu0
    %v657 = vld [vmem:[#allocation2 + $0x230] sm:$0xff]
    %v658 = vld [vmem:[#allocation2 + $0x238] sm:$0xff]
    %v659 = vld [vmem:[#allocation2 + $0x240] sm:$0xff]
    %v660 = vld [vmem:[#allocation2 + $0x248] sm:$0xff]
    %v661 = vld [vmem:[#allocation2 + $0x250] sm:$0x1]
    %v662 = vperm.slane %v661, 0
    %663 = vmatpush.msra.mxu0 0.0
    %664 = vmatpush.msra.mxu0 0.0
    %665 = vmatpush.msra.mxu0 0.0
    %666 = vmatpush.msra.mxu0 0.0
    %667 = vmatpush.msra.mxu0 0.0
    %668 = vmatpush.msra.mxu0 0.0
    %669 = vmatpush.msra.mxu0 0.0
    %670 = vmatpush.msra.mxu0 0.0
    %671 = vmatpush.msra.mxu0 0.0
    %672 = vmatpush.msra.mxu0 0.0
    %673 = vmatpush.msra.mxu0 0.0
    %674 = vmatpush.msra.mxu0 0.0
    %675 = vmatpush.msra.mxu0 %v660
    %676 = vmatpush.msra.mxu0 %v659
    %677 = vmatpush.msra.mxu0 %v658
    %678 = vmatpush.msra.mxu0 %v657
    %679 = vmatmul.f32.gmra.mxu0 %v600
    %v680 = vpop.f32.mrf.mxu0
    %v681 = vadd.f32 %v662, %v680
    %682 = vmatmul.f32.gmra.mxu0 %v603
    %v683 = vpop.f32.mrf.mxu0
    %v684 = vadd.f32 %v662, %v683
    %685 = vdwg.mxu0
    %v686 = vmul.f32 %v652, %v50
    %v687 = vmul.f32 %v655, %v50
    %v688 = vmul.f32 %v652, %v54
    %v689 = vmul.f32 %v655, %v54
    %v690 = vmul.f32 %v652, %v58
    %v691 = vmul.f32 %v655, %v58
    %v692 = vmul.f32 %v652, %v62
    %v693 = vmul.f32 %v655, %v62
    %v694 = vmul.f32 %v681, %v50
    %v695 = vmul.f32 %v684, %v50
    %v696 = vmul.f32 %v681, %v54
    %v697 = vmul.f32 %v684, %v54
    %v698 = vmul.f32 %v681, %v58
    %v699 = vmul.f32 %v684, %v58
    %v700 = vmul.f32 %v681, %v62
    %v701 = vmul.f32 %v684, %v62
    %v703 = vsel %vm108, %v623, 0
    %v706 = vsel %vm108, %v626, 0
    %v709 = vsel %vm108, %v686, 0
    %v712 = vsel %vm108, %v687, 0
    %v715 = vsel %vm108, %v688, 0
    %v718 = vsel %vm108, %v689, 0
    %v721 = vsel %vm108, %v690, 0
    %v724 = vsel %vm108, %v691, 0
    %v727 = vsel %vm108, %v692, 0
    %v730 = vsel %vm108, %v693, 0
    %732 = vmatpush.xpose.msra.mxu0 0.0
    %733 = vmatpush.xpose.msra.mxu0 0.0
    %734 = vmatpush.xpose.msra.mxu0 0.0
    %735 = vmatpush.xpose.msra.mxu0 0.0
    %736 = vmatpush.xpose.msra.mxu0 0.0
    %737 = vmatpush.xpose.msra.mxu0 0.0
    %738 = vmatpush.xpose.msra.mxu0 0.0
    %739 = vmatpush.xpose.msra.mxu0 0.0
    %740 = vmatpush.xpose.msra.mxu0 %v730
    %741 = vmatpush.xpose.msra.mxu0 %v727
    %742 = vmatpush.xpose.msra.mxu0 %v724
    %743 = vmatpush.xpose.msra.mxu0 %v721
    %744 = vmatpush.xpose.msra.mxu0 %v718
    %745 = vmatpush.xpose.msra.mxu0 %v715
    %746 = vmatpush.xpose.msra.mxu0 %v712
    %747 = vmatpush.xpose.msra.mxu0 %v709
    %748 = vmatmul.f32.gmra.mxu0 %v703
    %v749 = vpop.f32.mrf.mxu0
    %v750 = vadd.f32 %v27, %v749
    %751 = vmatmul.f32.gmra.mxu0 %v706
    %v752 = vpop.f32.mrf.mxu0
    %v753 = vadd.f32 %v28, %v752
    %754 = vdwg.mxu0
    %v755 = vsel %vm265, %v750, -inf
    %756 = vmax.xlane.f32.xlu0 %v755
    %v757 = vpop.xlane.xlu0 %756
    %v758 = vsel %vm265, %v753, -inf
    %759 = vmax.xlane.f32.xlu0 %v758
    %v760 = vpop.xlane.xlu0 %759
    %v761 = vsub.f32 %v750, %v757
    %v762 = vsub.f32 %v753, %v760
    %v763 = vmul.f32 %v761, 1.442695
    %v764 = vpow.pop %v763
    %v765 = vmul.f32 %v762, 1.442695
    %v766 = vpow.pop %v765
    %v768 = vsel %vm265, %v764, 0
    %v771 = vsel %vm265, %v766, 0
    %773 = vmatpush.msra.mxu0 0.0
    %774 = vmatpush.msra.mxu0 0.0
    %775 = vmatpush.msra.mxu0 0.0
    %776 = vmatpush.msra.mxu0 0.0
    %777 = vmatpush.msra.mxu0 0.0
    %778 = vmatpush.msra.mxu0 0.0
    %779 = vmatpush.msra.mxu0 0.0
    %780 = vmatpush.msra.mxu0 0.0
    %781 = vmatpush.msra.mxu0 %v38
    %782 = vmatpush.msra.mxu0 %v37
    %783 = vmatpush.msra.mxu0 %v36
    %784 = vmatpush.msra.mxu0 %v35
    %785 = vmatpush.msra.mxu0 %v34
    %786 = vmatpush.msra.mxu0 %v33
    %787 = vmatpush.msra.mxu0 %v32
    %788 = vmatpush.msra.mxu0 %v31
    %789 = vmatmul.f32.gmra.mxu0 %v768
    %v790 = vpop.f32.mrf.mxu0
    %v791 = vadd.f32 0.0, %v790
    %792 = vmatmul.f32.gmra.mxu0 %v771
    %v793 = vpop.f32.mrf.mxu0
    %v794 = vadd.f32 0.0, %v793
    %795 = vdwg.mxu0
    %v796 = vrcp.pop %v791
    %v797 = vmul.f32 %v791, %v796
    %v798 = vsub.f32 1.0, %v797
    %v799 = vmul.f32 %v796, %v798
    %v800 = vadd.f32 %v796, %v799
    %vm801 = vweird.f32 %v791
    %vm802 = vweird.f32 %v796
    %vm803 = vmor %vm801, %vm802
    %v804 = vsel %vm803, %v796, %v800
    %v805 = vand.u32 2147483647, %v791
    %vm806 = vcmp.eq.f32.partialorder %v805, 8.507059e+37
    %v807 = vand.u32 %v791, 2147483648
    %v808 = vor.u32 1.1754944e-38, %v807
    %v809 = vsel %vm806, %v808, %v804
    %v810 = vmul.f32 %v764, %v809
    %v811 = vrcp.pop %v794
    %v812 = vmul.f32 %v794, %v811
    %v813 = vsub.f32 1.0, %v812
    %v814 = vmul.f32 %v811, %v813
    %v815 = vadd.f32 %v811, %v814
    %vm816 = vweird.f32 %v794
    %vm817 = vweird.f32 %v811
    %vm818 = vmor %vm816, %vm817
    %v819 = vsel %vm818, %v811, %v815
    %v820 = vand.u32 2147483647, %v794
    %vm821 = vcmp.eq.f32.partialorder %v820, 8.507059e+37
    %v822 = vand.u32 %v794, 2147483648
    %v823 = vor.u32 1.1754944e-38, %v822
    %v824 = vsel %vm821, %v823, %v819
    %v825 = vmul.f32 %v766, %v824
    %v827 = vsel %vm265, %v810, 0
    %v830 = vsel %vm265, %v825, 0
    %832 = vmatpush.msra.mxu0 0.0
    %833 = vmatpush.msra.mxu0 0.0
    %834 = vmatpush.msra.mxu0 0.0
    %835 = vmatpush.msra.mxu0 0.0
    %836 = vmatpush.msra.mxu0 0.0
    %837 = vmatpush.msra.mxu0 0.0
    %838 = vmatpush.msra.mxu0 0.0
    %839 = vmatpush.msra.mxu0 0.0
    %840 = vmatpush.msra.mxu0 %v701
    %841 = vmatpush.msra.mxu0 %v700
    %842 = vmatpush.msra.mxu0 %v699
    %843 = vmatpush.msra.mxu0 %v698
    %844 = vmatpush.msra.mxu0 %v697
    %845 = vmatpush.msra.mxu0 %v696
    %846 = vmatpush.msra.mxu0 %v695
    %847 = vmatpush.msra.mxu0 %v694
    %848 = vmatmul.f32.gmra.mxu0 %v827
    %v849 = vpop.f32.mrf.mxu0
    %v850 = vadd.f32 0.0, %v849
    %851 = vmatmul.f32.gmra.mxu0 %v830
    %v852 = vpop.f32.mrf.mxu0
    %v853 = vadd.f32 0.0, %v852
    %854 = vdwg.mxu0
    %v855 = vld [vmem:[#allocation2 + $0x258] sm:$0xff]
    %v856 = vld [vmem:[#allocation2 + $0x260] sm:$0xff]
    %v857 = vld [vmem:[#allocation2 + $0x268] sm:$0xff]
    %v858 = vld [vmem:[#allocation2 + $0x270] sm:$0xff]
    %v859 = vld [vmem:[#allocation2 + $0x278] sm:$0x1]
    %v860 = vperm.slane %v859, 0
    %v862 = vsel %vm108, %v850, 0
    %v865 = vsel %vm108, %v853, 0
    %867 = vmatpush.msra.mxu0 0.0
    %868 = vmatpush.msra.mxu0 0.0
    %869 = vmatpush.msra.mxu0 0.0
    %870 = vmatpush.msra.mxu0 0.0
    %871 = vmatpush.msra.mxu0 0.0
    %872 = vmatpush.msra.mxu0 0.0
    %873 = vmatpush.msra.mxu0 0.0
    %874 = vmatpush.msra.mxu0 0.0
    %875 = vmatpush.msra.mxu0 0.0
    %876 = vmatpush.msra.mxu0 0.0
    %877 = vmatpush.msra.mxu0 0.0
    %878 = vmatpush.msra.mxu0 0.0
    %879 = vmatpush.msra.mxu0 %v858
    %880 = vmatpush.msra.mxu0 %v857
    %881 = vmatpush.msra.mxu0 %v856
    %882 = vmatpush.msra.mxu0 %v855
    %883 = vmatmul.f32.gmra.mxu0 %v862
    %v884 = vpop.f32.mrf.mxu0
    %v885 = vadd.f32 %v860, %v884
    %886 = vmatmul.f32.gmra.mxu0 %v865
    %v887 = vpop.f32.mrf.mxu0
    %v888 = vadd.f32 %v860, %v887
    %889 = vdwg.mxu0
    %v890 = vld [vmem:[#allocation2 + $0x280] sm:$0x1]
    %v891 = vld [vmem:[#allocation2 + $0x288] sm:$0x1]
    %v892 = vadd.f32 %v591, %v885
    %v893 = vadd.f32 %v592, %v888
    %v894 = vmul.f32 %v892, %v892
    %v895 = vmul.f32 %v893, %v893
    %v896 = vsel %vm108, %v892, 0.0
    %897 = vadd.xlane.f32.xlu0 %v896
    %v898 = vpop.xlane.xlu0 %897
    %v899 = vsel %vm108, %v893, 0.0
    %900 = vadd.xlane.f32.xlu0 %v899
    %v901 = vpop.xlane.xlu0 %900
    %v902 = vsel %vm108, %v894, 0.0
    %903 = vadd.xlane.f32.xlu0 %v902
    %v904 = vpop.xlane.xlu0 %903
    %v905 = vsel %vm108, %v895, 0.0
    %906 = vadd.xlane.f32.xlu0 %v905
    %v907 = vpop.xlane.xlu0 %906
    %v908 = vmul.f32 %v898, 0.03125
    %v909 = vmul.f32 %v901, 0.03125
    %v910 = vmul.f32 %v904, 0.03125
    %v911 = vmul.f32 %v907, 0.03125
    %v912 = vmul.f32 %v908, %v908
    %v913 = vmul.f32 %v909, %v909
    %v914 = vsub.f32 %v910, %v912
    %v915 = vsub.f32 %v911, %v913
    %v916 = vsub.f32 %v892, %v908
    %v917 = vsub.f32 %v893, %v909
    %v918 = vadd.f32 %v914, 1e-05
    %v919 = vadd.f32 %v915, 1e-05
    %v920 = vrsqrt.pop %v918
    %v921 = vmul.f32 %v920, %v918
    %v922 = vmul.f32 %v921, %v920
    %v923 = vmul.f32 0.5, %v922
    %v924 = vsub.f32 1.5, %v923
    %v925 = vmul.f32 %v920, %v924
    %vm926 = vweird.f32 %v918
    %vm927 = vweird.f32 %v920
    %vm928 = vmor %vm926, %vm927
    %v929 = vsel %vm928, %v920, %v925
    %v930 = vrsqrt.pop %v919
    %v931 = vmul.f32 %v930, %v919
    %v932 = vmul.f32 %v931, %v930
    %v933 = vmul.f32 0.5, %v932
    %v934 = vsub.f32 1.5, %v933
    %v935 = vmul.f32 %v930, %v934
    %vm936 = vweird.f32 %v919
    %vm937 = vweird.f32 %v930
    %vm938 = vmor %vm936, %vm937
    %v939 = vsel %vm938, %v930, %v935
    %v940 = vmul.f32 %v916, %v929
    %v941 = vmul.f32 %v917, %v939
    %v942 = vperm.slane %v890, 0
    %v943 = vmul.f32 %v940, %v942
    %v944 = vmul.f32 %v941, %v942
    %v945 = vperm.slane %v891, 0
    %v946 = vadd.f32 %v943, %v945
    %v947 = vadd.f32 %v944, %v945
    %v948 = vld [vmem:[#allocation2 + $0x290] sm:$0xff]
    %v949 = vld [vmem:[#allocation2 + $0x298] sm:$0xff]
    %v950 = vld [vmem:[#allocation2 + $0x2a0] sm:$0xff]
    %v951 = vld [vmem:[#allocation2 + $0x2a8] sm:$0xff]
    %v952 = vld [vmem:[#allocation2 + $0x2b0] sm:$0x1]
    %v953 = vperm.slane %v952, 0
    %v955 = vsel %vm108, %v946, 0
    %v958 = vsel %vm108, %v947, 0
    %960 = vmatpush.msra.mxu0 0.0
    %961 = vmatpush.msra.mxu0 0.0
    %962 = vmatpush.msra.mxu0 0.0
    %963 = vmatpush.msra.mxu0 0.0
    %964 = vmatpush.msra.mxu0 0.0
    %965 = vmatpush.msra.mxu0 0.0
    %966 = vmatpush.msra.mxu0 0.0
    %967 = vmatpush.msra.mxu0 0.0
    %968 = vmatpush.msra.mxu0 0.0
    %969 = vmatpush.msra.mxu0 0.0
    %970 = vmatpush.msra.mxu0 0.0
    %971 = vmatpush.msra.mxu0 0.0
    %972 = vmatpush.msra.mxu0 %v951
    %973 = vmatpush.msra.mxu0 %v950
    %974 = vmatpush.msra.mxu0 %v949
    %975 = vmatpush.msra.mxu0 %v948
    %976 = vmatmul.f32.gmra.mxu0 %v955
    %v977 = vpop.f32.mrf.mxu0
    %v978 = vadd.f32 %v953, %v977
    %979 = vmatmul.f32.gmra.mxu0 %v958
    %v980 = vpop.f32.mrf.mxu0
    %v981 = vadd.f32 %v953, %v980
    %982 = vdwg.mxu0
    %v983 = vmax.f32 %v978, 0.0
    %v984 = vmax.f32 %v981, 0.0
    %v985 = vld [vmem:[#allocation2 + $0x2b8] sm:$0xff]
    %v986 = vld [vmem:[#allocation2 + $0x2c0] sm:$0xff]
    %v987 = vld [vmem:[#allocation2 + $0x2c8] sm:$0xff]
    %v988 = vld [vmem:[#allocation2 + $0x2d0] sm:$0xff]
    %v989 = vld [vmem:[#allocation2 + $0x2d8] sm:$0xff]
    %v990 = vld [vmem:[#allocation2 + $0x2e0] sm:$0xff]
    %v991 = vld [vmem:[#allocation2 + $0x2e8] sm:$0xff]
    %v992 = vld [vmem:[#allocation2 + $0x2f0] sm:$0xff]
    %v993 = vld [vmem:[#allocation2 + $0x2f8] sm:$0x1]
    %v994 = vperm.slane %v993, 0
    %v996 = vsel %vm265, %v983, 0
    %v999 = vsel %vm265, %v984, 0
    %1001 = vmatpush.msra.mxu0 0.0
    %1002 = vmatpush.msra.mxu0 0.0
    %1003 = vmatpush.msra.mxu0 0.0
    %1004 = vmatpush.msra.mxu0 0.0
    %1005 = vmatpush.msra.mxu0 0.0
    %1006 = vmatpush.msra.mxu0 0.0
    %1007 = vmatpush.msra.mxu0 0.0
    %1008 = vmatpush.msra.mxu0 0.0
    %1009 = vmatpush.msra.mxu0 %v992
    %1010 = vmatpush.msra.mxu0 %v991
    %1011 = vmatpush.msra.mxu0 %v990
    %1012 = vmatpush.msra.mxu0 %v989
    %1013 = vmatpush.msra.mxu0 %v988
    %1014 = vmatpush.msra.mxu0 %v987
    %1015 = vmatpush.msra.mxu0 %v986
    %1016 = vmatpush.msra.mxu0 %v985
    %1017 = vmatmul.f32.gmra.mxu0 %v996
    %v1018 = vpop.f32.mrf.mxu0
    %v1019 = vadd.f32 %v994, %v1018
    %1020 = vmatmul.f32.gmra.mxu0 %v999
    %v1021 = vpop.f32.mrf.mxu0
    %v1022 = vadd.f32 %v994, %v1021
    %1023 = vdwg.mxu0
    %v1024 = vld [vmem:[#allocation2 + $0x300] sm:$0x1]
    %v1025 = vld [vmem:[#allocation2 + $0x308] sm:$0x1]
    %v1026 = vadd.f32 %v946, %v1019
    %v1027 = vadd.f32 %v947, %v1022
    %v1028 = vmul.f32 %v1026, %v1026
    %v1029 = vmul.f32 %v1027, %v1027
    %v1030 = vsel %vm108, %v1026, 0.0
    %1031 = vadd.xlane.f32.xlu0 %v1030
    %v1032 = vpop.xlane.xlu0 %1031
    %v1033 = vsel %vm108, %v1027, 0.0
    %1034 = vadd.xlane.f32.xlu0 %v1033
    %v1035 = vpop.xlane.xlu0 %1034
    %v1036 = vsel %vm108, %v1028, 0.0
    %1037 = vadd.xlane.f32.xlu0 %v1036
    %v1038 = vpop.xlane.xlu0 %1037
    %v1039 = vsel %vm108, %v1029, 0.0
    %1040 = vadd.xlane.f32.xlu0 %v1039
    %v1041 = vpop.xlane.xlu0 %1040
    %v1042 = vmul.f32 %v1032, 0.03125
    %v1043 = vmul.f32 %v1035, 0.03125
    %v1044 = vmul.f32 %v1038, 0.03125
    %v1045 = vmul.f32 %v1041, 0.03125
    %v1046 = vmul.f32 %v1042, %v1042
    %v1047 = vmul.f32 %v1043, %v1043
    %v1048 = vsub.f32 %v1044, %v1046
    %v1049 = vsub.f32 %v1045, %v1047
    %v1050 = vsub.f32 %v1026, %v1042
    %v1051 = vsub.f32 %v1027, %v1043
    %v1052 = vadd.f32 %v1048, 1e-05
    %v1053 = vadd.f32 %v1049, 1e-05
    %v1054 = vrsqrt.pop %v1052
    %v1055 = vmul.f32 %v1054, %v1052
    %v1056 = vmul.f32 %v1055, %v1054
    %v1057 = vmul.f32 0.5, %v1056
    %v1058 = vsub.f32 1.5, %v1057
    %v1059 = vmul.f32 %v1054, %v1058
    %vm1060 = vweird.f32 %v1052
    %vm1061 = vweird.f32 %v1054
    %vm1062 = vmor %vm1060, %vm1061
    %v1063 = vsel %vm1062, %v1054, %v1059
    %v1064 = vrsqrt.pop %v1053
    %v1065 = vmul.f32 %v1064, %v1053
    %v1066 = vmul.f32 %v1065, %v1064
    %v1067 = vmul.f32 0.5, %v1066
    %v1068 = vsub.f32 1.5, %v1067
    %v1069 = vmul.f32 %v1064, %v1068
    %vm1070 = vweird.f32 %v1053
    %vm1071 = vweird.f32 %v1064
    %vm1072 = vmor %vm1070, %vm1071
    %v1073 = vsel %vm1072, %v1064, %v1069
    %v1074 = vmul.f32 %v1050, %v1063
    %v1075 = vmul.f32 %v1051, %v1073
    %v1076 = vperm.slane %v1024, 0
    %v1077 = vmul.f32 %v1074, %v1076
    %v1078 = vmul.f32 %v1075, %v1076
    %v1079 = vperm.slane %v1025, 0
    %v1080 = vadd.f32 %v1077, %v1079
    %v1081 = vadd.f32 %v1078, %v1079
    %v1082 = vld [vmem:[#allocation2 + $0x18] sm:$0xff]
    %v1083 = vld [vmem:[#allocation2 + $0x310] sm:$0xff]
    %v1084 = vld [vmem:[#allocation2 + $0x318] sm:$0xff]
    %v1085 = vld [vmem:[#allocation2 + $0x320] sm:$0xff]
    %v1086 = vld [vmem:[#allocation2 + $0x328] sm:$0xff]
    %v1087 = vld [vmem:[#allocation2 + $0x330] sm:$0x1]
    %v1088 = vperm.slane %v1087, 0
    %v1090 = vsel %vm108, %v1082, 0
    %1092 = vmatpush.msra.mxu0 0.0
    %1093 = vmatpush.msra.mxu0 0.0
    %1094 = vmatpush.msra.mxu0 0.0
    %1095 = vmatpush.msra.mxu0 0.0
    %1096 = vmatpush.msra.mxu0 0.0
    %1097 = vmatpush.msra.mxu0 0.0
    %1098 = vmatpush.msra.mxu0 0.0
    %1099 = vmatpush.msra.mxu0 0.0
    %1100 = vmatpush.msra.mxu0 0.0
    %1101 = vmatpush.msra.mxu0 0.0
    %1102 = vmatpush.msra.mxu0 0.0
    %1103 = vmatpush.msra.mxu0 0.0
    %1104 = vmatpush.msra.mxu0 %v1086
    %1105 = vmatpush.msra.mxu0 %v1085
    %1106 = vmatpush.msra.mxu0 %v1084
    %1107 = vmatpush.msra.mxu0 %v1083
    %1108 = vmatmul.f32.gmra.mxu0 %v1090
    %v1109 = vpop.f32.mrf.mxu0
    %v1110 = vadd.f32 %v1088, %v1109
    %1111 = vdwg.mxu0
    %v1112 = vld [vmem:[#allocation2 + $0x338] sm:$0xff]
    %v1113 = vld [vmem:[#allocation2 + $0x340] sm:$0xff]
    %v1114 = vld [vmem:[#allocation2 + $0x348] sm:$0xff]
    %v1115 = vld [vmem:[#allocation2 + $0x350] sm:$0xff]
    %v1116 = vld [vmem:[#allocation2 + $0x358] sm:$0x1]
    %v1117 = vperm.slane %v1116, 0
    %1118 = vmatpush.msra.mxu0 0.0
    %1119 = vmatpush.msra.mxu0 0.0
    %1120 = vmatpush.msra.mxu0 0.0
    %1121 = vmatpush.msra.mxu0 0.0
    %1122 = vmatpush.msra.mxu0 0.0
    %1123 = vmatpush.msra.mxu0 0.0
    %1124 = vmatpush.msra.mxu0 0.0
    %1125 = vmatpush.msra.mxu0 0.0
    %1126 = vmatpush.msra.mxu0 0.0
    %1127 = vmatpush.msra.mxu0 0.0
    %1128 = vmatpush.msra.mxu0 0.0
    %1129 = vmatpush.msra.mxu0 0.0
    %1130 = vmatpush.msra.mxu0 %v1115
    %1131 = vmatpush.msra.mxu0 %v1114
    %1132 = vmatpush.msra.mxu0 %v1113
    %1133 = vmatpush.msra.mxu0 %v1112
    %1134 = vmatmul.f32.gmra.mxu0 %v1090
    %v1135 = vpop.f32.mrf.mxu0
    %v1136 = vadd.f32 %v1117, %v1135
    %1137 = vdwg.mxu0
    %v1138 = vld [vmem:[#allocation2 + $0x360] sm:$0xff]
    %v1139 = vld [vmem:[#allocation2 + $0x368] sm:$0xff]
    %v1140 = vld [vmem:[#allocation2 + $0x370] sm:$0xff]
    %v1141 = vld [vmem:[#allocation2 + $0x378] sm:$0xff]
    %v1142 = vld [vmem:[#allocation2 + $0x380] sm:$0x1]
    %v1143 = vperm.slane %v1142, 0
    %1144 = vmatpush.msra.mxu0 0.0
    %1145 = vmatpush.msra.mxu0 0.0
    %1146 = vmatpush.msra.mxu0 0.0
    %1147 = vmatpush.msra.mxu0 0.0
    %1148 = vmatpush.msra.mxu0 0.0
    %1149 = vmatpush.msra.mxu0 0.0
    %1150 = vmatpush.msra.mxu0 0.0
    %1151 = vmatpush.msra.mxu0 0.0
    %1152 = vmatpush.msra.mxu0 0.0
    %1153 = vmatpush.msra.mxu0 0.0
    %1154 = vmatpush.msra.mxu0 0.0
    %1155 = vmatpush.msra.mxu0 0.0
    %1156 = vmatpush.msra.mxu0 %v1141
    %1157 = vmatpush.msra.mxu0 %v1140
    %1158 = vmatpush.msra.mxu0 %v1139
    %1159 = vmatpush.msra.mxu0 %v1138
    %1160 = vmatmul.f32.gmra.mxu0 %v1090
    %v1161 = vpop.f32.mrf.mxu0
    %v1162 = vadd.f32 %v1143, %v1161
    %1163 = vdwg.mxu0
    %v1164 = vmul.f32 %v1136, %v50
    %v1165 = vmul.f32 %v1136, %v54
    %v1166 = vmul.f32 %v1136, %v58
    %v1167 = vmul.f32 %v1136, %v62
    %v1168 = vmul.f32 %v1162, %v50
    %v1169 = vmul.f32 %v1162, %v54
    %v1170 = vmul.f32 %v1162, %v58
    %v1171 = vmul.f32 %v1162, %v62
    %v1173 = vsel %vm108, %v1110, 0
    %v1176 = vsel %vm108, %v1164, 0
    %v1179 = vsel %vm108, %v1165, 0
    %v1182 = vsel %vm108, %v1166, 0
    %v1185 = vsel %vm108, %v1167, 0
    %1187 = vmatpush.xpose.msra.mxu0 0.0
    %1188 = vmatpush.xpose.msra.mxu0 0.0
    %1189 = vmatpush.xpose.msra.mxu0 0.0
    %1190 = vmatpush.xpose.msra.mxu0 0.0
    %1191 = vmatpush.xpose.msra.mxu0 0.0
    %1192 = vmatpush.xpose.msra.mxu0 0.0
    %1193 = vmatpush.xpose.msra.mxu0 0.0
    %1194 = vmatpush.xpose.msra.mxu0 0.0
    %1195 = vmatpush.xpose.msra.mxu0 0.0
    %1196 = vmatpush.xpose.msra.mxu0 0.0
    %1197 = vmatpush.xpose.msra.mxu0 0.0
    %1198 = vmatpush.xpose.msra.mxu0 0.0
    %1199 = vmatpush.xpose.msra.mxu0 %v1185
    %1200 = vmatpush.xpose.msra.mxu0 %v1182
    %1201 = vmatpush.xpose.msra.mxu0 %v1179
    %1202 = vmatpush.xpose.msra.mxu0 %v1176
    %1203 = vmatmul.f32.gmra.mxu0 %v1173
    %v1204 = vpop.f32.mrf.mxu0
    %v1205 = vadd.f32 %v29, %v1204
    %1206 = vdwg.mxu0
    %v1207 = vsel %vm108, %v1205, -inf
    %1208 = vmax.xlane.f32.xlu0 %v1207
    %v1209 = vpop.xlane.xlu0 %1208
    %v1210 = vsub.f32 %v1205, %v1209
    %v1211 = vmul.f32 %v1210, 1.442695
    %v1212 = vpow.pop %v1211
    %v1214 = vsel %vm108, %v1212, 0
    %1216 = vmatpush.msra.mxu0 0.0
    %1217 = vmatpush.msra.mxu0 0.0
    %1218 = vmatpush.msra.mxu0 0.0
    %1219 = vmatpush.msra.mxu0 0.0
    %1220 = vmatpush.msra.mxu0 0.0
    %1221 = vmatpush.msra.mxu0 0.0
    %1222 = vmatpush.msra.mxu0 0.0
    %1223 = vmatpush.msra.mxu0 0.0
    %1224 = vmatpush.msra.mxu0 0.0
    %1225 = vmatpush.msra.mxu0 0.0
    %1226 = vmatpush.msra.mxu0 0.0
    %1227 = vmatpush.msra.mxu0 0.0
    %1228 = vmatpush.msra.mxu0 %v42
    %1229 = vmatpush.msra.mxu0 %v41
    %1230 = vmatpush.msra.mxu0 %v40
    %1231 = vmatpush.msra.mxu0 %v39
    %1232 = vmatmul.f32.gmra.mxu0 %v1214
    %v1233 = vpop.f32.mrf.mxu0
    %v1234 = vadd.f32 0.0, %v1233
    %1235 = vdwg.mxu0
    %v1236 = vrcp.pop %v1234
    %v1237 = vmul.f32 %v1234, %v1236
    %v1238 = vsub.f32 1.0, %v1237
    %v1239 = vmul.f32 %v1236, %v1238
    %v1240 = vadd.f32 %v1236, %v1239
    %vm1241 = vweird.f32 %v1234
    %vm1242 = vweird.f32 %v1236
    %vm1243 = vmor %vm1241, %vm1242
    %v1244 = vsel %vm1243, %v1236, %v1240
    %v1245 = vand.u32 2147483647, %v1234
    %vm1246 = vcmp.eq.f32.partialorder %v1245, 8.507059e+37
    %v1247 = vand.u32 %v1234, 2147483648
    %v1248 = vor.u32 1.1754944e-38, %v1247
    %v1249 = vsel %vm1246, %v1248, %v1244
    %v1250 = vmul.f32 %v1212, %v1249
    %v1252 = vsel %vm108, %v1250, 0
    %1254 = vmatpush.msra.mxu0 0.0
    %1255 = vmatpush.msra.mxu0 0.0
    %1256 = vmatpush.msra.mxu0 0.0
    %1257 = vmatpush.msra.mxu0 0.0
    %1258 = vmatpush.msra.mxu0 0.0
    %1259 = vmatpush.msra.mxu0 0.0
    %1260 = vmatpush.msra.mxu0 0.0
    %1261 = vmatpush.msra.mxu0 0.0
    %1262 = vmatpush.msra.mxu0 0.0
    %1263 = vmatpush.msra.mxu0 0.0
    %1264 = vmatpush.msra.mxu0 0.0
    %1265 = vmatpush.msra.mxu0 0.0
    %1266 = vmatpush.msra.mxu0 %v1171
    %1267 = vmatpush.msra.mxu0 %v1170
    %1268 = vmatpush.msra.mxu0 %v1169
    %1269 = vmatpush.msra.mxu0 %v1168
    %1270 = vmatmul.f32.gmra.mxu0 %v1252
    %v1271 = vpop.f32.mrf.mxu0
    %v1272 = vadd.f32 0.0, %v1271
    %1273 = vdwg.mxu0
    %v1274 = vld [vmem:[#allocation2 + $0x388] sm:$0xff]
    %v1275 = vld [vmem:[#allocation2 + $0x390] sm:$0xff]
    %v1276 = vld [vmem:[#allocation2 + $0x398] sm:$0xff]
    %v1277 = vld [vmem:[#allocation2 + $0x3a0] sm:$0xff]
    %v1278 = vld [vmem:[#allocation2 + $0x3a8] sm:$0x1]
    %v1279 = vperm.slane %v1278, 0
    %v1281 = vsel %vm108, %v1272, 0
    %1283 = vmatpush.msra.mxu0 0.0
    %1284 = vmatpush.msra.mxu0 0.0
    %1285 = vmatpush.msra.mxu0 0.0
    %1286 = vmatpush.msra.mxu0 0.0
    %1287 = vmatpush.msra.mxu0 0.0
    %1288 = vmatpush.msra.mxu0 0.0
    %1289 = vmatpush.msra.mxu0 0.0
    %1290 = vmatpush.msra.mxu0 0.0
    %1291 = vmatpush.msra.mxu0 0.0
    %1292 = vmatpush.msra.mxu0 0.0
    %1293 = vmatpush.msra.mxu0 0.0
    %1294 = vmatpush.msra.mxu0 0.0
    %1295 = vmatpush.msra.mxu0 %v1277
    %1296 = vmatpush.msra.mxu0 %v1276
    %1297 = vmatpush.msra.mxu0 %v1275
    %1298 = vmatpush.msra.mxu0 %v1274
    %1299 = vmatmul.f32.gmra.mxu0 %v1281
    %v1300 = vpop.f32.mrf.mxu0
    %v1301 = vadd.f32 %v1279, %v1300
    %1302 = vdwg.mxu0
    %v1303 = vld [vmem:[#allocation2 + $0x3b0] sm:$0x1]
    %v1304 = vld [vmem:[#allocation2 + $0x3b8] sm:$0x1]
    %v1305 = vadd.f32 %v1082, %v1301
    %v1306 = vmul.f32 %v1305, %v1305
    %v1307 = vsel %vm108, %v1305, 0.0
    %1308 = vadd.xlane.f32.xlu0 %v1307
    %v1309 = vpop.xlane.xlu0 %1308
    %v1310 = vsel %vm108, %v1306, 0.0
    %1311 = vadd.xlane.f32.xlu0 %v1310
    %v1312 = vpop.xlane.xlu0 %1311
    %v1313 = vmul.f32 %v1309, 0.03125
    %v1314 = vmul.f32 %v1312, 0.03125
    %v1315 = vmul.f32 %v1313, %v1313
    %v1316 = vsub.f32 %v1314, %v1315
    %v1317 = vsub.f32 %v1305, %v1313
    %v1318 = vadd.f32 %v1316, 1e-05
    %v1319 = vrsqrt.pop %v1318
    %v1320 = vmul.f32 %v1319, %v1318
    %v1321 = vmul.f32 %v1320, %v1319
    %v1322 = vmul.f32 0.5, %v1321
    %v1323 = vsub.f32 1.5, %v1322
    %v1324 = vmul.f32 %v1319, %v1323
    %vm1325 = vweird.f32 %v1318
    %vm1326 = vweird.f32 %v1319
    %vm1327 = vmor %vm1325, %vm1326
    %v1328 = vsel %vm1327, %v1319, %v1324
    %v1329 = vmul.f32 %v1317, %v1328
    %v1330 = vperm.slane %v1303, 0
    %v1331 = vmul.f32 %v1329, %v1330
    %v1332 = vperm.slane %v1304, 0
    %v1333 = vadd.f32 %v1331, %v1332
    %v1334 = vld [vmem:[#allocation2 + $0x3c0] sm:$0xff]
    %v1335 = vld [vmem:[#allocation2 + $0x3c8] sm:$0xff]
    %v1336 = vld [vmem:[#allocation2 + $0x3d0] sm:$0xff]
    %v1337 = vld [vmem:[#allocation2 + $0x3d8] sm:$0xff]
    %v1338 = vld [vmem:[#allocation2 + $0x3e0] sm:$0x1]
    %v1339 = vperm.slane %v1338, 0
    %v1341 = vsel %vm108, %v1333, 0
    %1343 = vmatpush.msra.mxu0 0.0
    %1344 = vmatpush.msra.mxu0 0.0
    %1345 = vmatpush.msra.mxu0 0.0
    %1346 = vmatpush.msra.mxu0 0.0
    %1347 = vmatpush.msra.mxu0 0.0
    %1348 = vmatpush.msra.mxu0 0.0
    %1349 = vmatpush.msra.mxu0 0.0
    %1350 = vmatpush.msra.mxu0 0.0
    %1351 = vmatpush.msra.mxu0 0.0
    %1352 = vmatpush.msra.mxu0 0.0
    %1353 = vmatpush.msra.mxu0 0.0
    %1354 = vmatpush.msra.mxu0 0.0
    %1355 = vmatpush.msra.mxu0 %v1337
    %1356 = vmatpush.msra.mxu0 %v1336
    %1357 = vmatpush.msra.mxu0 %v1335
    %1358 = vmatpush.msra.mxu0 %v1334
    %1359 = vmatmul.f32.gmra.mxu0 %v1341
    %v1360 = vpop.f32.mrf.mxu0
    %v1361 = vadd.f32 %v1339, %v1360
    %1362 = vdwg.mxu0
    %v1363 = vld [vmem:[#allocation2 + $0x3e8] sm:$0xff]
    %v1364 = vld [vmem:[#allocation2 + $0x3f0] sm:$0xff]
    %v1365 = vld [vmem:[#allocation2 + $0x3f8] sm:$0xff]
    %v1366 = vld [vmem:[#allocation2 + $0x400] sm:$0xff]
    %v1367 = vld [vmem:[#allocation2 + $0x408] sm:$0x1]
    %v1368 = vperm.slane %v1367, 0
    %v1370 = vsel %vm108, %v1080, 0
    %v1373 = vsel %vm108, %v1081, 0
    %1375 = vmatpush.msra.mxu0 0.0
    %1376 = vmatpush.msra.mxu0 0.0
    %1377 = vmatpush.msra.mxu0 0.0
    %1378 = vmatpush.msra.mxu0 0.0
    %1379 = vmatpush.msra.mxu0 0.0
    %1380 = vmatpush.msra.mxu0 0.0
    %1381 = vmatpush.msra.mxu0 0.0
    %1382 = vmatpush.msra.mxu0 0.0
    %1383 = vmatpush.msra.mxu0 0.0
    %1384 = vmatpush.msra.mxu0 0.0
    %1385 = vmatpush.msra.mxu0 0.0
    %1386 = vmatpush.msra.mxu0 0.0
    %1387 = vmatpush.msra.mxu0 %v1366
    %1388 = vmatpush.msra.mxu0 %v1365
    %1389 = vmatpush.msra.mxu0 %v1364
    %1390 = vmatpush.msra.mxu0 %v1363
    %1391 = vmatmul.f32.gmra.mxu0 %v1370
    %v1392 = vpop.f32.mrf.mxu0
    %v1393 = vadd.f32 %v1368, %v1392
    %1394 = vmatmul.f32.gmra.mxu0 %v1373
    %v1395 = vpop.f32.mrf.mxu0
    %v1396 = vadd.f32 %v1368, %v1395
    %1397 = vdwg.mxu0
    %v1398 = vld [vmem:[#allocation2 + $0x410] sm:$0xff]
    %v1399 = vld [vmem:[#allocation2 + $0x418] sm:$0xff]
    %v1400 = vld [vmem:[#allocation2 + $0x420] sm:$0xff]
    %v1401 = vld [vmem:[#allocation2 + $0x428] sm:$0xff]
    %v1402 = vld [vmem:[#allocation2 + $0x430] sm:$0x1]
    %v1403 = vperm.slane %v1402, 0
    %1404 = vmatpush.msra.mxu0 0.0
    %1405 = vmatpush.msra.mxu0 0.0
    %1406 = vmatpush.msra.mxu0 0.0
    %1407 = vmatpush.msra.mxu0 0.0
    %1408 = vmatpush.msra.mxu0 0.0
    %1409 = vmatpush.msra.mxu0 0.0
    %1410 = vmatpush.msra.mxu0 0.0
    %1411 = vmatpush.msra.mxu0 0.0
    %1412 = vmatpush.msra.mxu0 0.0
    %1413 = vmatpush.msra.mxu0 0.0
    %1414 = vmatpush.msra.mxu0 0.0
    %1415 = vmatpush.msra.mxu0 0.0
    %1416 = vmatpush.msra.mxu0 %v1401
    %1417 = vmatpush.msra.mxu0 %v1400
    %1418 = vmatpush.msra.mxu0 %v1399
    %1419 = vmatpush.msra.mxu0 %v1398
    %1420 = vmatmul.f32.gmra.mxu0 %v1370
    %v1421 = vpop.f32.mrf.mxu0
    %v1422 = vadd.f32 %v1403, %v1421
    %1423 = vmatmul.f32.gmra.mxu0 %v1373
    %v1424 = vpop.f32.mrf.mxu0
    %v1425 = vadd.f32 %v1403, %v1424
    %1426 = vdwg.mxu0
    %v1427 = vmul.f32 %v1393, %v50
    %v1428 = vmul.f32 %v1396, %v50
    %v1429 = vmul.f32 %v1393, %v54
    %v1430 = vmul.f32 %v1396, %v54
    %v1431 = vmul.f32 %v1393, %v58
    %v1432 = vmul.f32 %v1396, %v58
    %v1433 = vmul.f32 %v1393, %v62
    %v1434 = vmul.f32 %v1396, %v62
    %v1435 = vmul.f32 %v1422, %v50
    %v1436 = vmul.f32 %v1425, %v50
    %v1437 = vmul.f32 %v1422, %v54
    %v1438 = vmul.f32 %v1425, %v54
    %v1439 = vmul.f32 %v1422, %v58
    %v1440 = vmul.f32 %v1425, %v58
    %v1441 = vmul.f32 %v1422, %v62
    %v1442 = vmul.f32 %v1425, %v62
    %v1444 = vsel %vm108, %v1361, 0
    %v1447 = vsel %vm108, %v1427, 0
    %v1450 = vsel %vm108, %v1428, 0
    %v1453 = vsel %vm108, %v1429, 0
    %v1456 = vsel %vm108, %v1430, 0
    %v1459 = vsel %vm108, %v1431, 0
    %v1462 = vsel %vm108, %v1432, 0
    %v1465 = vsel %vm108, %v1433, 0
    %v1468 = vsel %vm108, %v1434, 0
    %1470 = vmatpush.xpose.msra.mxu0 0.0
    %1471 = vmatpush.xpose.msra.mxu0 0.0
    %1472 = vmatpush.xpose.msra.mxu0 0.0
    %1473 = vmatpush.xpose.msra.mxu0 0.0
    %1474 = vmatpush.xpose.msra.mxu0 0.0
    %1475 = vmatpush.xpose.msra.mxu0 0.0
    %1476 = vmatpush.xpose.msra.mxu0 0.0
    %1477 = vmatpush.xpose.msra.mxu0 0.0
    %1478 = vmatpush.xpose.msra.mxu0 %v1468
    %1479 = vmatpush.xpose.msra.mxu0 %v1465
    %1480 = vmatpush.xpose.msra.mxu0 %v1462
    %1481 = vmatpush.xpose.msra.mxu0 %v1459
    %1482 = vmatpush.xpose.msra.mxu0 %v1456
    %1483 = vmatpush.xpose.msra.mxu0 %v1453
    %1484 = vmatpush.xpose.msra.mxu0 %v1450
    %1485 = vmatpush.xpose.msra.mxu0 %v1447
    %1486 = vmatmul.f32.gmra.mxu0 %v1444
    %v1487 = vpop.f32.mrf.mxu0
    %v1488 = vadd.f32 %v30, %v1487
    %1489 = vdwg.mxu0
    %v1490 = vsel %vm265, %v1488, -inf
    %1491 = vmax.xlane.f32.xlu0 %v1490
    %v1492 = vpop.xlane.xlu0 %1491
    %v1493 = vsub.f32 %v1488, %v1492
    %v1494 = vmul.f32 %v1493, 1.442695
    %v1495 = vpow.pop %v1494
    %v1497 = vsel %vm265, %v1495, 0
    %1499 = vmatpush.msra.mxu0 0.0
    %1500 = vmatpush.msra.mxu0 0.0
    %1501 = vmatpush.msra.mxu0 0.0
    %1502 = vmatpush.msra.mxu0 0.0
    %1503 = vmatpush.msra.mxu0 0.0
    %1504 = vmatpush.msra.mxu0 0.0
    %1505 = vmatpush.msra.mxu0 0.0
    %1506 = vmatpush.msra.mxu0 0.0
    %1507 = vmatpush.msra.mxu0 %v38
    %1508 = vmatpush.msra.mxu0 %v37
    %1509 = vmatpush.msra.mxu0 %v36
    %1510 = vmatpush.msra.mxu0 %v35
    %1511 = vmatpush.msra.mxu0 %v34
    %1512 = vmatpush.msra.mxu0 %v33
    %1513 = vmatpush.msra.mxu0 %v32
    %1514 = vmatpush.msra.mxu0 %v31
    %1515 = vmatmul.f32.gmra.mxu0 %v1497
    %v1516 = vpop.f32.mrf.mxu0
    %v1517 = vadd.f32 0.0, %v1516
    %1518 = vdwg.mxu0
    %v1519 = vrcp.pop %v1517
    %v1520 = vmul.f32 %v1517, %v1519
    %v1521 = vsub.f32 1.0, %v1520
    %v1522 = vmul.f32 %v1519, %v1521
    %v1523 = vadd.f32 %v1519, %v1522
    %vm1524 = vweird.f32 %v1517
    %vm1525 = vweird.f32 %v1519
    %vm1526 = vmor %vm1524, %vm1525
    %v1527 = vsel %vm1526, %v1519, %v1523
    %v1528 = vand.u32 2147483647, %v1517
    %vm1529 = vcmp.eq.f32.partialorder %v1528, 8.507059e+37
    %v1530 = vand.u32 %v1517, 2147483648
    %v1531 = vor.u32 1.1754944e-38, %v1530
    %v1532 = vsel %vm1529, %v1531, %v1527
    %v1533 = vmul.f32 %v1495, %v1532
    %v1535 = vsel %vm265, %v1533, 0
    %1537 = vmatpush.msra.mxu0 0.0
    %1538 = vmatpush.msra.mxu0 0.0
    %1539 = vmatpush.msra.mxu0 0.0
    %1540 = vmatpush.msra.mxu0 0.0
    %1541 = vmatpush.msra.mxu0 0.0
    %1542 = vmatpush.msra.mxu0 0.0
    %1543 = vmatpush.msra.mxu0 0.0
    %1544 = vmatpush.msra.mxu0 0.0
    %1545 = vmatpush.msra.mxu0 %v1442
    %1546 = vmatpush.msra.mxu0 %v1441
    %1547 = vmatpush.msra.mxu0 %v1440
    %1548 = vmatpush.msra.mxu0 %v1439
    %1549 = vmatpush.msra.mxu0 %v1438
    %1550 = vmatpush.msra.mxu0 %v1437
    %1551 = vmatpush.msra.mxu0 %v1436
    %1552 = vmatpush.msra.mxu0 %v1435
    %1553 = vmatmul.f32.gmra.mxu0 %v1535
    %v1554 = vpop.f32.mrf.mxu0
    %v1555 = vadd.f32 0.0, %v1554
    %1556 = vdwg.mxu0
    %v1557 = vld [vmem:[#allocation2 + $0x438] sm:$0xff]
    %v1558 = vld [vmem:[#allocation2 + $0x440] sm:$0xff]
    %v1559 = vld [vmem:[#allocation2 + $0x448] sm:$0xff]
    %v1560 = vld [vmem:[#allocation2 + $0x450] sm:$0xff]
    %v1561 = vld [vmem:[#allocation2 + $0x458] sm:$0x1]
    %v1562 = vperm.slane %v1561, 0
    %v1564 = vsel %vm108, %v1555, 0
    %1566 = vmatpush.msra.mxu0 0.0
    %1567 = vmatpush.msra.mxu0 0.0
    %1568 = vmatpush.msra.mxu0 0.0
    %1569 = vmatpush.msra.mxu0 0.0
    %1570 = vmatpush.msra.mxu0 0.0
    %1571 = vmatpush.msra.mxu0 0.0
    %1572 = vmatpush.msra.mxu0 0.0
    %1573 = vmatpush.msra.mxu0 0.0
    %1574 = vmatpush.msra.mxu0 0.0
    %1575 = vmatpush.msra.mxu0 0.0
    %1576 = vmatpush.msra.mxu0 0.0
    %1577 = vmatpush.msra.mxu0 0.0
    %1578 = vmatpush.msra.mxu0 %v1560
    %1579 = vmatpush.msra.mxu0 %v1559
    %1580 = vmatpush.msra.mxu0 %v1558
    %1581 = vmatpush.msra.mxu0 %v1557
    %1582 = vmatmul.f32.gmra.mxu0 %v1564
    %v1583 = vpop.f32.mrf.mxu0
    %v1584 = vadd.f32 %v1562, %v1583
    %1585 = vdwg.mxu0
    %v1586 = vld [vmem:[#allocation2 + $0x460] sm:$0x1]
    %v1587 = vld [vmem:[#allocation2 + $0x468] sm:$0x1]
    %v1588 = vadd.f32 %v1333, %v1584
    %v1589 = vmul.f32 %v1588, %v1588
    %v1590 = vsel %vm108, %v1588, 0.0
    %1591 = vadd.xlane.f32.xlu0 %v1590
    %v1592 = vpop.xlane.xlu0 %1591
    %v1593 = vsel %vm108, %v1589, 0.0
    %1594 = vadd.xlane.f32.xlu0 %v1593
    %v1595 = vpop.xlane.xlu0 %1594
    %v1596 = vmul.f32 %v1592, 0.03125
    %v1597 = vmul.f32 %v1595, 0.03125
    %v1598 = vmul.f32 %v1596, %v1596
    %v1599 = vsub.f32 %v1597, %v1598
    %v1600 = vsub.f32 %v1588, %v1596
    %v1601 = vadd.f32 %v1599, 1e-05
    %v1602 = vrsqrt.pop %v1601
    %v1603 = vmul.f32 %v1602, %v1601
    %v1604 = vmul.f32 %v1603, %v1602
    %v1605 = vmul.f32 0.5, %v1604
    %v1606 = vsub.f32 1.5, %v1605
    %v1607 = vmul.f32 %v1602, %v1606
    %vm1608 = vweird.f32 %v1601
    %vm1609 = vweird.f32 %v1602
    %vm1610 = vmor %vm1608, %vm1609
    %v1611 = vsel %vm1610, %v1602, %v1607
    %v1612 = vmul.f32 %v1600, %v1611
    %v1613 = vperm.slane %v1586, 0
    %v1614 = vmul.f32 %v1612, %v1613
    %v1615 = vperm.slane %v1587, 0
    %v1616 = vadd.f32 %v1614, %v1615
    %v1617 = vld [vmem:[#allocation2 + $0x470] sm:$0xff]
    %v1618 = vld [vmem:[#allocation2 + $0x478] sm:$0xff]
    %v1619 = vld [vmem:[#allocation2 + $0x480] sm:$0xff]
    %v1620 = vld [vmem:[#allocation2 + $0x488] sm:$0xff]
    %v1621 = vld [vmem:[#allocation2 + $0x490] sm:$0x1]
    %v1622 = vperm.slane %v1621, 0
    %v1624 = vsel %vm108, %v1616, 0
    %1626 = vmatpush.msra.mxu0 0.0
    %1627 = vmatpush.msra.mxu0 0.0
    %1628 = vmatpush.msra.mxu0 0.0
    %1629 = vmatpush.msra.mxu0 0.0
    %1630 = vmatpush.msra.mxu0 0.0
    %1631 = vmatpush.msra.mxu0 0.0
    %1632 = vmatpush.msra.mxu0 0.0
    %1633 = vmatpush.msra.mxu0 0.0
    %1634 = vmatpush.msra.mxu0 0.0
    %1635 = vmatpush.msra.mxu0 0.0
    %1636 = vmatpush.msra.mxu0 0.0
    %1637 = vmatpush.msra.mxu0 0.0
    %1638 = vmatpush.msra.mxu0 %v1620
    %1639 = vmatpush.msra.mxu0 %v1619
    %1640 = vmatpush.msra.mxu0 %v1618
    %1641 = vmatpush.msra.mxu0 %v1617
    %1642 = vmatmul.f32.gmra.mxu0 %v1624
    %v1643 = vpop.f32.mrf.mxu0
    %v1644 = vadd.f32 %v1622, %v1643
    %1645 = vdwg.mxu0
    %v1646 = vmax.f32 %v1644, 0.0
    %v1647 = vld [vmem:[#allocation2 + $0x498] sm:$0xff]
    %v1648 = vld [vmem:[#allocation2 + $0x4a0] sm:$0xff]
    %v1649 = vld [vmem:[#allocation2 + $0x4a8] sm:$0xff]
    %v1650 = vld [vmem:[#allocation2 + $0x4b0] sm:$0xff]
    %v1651 = vld [vmem:[#allocation2 + $0x4b8] sm:$0xff]
    %v1652 = vld [vmem:[#allocation2 + $0x4c0] sm:$0xff]
    %v1653 = vld [vmem:[#allocation2 + $0x4c8] sm:$0xff]
    %v1654 = vld [vmem:[#allocation2 + $0x4d0] sm:$0xff]
    %v1655 = vld [vmem:[#allocation2 + $0x4d8] sm:$0x1]
    %v1656 = vperm.slane %v1655, 0
    %v1658 = vsel %vm265, %v1646, 0
    %1660 = vmatpush.msra.mxu0 0.0
    %1661 = vmatpush.msra.mxu0 0.0
    %1662 = vmatpush.msra.mxu0 0.0
    %1663 = vmatpush.msra.mxu0 0.0
    %1664 = vmatpush.msra.mxu0 0.0
    %1665 = vmatpush.msra.mxu0 0.0
    %1666 = vmatpush.msra.mxu0 0.0
    %1667 = vmatpush.msra.mxu0 0.0
    %1668 = vmatpush.msra.mxu0 %v1654
    %1669 = vmatpush.msra.mxu0 %v1653
    %1670 = vmatpush.msra.mxu0 %v1652
    %1671 = vmatpush.msra.mxu0 %v1651
    %1672 = vmatpush.msra.mxu0 %v1650
    %1673 = vmatpush.msra.mxu0 %v1649
    %1674 = vmatpush.msra.mxu0 %v1648
    %1675 = vmatpush.msra.mxu0 %v1647
    %1676 = vmatmul.f32.gmra.mxu0 %v1658
    %v1677 = vpop.f32.mrf.mxu0
    %v1678 = vadd.f32 %v1656, %v1677
    %1679 = vdwg.mxu0
    %v1680 = vld [vmem:[#allocation2 + $0x4e0] sm:$0x1]
    %v1681 = vld [vmem:[#allocation2 + $0x4e8] sm:$0x1]
    %v1682 = vadd.f32 %v1616, %v1678
    %v1683 = vmul.f32 %v1682, %v1682
    %v1684 = vsel %vm108, %v1682, 0.0
    %1685 = vadd.xlane.f32.xlu0 %v1684
    %v1686 = vpop.xlane.xlu0 %1685
    %v1687 = vsel %vm108, %v1683, 0.0
    %1688 = vadd.xlane.f32.xlu0 %v1687
    %v1689 = vpop.xlane.xlu0 %1688
    %v1690 = vmul.f32 %v1686, 0.03125
    %v1691 = vmul.f32 %v1689, 0.03125
    %v1692 = vmul.f32 %v1690, %v1690
    %v1693 = vsub.f32 %v1691, %v1692
    %v1694 = vsub.f32 %v1682, %v1690
    %v1695 = vadd.f32 %v1693, 1e-05
    %v1696 = vrsqrt.pop %v1695
    %v1697 = vmul.f32 %v1696, %v1695
    %v1698 = vmul.f32 %v1697, %v1696
    %v1699 = vmul.f32 0.5, %v1698
    %v1700 = vsub.f32 1.5, %v1699
    %v1701 = vmul.f32 %v1696, %v1700
    %vm1702 = vweird.f32 %v1695
    %vm1703 = vweird.f32 %v1696
    %vm1704 = vmor %vm1702, %vm1703
    %v1705 = vsel %vm1704, %v1696, %v1701
    %v1706 = vmul.f32 %v1694, %v1705
    %v1707 = vperm.slane %v1680, 0
    %v1708 = vmul.f32 %v1706, %v1707
    %v1709 = vperm.slane %v1681, 0
    %v1710 = vadd.f32 %v1708, %v1709
    %v1711 = vld [vmem:[#allocation2 + $0x4f0] sm:$0xff]
    %v1712 = vld [vmem:[#allocation2 + $0x4f8] sm:$0xff]
    %v1713 = vld [vmem:[#allocation2 + $0x500] sm:$0xff]
    %v1714 = vld [vmem:[#allocation2 + $0x508] sm:$0xff]
    %v1715 = vld [vmem:[#allocation2 + $0x510] sm:$0x1]
    %v1716 = vperm.slane %v1715, 0
    %v1718 = vsel %vm108, %v1710, 0
    %1720 = vmatpush.msra.mxu0 0.0
    %1721 = vmatpush.msra.mxu0 0.0
    %1722 = vmatpush.msra.mxu0 0.0
    %1723 = vmatpush.msra.mxu0 0.0
    %1724 = vmatpush.msra.mxu0 0.0
    %1725 = vmatpush.msra.mxu0 0.0
    %1726 = vmatpush.msra.mxu0 0.0
    %1727 = vmatpush.msra.mxu0 0.0
    %1728 = vmatpush.msra.mxu0 0.0
    %1729 = vmatpush.msra.mxu0 0.0
    %1730 = vmatpush.msra.mxu0 0.0
    %1731 = vmatpush.msra.mxu0 0.0
    %1732 = vmatpush.msra.mxu0 %v1714
    %1733 = vmatpush.msra.mxu0 %v1713
    %1734 = vmatpush.msra.mxu0 %v1712
    %1735 = vmatpush.msra.mxu0 %v1711
    %1736 = vmatmul.f32.gmra.mxu0 %v1718
    %v1737 = vpop.f32.mrf.mxu0
    %v1738 = vadd.f32 %v1716, %v1737
    %1739 = vdwg.mxu0
    %v1740 = vld [vmem:[#allocation2 + $0x518] sm:$0xff]
    %v1741 = vld [vmem:[#allocation2 + $0x520] sm:$0xff]
    %v1742 = vld [vmem:[#allocation2 + $0x528] sm:$0xff]
    %v1743 = vld [vmem:[#allocation2 + $0x530] sm:$0xff]
    %v1744 = vld [vmem:[#allocation2 + $0x538] sm:$0x1]
    %v1745 = vperm.slane %v1744, 0
    %1746 = vmatpush.msra.mxu0 0.0
    %1747 = vmatpush.msra.mxu0 0.0
    %1748 = vmatpush.msra.mxu0 0.0
    %1749 = vmatpush.msra.mxu0 0.0
    %1750 = vmatpush.msra.mxu0 0.0
    %1751 = vmatpush.msra.mxu0 0.0
    %1752 = vmatpush.msra.mxu0 0.0
    %1753 = vmatpush.msra.mxu0 0.0
    %1754 = vmatpush.msra.mxu0 0.0
    %1755 = vmatpush.msra.mxu0 0.0
    %1756 = vmatpush.msra.mxu0 0.0
    %1757 = vmatpush.msra.mxu0 0.0
    %1758 = vmatpush.msra.mxu0 %v1743
    %1759 = vmatpush.msra.mxu0 %v1742
    %1760 = vmatpush.msra.mxu0 %v1741
    %1761 = vmatpush.msra.mxu0 %v1740
    %1762 = vmatmul.f32.gmra.mxu0 %v1718
    %v1763 = vpop.f32.mrf.mxu0
    %v1764 = vadd.f32 %v1745, %v1763
    %1765 = vdwg.mxu0
    %v1766 = vld [vmem:[#allocation2 + $0x540] sm:$0xff]
    %v1767 = vld [vmem:[#allocation2 + $0x548] sm:$0xff]
    %v1768 = vld [vmem:[#allocation2 + $0x550] sm:$0xff]
    %v1769 = vld [vmem:[#allocation2 + $0x558] sm:$0xff]
    %v1770 = vld [vmem:[#allocation2 + $0x560] sm:$0x1]
    %v1771 = vperm.slane %v1770, 0
    %1772 = vmatpush.msra.mxu0 0.0
    %1773 = vmatpush.msra.mxu0 0.0
    %1774 = vmatpush.msra.mxu0 0.0
    %1775 = vmatpush.msra.mxu0 0.0
    %1776 = vmatpush.msra.mxu0 0.0
    %1777 = vmatpush.msra.mxu0 0.0
    %1778 = vmatpush.msra.mxu0 0.0
    %1779 = vmatpush.msra.mxu0 0.0
    %1780 = vmatpush.msra.mxu0 0.0
    %1781 = vmatpush.msra.mxu0 0.0
    %1782 = vmatpush.msra.mxu0 0.0
    %1783 = vmatpush.msra.mxu0 0.0
    %1784 = vmatpush.msra.mxu0 %v1769
    %1785 = vmatpush.msra.mxu0 %v1768
    %1786 = vmatpush.msra.mxu0 %v1767
    %1787 = vmatpush.msra.mxu0 %v1766
    %1788 = vmatmul.f32.gmra.mxu0 %v1718
    %v1789 = vpop.f32.mrf.mxu0
    %v1790 = vadd.f32 %v1771, %v1789
    %1791 = vdwg.mxu0
    %v1792 = vmul.f32 %v1764, %v50
    %v1793 = vmul.f32 %v1764, %v54
    %v1794 = vmul.f32 %v1764, %v58
    %v1795 = vmul.f32 %v1764, %v62
    %v1796 = vmul.f32 %v1790, %v50
    %v1797 = vmul.f32 %v1790, %v54
    %v1798 = vmul.f32 %v1790, %v58
    %v1799 = vmul.f32 %v1790, %v62
    %v1801 = vsel %vm108, %v1738, 0
    %v1804 = vsel %vm108, %v1792, 0
    %v1807 = vsel %vm108, %v1793, 0
    %v1810 = vsel %vm108, %v1794, 0
    %v1813 = vsel %vm108, %v1795, 0
    %1815 = vmatpush.xpose.msra.mxu0 0.0
    %1816 = vmatpush.xpose.msra.mxu0 0.0
    %1817 = vmatpush.xpose.msra.mxu0 0.0
    %1818 = vmatpush.xpose.msra.mxu0 0.0
    %1819 = vmatpush.xpose.msra.mxu0 0.0
    %1820 = vmatpush.xpose.msra.mxu0 0.0
    %1821 = vmatpush.xpose.msra.mxu0 0.0
    %1822 = vmatpush.xpose.msra.mxu0 0.0
    %1823 = vmatpush.xpose.msra.mxu0 0.0
    %1824 = vmatpush.xpose.msra.mxu0 0.0
    %1825 = vmatpush.xpose.msra.mxu0 0.0
    %1826 = vmatpush.xpose.msra.mxu0 0.0
    %1827 = vmatpush.xpose.msra.mxu0 %v1813
    %1828 = vmatpush.xpose.msra.mxu0 %v1810
    %1829 = vmatpush.xpose.msra.mxu0 %v1807
    %1830 = vmatpush.xpose.msra.mxu0 %v1804
    %1831 = vmatmul.f32.gmra.mxu0 %v1801
    %v1832 = vpop.f32.mrf.mxu0
    %v1833 = vadd.f32 %v29, %v1832
    %1834 = vdwg.mxu0
    %v1835 = vsel %vm108, %v1833, -inf
    %1836 = vmax.xlane.f32.xlu0 %v1835
    %v1837 = vpop.xlane.xlu0 %1836
    %v1838 = vsub.f32 %v1833, %v1837
    %v1839 = vmul.f32 %v1838, 1.442695
    %v1840 = vpow.pop %v1839
    %v1842 = vsel %vm108, %v1840, 0
    %1844 = vmatpush.msra.mxu0 0.0
    %1845 = vmatpush.msra.mxu0 0.0
    %1846 = vmatpush.msra.mxu0 0.0
    %1847 = vmatpush.msra.mxu0 0.0
    %1848 = vmatpush.msra.mxu0 0.0
    %1849 = vmatpush.msra.mxu0 0.0
    %1850 = vmatpush.msra.mxu0 0.0
    %1851 = vmatpush.msra.mxu0 0.0
    %1852 = vmatpush.msra.mxu0 0.0
    %1853 = vmatpush.msra.mxu0 0.0
    %1854 = vmatpush.msra.mxu0 0.0
    %1855 = vmatpush.msra.mxu0 0.0
    %1856 = vmatpush.msra.mxu0 %v42
    %1857 = vmatpush.msra.mxu0 %v41
    %1858 = vmatpush.msra.mxu0 %v40
    %1859 = vmatpush.msra.mxu0 %v39
    %1860 = vmatmul.f32.gmra.mxu0 %v1842
    %v1861 = vpop.f32.mrf.mxu0
    %v1862 = vadd.f32 0.0, %v1861
    %1863 = vdwg.mxu0
    %v1864 = vrcp.pop %v1862
    %v1865 = vmul.f32 %v1862, %v1864
    %v1866 = vsub.f32 1.0, %v1865
    %v1867 = vmul.f32 %v1864, %v1866
    %v1868 = vadd.f32 %v1864, %v1867
    %vm1869 = vweird.f32 %v1862
    %vm1870 = vweird.f32 %v1864
    %vm1871 = vmor %vm1869, %vm1870
    %v1872 = vsel %vm1871, %v1864, %v1868
    %v1873 = vand.u32 2147483647, %v1862
    %vm1874 = vcmp.eq.f32.partialorder %v1873, 8.507059e+37
    %v1875 = vand.u32 %v1862, 2147483648
    %v1876 = vor.u32 1.1754944e-38, %v1875
    %v1877 = vsel %vm1874, %v1876, %v1872
    %v1878 = vmul.f32 %v1840, %v1877
    %v1880 = vsel %vm108, %v1878, 0
    %1882 = vmatpush.msra.mxu0 0.0
    %1883 = vmatpush.msra.mxu0 0.0
    %1884 = vmatpush.msra.mxu0 0.0
    %1885 = vmatpush.msra.mxu0 0.0
    %1886 = vmatpush.msra.mxu0 0.0
    %1887 = vmatpush.msra.mxu0 0.0
    %1888 = vmatpush.msra.mxu0 0.0
    %1889 = vmatpush.msra.mxu0 0.0
    %1890 = vmatpush.msra.mxu0 0.0
    %1891 = vmatpush.msra.mxu0 0.0
    %1892 = vmatpush.msra.mxu0 0.0
    %1893 = vmatpush.msra.mxu0 0.0
    %1894 = vmatpush.msra.mxu0 %v1799
    %1895 = vmatpush.msra.mxu0 %v1798
    %1896 = vmatpush.msra.mxu0 %v1797
    %1897 = vmatpush.msra.mxu0 %v1796
    %1898 = vmatmul.f32.gmra.mxu0 %v1880
    %v1899 = vpop.f32.mrf.mxu0
    %v1900 = vadd.f32 0.0, %v1899
    %1901 = vdwg.mxu0
    %v1902 = vld [vmem:[#allocation2 + $0x568] sm:$0xff]
    %v1903 = vld [vmem:[#allocation2 + $0x570] sm:$0xff]
    %v1904 = vld [vmem:[#allocation2 + $0x578] sm:$0xff]
    %v1905 = vld [vmem:[#allocation2 + $0x580] sm:$0xff]
    %v1906 = vld [vmem:[#allocation2 + $0x588] sm:$0x1]
    %v1907 = vperm.slane %v1906, 0
    %v1909 = vsel %vm108, %v1900, 0
    %1911 = vmatpush.msra.mxu0 0.0
    %1912 = vmatpush.msra.mxu0 0.0
    %1913 = vmatpush.msra.mxu0 0.0
    %1914 = vmatpush.msra.mxu0 0.0
    %1915 = vmatpush.msra.mxu0 0.0
    %1916 = vmatpush.msra.mxu0 0.0
    %1917 = vmatpush.msra.mxu0 0.0
    %1918 = vmatpush.msra.mxu0 0.0
    %1919 = vmatpush.msra.mxu0 0.0
    %1920 = vmatpush.msra.mxu0 0.0
    %1921 = vmatpush.msra.mxu0 0.0
    %1922 = vmatpush.msra.mxu0 0.0
    %1923 = vmatpush.msra.mxu0 %v1905
    %1924 = vmatpush.msra.mxu0 %v1904
    %1925 = vmatpush.msra.mxu0 %v1903
    %1926 = vmatpush.msra.mxu0 %v1902
    %1927 = vmatmul.f32.gmra.mxu0 %v1909
    %v1928 = vpop.f32.mrf.mxu0
    %v1929 = vadd.f32 %v1907, %v1928
    %1930 = vdwg.mxu0
    %v1931 = vld [vmem:[#allocation2 + $0x590] sm:$0x1]
    %v1932 = vld [vmem:[#allocation2 + $0x598] sm:$0x1]
    %v1933 = vadd.f32 %v1710, %v1929
    %v1934 = vmul.f32 %v1933, %v1933
    %v1935 = vsel %vm108, %v1933, 0.0
    %1936 = vadd.xlane.f32.xlu0 %v1935
    %v1937 = vpop.xlane.xlu0 %1936
    %v1938 = vsel %vm108, %v1934, 0.0
    %1939 = vadd.xlane.f32.xlu0 %v1938
    %v1940 = vpop.xlane.xlu0 %1939
    %v1941 = vmul.f32 %v1937, 0.03125
    %v1942 = vmul.f32 %v1940, 0.03125
    %v1943 = vmul.f32 %v1941, %v1941
    %v1944 = vsub.f32 %v1942, %v1943
    %v1945 = vsub.f32 %v1933, %v1941
    %v1946 = vadd.f32 %v1944, 1e-05
    %v1947 = vrsqrt.pop %v1946
    %v1948 = vmul.f32 %v1947, %v1946
    %v1949 = vmul.f32 %v1948, %v1947
    %v1950 = vmul.f32 0.5, %v1949
    %v1951 = vsub.f32 1.5, %v1950
    %v1952 = vmul.f32 %v1947, %v1951
    %vm1953 = vweird.f32 %v1946
    %vm1954 = vweird.f32 %v1947
    %vm1955 = vmor %vm1953, %vm1954
    %v1956 = vsel %vm1955, %v1947, %v1952
    %v1957 = vmul.f32 %v1945, %v1956
    %v1958 = vperm.slane %v1931, 0
    %v1959 = vmul.f32 %v1957, %v1958
    %v1960 = vperm.slane %v1932, 0
    %v1961 = vadd.f32 %v1959, %v1960
    %v1962 = vld [vmem:[#allocation2 + $0x5a0] sm:$0xff]
    %v1963 = vld [vmem:[#allocation2 + $0x5a8] sm:$0xff]
    %v1964 = vld [vmem:[#allocation2 + $0x5b0] sm:$0xff]
    %v1965 = vld [vmem:[#allocation2 + $0x5b8] sm:$0xff]
    %v1966 = vld [vmem:[#allocation2 + $0x5c0] sm:$0x1]
    %v1967 = vperm.slane %v1966, 0
    %v1969 = vsel %vm108, %v1961, 0
    %1971 = vmatpush.msra.mxu0 0.0
    %1972 = vmatpush.msra.mxu0 0.0
    %1973 = vmatpush.msra.mxu0 0.0
    %1974 = vmatpush.msra.mxu0 0.0
    %1975 = vmatpush.msra.mxu0 0.0
    %1976 = vmatpush.msra.mxu0 0.0
    %1977 = vmatpush.msra.mxu0 0.0
    %1978 = vmatpush.msra.mxu0 0.0
    %1979 = vmatpush.msra.mxu0 0.0
    %1980 = vmatpush.msra.mxu0 0.0
    %1981 = vmatpush.msra.mxu0 0.0
    %1982 = vmatpush.msra.mxu0 0.0
    %1983 = vmatpush.msra.mxu0 %v1965
    %1984 = vmatpush.msra.mxu0 %v1964
    %1985 = vmatpush.msra.mxu0 %v1963
    %1986 = vmatpush.msra.mxu0 %v1962
    %1987 = vmatmul.f32.gmra.mxu0 %v1969
    %v1988 = vpop.f32.mrf.mxu0
    %v1989 = vadd.f32 %v1967, %v1988
    %1990 = vdwg.mxu0
    %v1991 = vld [vmem:[#allocation2 + $0x5c8] sm:$0xff]
    %v1992 = vld [vmem:[#allocation2 + $0x5d0] sm:$0xff]
    %v1993 = vld [vmem:[#allocation2 + $0x5d8] sm:$0xff]
    %v1994 = vld [vmem:[#allocation2 + $0x5e0] sm:$0xff]
    %v1995 = vld [vmem:[#allocation2 + $0x5e8] sm:$0x1]
    %v1996 = vperm.slane %v1995, 0
    %1997 = vmatpush.msra.mxu0 0.0
    %1998 = vmatpush.msra.mxu0 0.0
    %1999 = vmatpush.msra.mxu0 0.0
    %2000 = vmatpush.msra.mxu0 0.0
    %2001 = vmatpush.msra.mxu0 0.0
    %2002 = vmatpush.msra.mxu0 0.0
    %2003 = vmatpush.msra.mxu0 0.0
    %2004 = vmatpush.msra.mxu0 0.0
    %2005 = vmatpush.msra.mxu0 0.0
    %2006 = vmatpush.msra.mxu0 0.0
    %2007 = vmatpush.msra.mxu0 0.0
    %2008 = vmatpush.msra.mxu0 0.0
    %2009 = vmatpush.msra.mxu0 %v1994
    %2010 = vmatpush.msra.mxu0 %v1993
    %2011 = vmatpush.msra.mxu0 %v1992
    %2012 = vmatpush.msra.mxu0 %v1991
    %2013 = vmatmul.f32.gmra.mxu0 %v1370
    %v2014 = vpop.f32.mrf.mxu0
    %v2015 = vadd.f32 %v1996, %v2014
    %2016 = vmatmul.f32.gmra.mxu0 %v1373
    %v2017 = vpop.f32.mrf.mxu0
    %v2018 = vadd.f32 %v1996, %v2017
    %2019 = vdwg.mxu0
    %v2020 = vld [vmem:[#allocation2 + $0x5f0] sm:$0xff]
    %v2021 = vld [vmem:[#allocation2 + $0x5f8] sm:$0xff]
    %v2022 = vld [vmem:[#allocation2 + $0x600] sm:$0xff]
    %v2023 = vld [vmem:[#allocation2 + $0x608] sm:$0xff]
    %v2024 = vld [vmem:[#allocation2 + $0x610] sm:$0x1]
    %v2025 = vperm.slane %v2024, 0
    %2026 = vmatpush.msra.mxu0 0.0
    %2027 = vmatpush.msra.mxu0 0.0
    %2028 = vmatpush.msra.mxu0 0.0
    %2029 = vmatpush.msra.mxu0 0.0
    %2030 = vmatpush.msra.mxu0 0.0
    %2031 = vmatpush.msra.mxu0 0.0
    %2032 = vmatpush.msra.mxu0 0.0
    %2033 = vmatpush.msra.mxu0 0.0
    %2034 = vmatpush.msra.mxu0 0.0
    %2035 = vmatpush.msra.mxu0 0.0
    %2036 = vmatpush.msra.mxu0 0.0
    %2037 = vmatpush.msra.mxu0 0.0
    %2038 = vmatpush.msra.mxu0 %v2023
    %2039 = vmatpush.msra.mxu0 %v2022
    %2040 = vmatpush.msra.mxu0 %v2021
    %2041 = vmatpush.msra.mxu0 %v2020
    %2042 = vmatmul.f32.gmra.mxu0 %v1370
    %v2043 = vpop.f32.mrf.mxu0
    %v2044 = vadd.f32 %v2025, %v2043
    %2045 = vmatmul.f32.gmra.mxu0 %v1373
    %v2046 = vpop.f32.mrf.mxu0
    %v2047 = vadd.f32 %v2025, %v2046
    %2048 = vdwg.mxu0
    %v2049 = vmul.f32 %v2015, %v50
    %v2050 = vmul.f32 %v2018, %v50
    %v2051 = vmul.f32 %v2015, %v54
    %v2052 = vmul.f32 %v2018, %v54
    %v2053 = vmul.f32 %v2015, %v58
    %v2054 = vmul.f32 %v2018, %v58
    %v2055 = vmul.f32 %v2015, %v62
    %v2056 = vmul.f32 %v2018, %v62
    %v2057 = vmul.f32 %v2044, %v50
    %v2058 = vmul.f32 %v2047, %v50
    %v2059 = vmul.f32 %v2044, %v54
    %v2060 = vmul.f32 %v2047, %v54
    %v2061 = vmul.f32 %v2044, %v58
    %v2062 = vmul.f32 %v2047, %v58
    %v2063 = vmul.f32 %v2044, %v62
    %v2064 = vmul.f32 %v2047, %v62
    %v2066 = vsel %vm108, %v1989, 0
    %v2069 = vsel %vm108, %v2049, 0
    %v2072 = vsel %vm108, %v2050, 0
    %v2075 = vsel %vm108, %v2051, 0
    %v2078 = vsel %vm108, %v2052, 0
    %v2081 = vsel %vm108, %v2053, 0
    %v2084 = vsel %vm108, %v2054, 0
    %v2087 = vsel %vm108, %v2055, 0
    %v2090 = vsel %vm108, %v2056, 0
    %2092 = vmatpush.xpose.msra.mxu0 0.0
    %2093 = vmatpush.xpose.msra.mxu0 0.0
    %2094 = vmatpush.xpose.msra.mxu0 0.0
    %2095 = vmatpush.xpose.msra.mxu0 0.0
    %2096 = vmatpush.xpose.msra.mxu0 0.0
    %2097 = vmatpush.xpose.msra.mxu0 0.0
    %2098 = vmatpush.xpose.msra.mxu0 0.0
    %2099 = vmatpush.xpose.msra.mxu0 0.0
    %2100 = vmatpush.xpose.msra.mxu0 %v2090
    %2101 = vmatpush.xpose.msra.mxu0 %v2087
    %2102 = vmatpush.xpose.msra.mxu0 %v2084
    %2103 = vmatpush.xpose.msra.mxu0 %v2081
    %2104 = vmatpush.xpose.msra.mxu0 %v2078
    %2105 = vmatpush.xpose.msra.mxu0 %v2075
    %2106 = vmatpush.xpose.msra.mxu0 %v2072
    %2107 = vmatpush.xpose.msra.mxu0 %v2069
    %2108 = vmatmul.f32.gmra.mxu0 %v2066
    %v2109 = vpop.f32.mrf.mxu0
    %v2110 = vadd.f32 %v30, %v2109
    %2111 = vdwg.mxu0
    %v2112 = vsel %vm265, %v2110, -inf
    %2113 = vmax.xlane.f32.xlu0 %v2112
    %v2114 = vpop.xlane.xlu0 %2113
    %v2115 = vsub.f32 %v2110, %v2114
    %v2116 = vmul.f32 %v2115, 1.442695
    %v2117 = vpow.pop %v2116
    %v2119 = vsel %vm265, %v2117, 0
    %2121 = vmatpush.msra.mxu0 0.0
    %2122 = vmatpush.msra.mxu0 0.0
    %2123 = vmatpush.msra.mxu0 0.0
    %2124 = vmatpush.msra.mxu0 0.0
    %2125 = vmatpush.msra.mxu0 0.0
    %2126 = vmatpush.msra.mxu0 0.0
    %2127 = vmatpush.msra.mxu0 0.0
    %2128 = vmatpush.msra.mxu0 0.0
    %2129 = vmatpush.msra.mxu0 %v38
    %2130 = vmatpush.msra.mxu0 %v37
    %2131 = vmatpush.msra.mxu0 %v36
    %2132 = vmatpush.msra.mxu0 %v35
    %2133 = vmatpush.msra.mxu0 %v34
    %2134 = vmatpush.msra.mxu0 %v33
    %2135 = vmatpush.msra.mxu0 %v32
    %2136 = vmatpush.msra.mxu0 %v31
    %2137 = vmatmul.f32.gmra.mxu0 %v2119
    %v2138 = vpop.f32.mrf.mxu0
    %v2139 = vadd.f32 0.0, %v2138
    %2140 = vdwg.mxu0
    %v2141 = vrcp.pop %v2139
    %v2142 = vmul.f32 %v2139, %v2141
    %v2143 = vsub.f32 1.0, %v2142
    %v2144 = vmul.f32 %v2141, %v2143
    %v2145 = vadd.f32 %v2141, %v2144
    %vm2146 = vweird.f32 %v2139
    %vm2147 = vweird.f32 %v2141
    %vm2148 = vmor %vm2146, %vm2147
    %v2149 = vsel %vm2148, %v2141, %v2145
    %v2150 = vand.u32 2147483647, %v2139
    %vm2151 = vcmp.eq.f32.partialorder %v2150, 8.507059e+37
    %v2152 = vand.u32 %v2139, 2147483648
    %v2153 = vor.u32 1.1754944e-38, %v2152
    %v2154 = vsel %vm2151, %v2153, %v2149
    %v2155 = vmul.f32 %v2117, %v2154
    %v2157 = vsel %vm265, %v2155, 0
    %2159 = vmatpush.msra.mxu0 0.0
    %2160 = vmatpush.msra.mxu0 0.0
    %2161 = vmatpush.msra.mxu0 0.0
    %2162 = vmatpush.msra.mxu0 0.0
    %2163 = vmatpush.msra.mxu0 0.0
    %2164 = vmatpush.msra.mxu0 0.0
    %2165 = vmatpush.msra.mxu0 0.0
    %2166 = vmatpush.msra.mxu0 0.0
    %2167 = vmatpush.msra.mxu0 %v2064
    %2168 = vmatpush.msra.mxu0 %v2063
    %2169 = vmatpush.msra.mxu0 %v2062
    %2170 = vmatpush.msra.mxu0 %v2061
    %2171 = vmatpush.msra.mxu0 %v2060
    %2172 = vmatpush.msra.mxu0 %v2059
    %2173 = vmatpush.msra.mxu0 %v2058
    %2174 = vmatpush.msra.mxu0 %v2057
    %2175 = vmatmul.f32.gmra.mxu0 %v2157
    %v2176 = vpop.f32.mrf.mxu0
    %v2177 = vadd.f32 0.0, %v2176
    %2178 = vdwg.mxu0
    %v2179 = vld [vmem:[#allocation2 + $0x618] sm:$0xff]
    %v2180 = vld [vmem:[#allocation2 + $0x620] sm:$0xff]
    %v2181 = vld [vmem:[#allocation2 + $0x628] sm:$0xff]
    %v2182 = vld [vmem:[#allocation2 + $0x630] sm:$0xff]
    %v2183 = vld [vmem:[#allocation2 + $0x638] sm:$0x1]
    %v2184 = vperm.slane %v2183, 0
    %v2186 = vsel %vm108, %v2177, 0
    %2188 = vmatpush.msra.mxu0 0.0
    %2189 = vmatpush.msra.mxu0 0.0
    %2190 = vmatpush.msra.mxu0 0.0
    %2191 = vmatpush.msra.mxu0 0.0
    %2192 = vmatpush.msra.mxu0 0.0
    %2193 = vmatpush.msra.mxu0 0.0
    %2194 = vmatpush.msra.mxu0 0.0
    %2195 = vmatpush.msra.mxu0 0.0
    %2196 = vmatpush.msra.mxu0 0.0
    %2197 = vmatpush.msra.mxu0 0.0
    %2198 = vmatpush.msra.mxu0 0.0
    %2199 = vmatpush.msra.mxu0 0.0
    %2200 = vmatpush.msra.mxu0 %v2182
    %2201 = vmatpush.msra.mxu0 %v2181
    %2202 = vmatpush.msra.mxu0 %v2180
    %2203 = vmatpush.msra.mxu0 %v2179
    %2204 = vmatmul.f32.gmra.mxu0 %v2186
    %v2205 = vpop.f32.mrf.mxu0
    %v2206 = vadd.f32 %v2184, %v2205
    %2207 = vdwg.mxu0
    %v2208 = vld [vmem:[#allocation2 + $0x640] sm:$0x1]
    %v2209 = vld [vmem:[#allocation2 + $0x648] sm:$0x1]
    %v2210 = vadd.f32 %v1961, %v2206
    %v2211 = vmul.f32 %v2210, %v2210
    %v2212 = vsel %vm108, %v2210, 0.0
    %2213 = vadd.xlane.f32.xlu0 %v2212
    %v2214 = vpop.xlane.xlu0 %2213
    %v2215 = vsel %vm108, %v2211, 0.0
    %2216 = vadd.xlane.f32.xlu0 %v2215
    %v2217 = vpop.xlane.xlu0 %2216
    %v2218 = vmul.f32 %v2214, 0.03125
    %v2219 = vmul.f32 %v2217, 0.03125
    %v2220 = vmul.f32 %v2218, %v2218
    %v2221 = vsub.f32 %v2219, %v2220
    %v2222 = vsub.f32 %v2210, %v2218
    %v2223 = vadd.f32 %v2221, 1e-05
    %v2224 = vrsqrt.pop %v2223
    %v2225 = vmul.f32 %v2224, %v2223
    %v2226 = vmul.f32 %v2225, %v2224
    %v2227 = vmul.f32 0.5, %v2226
    %v2228 = vsub.f32 1.5, %v2227
    %v2229 = vmul.f32 %v2224, %v2228
    %vm2230 = vweird.f32 %v2223
    %vm2231 = vweird.f32 %v2224
    %vm2232 = vmor %vm2230, %vm2231
    %v2233 = vsel %vm2232, %v2224, %v2229
    %v2234 = vmul.f32 %v2222, %v2233
    %v2235 = vperm.slane %v2208, 0
    %v2236 = vmul.f32 %v2234, %v2235
    %v2237 = vperm.slane %v2209, 0
    %v2238 = vadd.f32 %v2236, %v2237
    %v2239 = vld [vmem:[#allocation2 + $0x650] sm:$0xff]
    %v2240 = vld [vmem:[#allocation2 + $0x658] sm:$0xff]
    %v2241 = vld [vmem:[#allocation2 + $0x660] sm:$0xff]
    %v2242 = vld [vmem:[#allocation2 + $0x668] sm:$0xff]
    %v2243 = vld [vmem:[#allocation2 + $0x670] sm:$0x1]
    %v2244 = vperm.slane %v2243, 0
    %v2246 = vsel %vm108, %v2238, 0
    %2248 = vmatpush.msra.mxu0 0.0
    %2249 = vmatpush.msra.mxu0 0.0
    %2250 = vmatpush.msra.mxu0 0.0
    %2251 = vmatpush.msra.mxu0 0.0
    %2252 = vmatpush.msra.mxu0 0.0
    %2253 = vmatpush.msra.mxu0 0.0
    %2254 = vmatpush.msra.mxu0 0.0
    %2255 = vmatpush.msra.mxu0 0.0
    %2256 = vmatpush.msra.mxu0 0.0
    %2257 = vmatpush.msra.mxu0 0.0
    %2258 = vmatpush.msra.mxu0 0.0
    %2259 = vmatpush.msra.mxu0 0.0
    %2260 = vmatpush.msra.mxu0 %v2242
    %2261 = vmatpush.msra.mxu0 %v2241
    %2262 = vmatpush.msra.mxu0 %v2240
    %2263 = vmatpush.msra.mxu0 %v2239
    %2264 = vmatmul.f32.gmra.mxu0 %v2246
    %v2265 = vpop.f32.mrf.mxu0
    %v2266 = vadd.f32 %v2244, %v2265
    %2267 = vdwg.mxu0
    %v2268 = vmax.f32 %v2266, 0.0
    %v2269 = vld [vmem:[#allocation2 + $0x678] sm:$0xff]
    %v2270 = vld [vmem:[#allocation2 + $0x680] sm:$0xff]
    %v2271 = vld [vmem:[#allocation2 + $0x688] sm:$0xff]
    %v2272 = vld [vmem:[#allocation2 + $0x690] sm:$0xff]
    %v2273 = vld [vmem:[#allocation2 + $0x698] sm:$0xff]
    %v2274 = vld [vmem:[#allocation2 + $0x6a0] sm:$0xff]
    %v2275 = vld [vmem:[#allocation2 + $0x6a8] sm:$0xff]
    %v2276 = vld [vmem:[#allocation2 + $0x6b0] sm:$0xff]
    %v2277 = vld [vmem:[#allocation2 + $0x6b8] sm:$0x1]
    %v2278 = vperm.slane %v2277, 0
    %v2280 = vsel %vm265, %v2268, 0
    %2282 = vmatpush.msra.mxu0 0.0
    %2283 = vmatpush.msra.mxu0 0.0
    %2284 = vmatpush.msra.mxu0 0.0
    %2285 = vmatpush.msra.mxu0 0.0
    %2286 = vmatpush.msra.mxu0 0.0
    %2287 = vmatpush.msra.mxu0 0.0
    %2288 = vmatpush.msra.mxu0 0.0
    %2289 = vmatpush.msra.mxu0 0.0
    %2290 = vmatpush.msra.mxu0 %v2276
    %2291 = vmatpush.msra.mxu0 %v2275
    %2292 = vmatpush.msra.mxu0 %v2274
    %2293 = vmatpush.msra.mxu0 %v2273
    %2294 = vmatpush.msra.mxu0 %v2272
    %2295 = vmatpush.msra.mxu0 %v2271
    %2296 = vmatpush.msra.mxu0 %v2270
    %2297 = vmatpush.msra.mxu0 %v2269
    %2298 = vmatmul.f32.gmra.mxu0 %v2280
    %v2299 = vpop.f32.mrf.mxu0
    %v2300 = vadd.f32 %v2278, %v2299
    %2301 = vdwg.mxu0
    %v2302 = vld [vmem:[#allocation2 + $0x6c0] sm:$0x1]
    %v2303 = vld [vmem:[#allocation2 + $0x6c8] sm:$0x1]
    %v2304 = vadd.f32 %v2238, %v2300
    %v2305 = vmul.f32 %v2304, %v2304
    %v2306 = vsel %vm108, %v2304, 0.0
    %2307 = vadd.xlane.f32.xlu0 %v2306
    %v2308 = vpop.xlane.xlu0 %2307
    %v2309 = vsel %vm108, %v2305, 0.0
    %2310 = vadd.xlane.f32.xlu0 %v2309
    %v2311 = vpop.xlane.xlu0 %2310
    %v2312 = vmul.f32 %v2308, 0.03125
    %v2313 = vmul.f32 %v2311, 0.03125
    %v2314 = vmul.f32 %v2312, %v2312
    %v2315 = vsub.f32 %v2313, %v2314
    %v2316 = vsub.f32 %v2304, %v2312
    %v2317 = vadd.f32 %v2315, 1e-05
    %v2318 = vrsqrt.pop %v2317
    %v2319 = vmul.f32 %v2318, %v2317
    %v2320 = vmul.f32 %v2319, %v2318
    %v2321 = vmul.f32 0.5, %v2320
    %v2322 = vsub.f32 1.5, %v2321
    %v2323 = vmul.f32 %v2318, %v2322
    %vm2324 = vweird.f32 %v2317
    %vm2325 = vweird.f32 %v2318
    %vm2326 = vmor %vm2324, %vm2325
    %v2327 = vsel %vm2326, %v2318, %v2323
    %v2328 = vmul.f32 %v2316, %v2327
    %v2329 = vperm.slane %v2302, 0
    %v2330 = vmul.f32 %v2328, %v2329
    %v2331 = vperm.slane %v2303, 0
    %v2332 = vadd.f32 %v2330, %v2331
    %v2333 = vperm.slane %v43, 0
    %v2334 = vmul.f32 %v2332, %v2333
    %v2335 = vsel %vm108, %v2334, 0.0
    %2336 = vadd.xlane.f32.xlu0 %v2335
    %v2337 = vpop.xlane.xlu0 %2336
    %v2338 = vperm.slane %v44, 0
    %v2339 = vadd.f32 %v2337, %v2338
    %vm2340 = vcmask 7168
    %2341 = vst.msk [vmem:[%s2] sm:$0xff] %vm2340, %v2339
    // Predicated region
    $region14: #{forward.1} parent=1 // pred_check
      _
    $region15: #{forward.1} parent=1 // pred_check_branch
      %2343 = sbr.rel (0) target = $region17
    $region16: #{forward.1} parent=1 // pred_region
      _
    $region17: #{forward.1} parent=1 // pred_fallthru
      _
    // Predicated region
    $region18: #{forward.1} parent=1 // pred_check
      _
    $region19: #{forward.1} parent=1 // pred_check_branch
      %2345 = sbr.rel (0) target = $region21
    $region20: #{forward.1} parent=1 // pred_region
      _
    $region21: #{forward.1} parent=1 // pred_fallthru
      _
    %2346 = vsyncpa [#allocation3], 1

</llo_original>
